<compile_context>
chip_gen: v6e
topology: v6e:2x2x1
jax: 0.10.0
libtpu: 0.0.40
codegen_flags: <defaults>
</compile_context>

<pallas_src>
import jax
import jax.numpy as jnp
from jax.experimental import pallas as pl
from jax.experimental.pallas import tpu as pltpu

# ----------------- small test config (consistent with the module) -----------------
B, S, H = 2, 8, 32            # batch, seq, hidden_size
NH = 4                        # num_attention_heads
HD = H // NH                  # head_dim
I = 64                        # intermediate_size
SPECIALTIES = ['primary_care', 'emergency', 'cardiology', 'neurology', 'oncology',
               'pediatrics', 'psychiatry', 'pharmacy', 'radiology', 'surgery',
               'internal_medicine', 'preventive_care']
E = len(SPECIALTIES)          # 12 health experts
TOP_K = 3                     # n_experts_per_tok
EPS = 1e-6
T = B * S                     # total tokens


# ============================ Kernel 1: attention + router ============================
# Inputs:  medical_bias (SMEM, (NH,)), x2d (T,H), ln1_g (1,H), ln2_g (1,H),
#          wqkv (H,3H), wo (H,H), cos (S,HD), sin (S,HD),
#          wrt (H,E+1) = [router_w | urgency_w], brt (1,E+1).
# Outputs: h2d (T,H) = x + attn_out (residual for MoE),
#          hn2d (T,H) = RMSNorm(h2d) (input to experts),
#          head (T,E+1) = router logits (cols 0..E-1) + urgency logit (col E).
def _attn_router_kernel(bias_ref, x_ref, g1_ref, g2_ref, wqkv_ref, wo_ref,
                        cos_ref, sin_ref, wrt_ref, brt_ref,
                        h_ref, hn_ref, head_ref):
    x = x_ref[...]                                              # (T, H)
    # --- RMSNorm (ln1) ---
    var = jnp.mean(x * x, axis=-1, keepdims=True)
    xn = x * jax.lax.rsqrt(var + EPS) * g1_ref[...]
    # --- fused QKV projection: one (T,H)@(H,3H) MXU pass ---
    qkv = jnp.dot(xn, wqkv_ref[...], preferred_element_type=jnp.float32)   # (T, 3H)

    cos = cos_ref[...]                                          # (S, HD)
    sin = sin_ref[...]
    scale = 1.0 / (HD ** 0.5)

    def rope(u):                                                # u: (S, HD)
        # rotate_half(u) = concat([-u[:, HD/2:], u[:, :HD/2]])
        ur = jnp.concatenate([-u[:, HD // 2:], u[:, :HD // 2]], axis=-1)
        return u * cos + ur * sin

    rows_out = []
    for b in range(B):                                          # static unroll (B=2)
        r0 = b * S
        head_outs = []
        for h in range(NH):                                     # static unroll (NH=4)
            c = h * HD
            q = rope(qkv[r0:r0 + S, c:c + HD])                  # (S, HD)
            k = rope(qkv[r0:r0 + S, H + c:H + c + HD])
            v = qkv[r0:r0 + S, 2 * H + c:2 * H + c + HD]
            s = jax.lax.dot_general(q, k, (((1,), (1,)), ((), ())),
                                    preferred_element_type=jnp.float32) * scale
            s = s + bias_ref[h]                                 # per-head medical bias (SMEM scalar)
            # TODO(synk): attention_mask would be added to `s` here (None in this test).
            m = jnp.max(s, axis=-1, keepdims=True)
            p = jnp.exp(s - m)
            p = p / jnp.sum(p, axis=-1, keepdims=True)
            head_outs.append(jnp.dot(p, v, preferred_element_type=jnp.float32))
        rows_out.append(jnp.concatenate(head_outs, axis=-1))    # (S, H)
    attn = jnp.concatenate(rows_out, axis=0)                    # (T, H)

    h_out = x + jnp.dot(attn, wo_ref[...], preferred_element_type=jnp.float32)
    h_ref[...] = h_out

    # --- RMSNorm (ln2) + fused router / urgency projection ---
    var2 = jnp.mean(h_out * h_out, axis=-1, keepdims=True)
    hn = h_out * jax.lax.rsqrt(var2 + EPS) * g2_ref[...]
    hn_ref[...] = hn
    head_ref[...] = (jnp.dot(hn, wrt_ref[...], preferred_element_type=jnp.float32)
                     + brt_ref[...])


# ============================ Kernel 2: experts + combine + PHI + uncertainty ============================
# Inputs:  hn (T,H), residual h2d (T,H), combine_w (T,E),
#          w1cat (H,E*I), b1cat (1,E*I), w2 (E,I,H), b2 (E,1,H),
#          phi_w1 (H,H/2), phi_b1 (1,H/2), phi_w2 (H/2,1), phi_b2 (1,1),
#          unc_w1 (H,H/4), unc_b1 (1,H/4), unc_w2 (H/4,1), unc_b2 (1,1).
# Outputs: hidden (B,T,H)  [reshaped to (B,B,S,H) outside — rank-4 PHI broadcast],
#          phi_score (B,1), uncertainty (T,1).
def _moe_kernel(hn_ref, res_ref, cw_ref, w1_ref, b1_ref, w2_ref, b2_ref,
                pw1_ref, pb1_ref, pw2_ref, pb2_ref,
                uw1_ref, ub1_ref, uw2_ref, ub2_ref,
                hid_ref, phi_ref, unc_ref):
    hn = hn_ref[...]                                            # (T, H)
    cw = cw_ref[...]                                            # (T, E)

    # Lane-dense first stage for ALL experts at once: (T,H)@(H,E*I=768).
    h1 = jnp.dot(hn, w1_ref[...], preferred_element_type=jnp.float32) + b1_ref[...]
    h1 = jax.nn.gelu(h1)                                        # (T, E*I)

    # Second stage + weighted top-k combine, accumulated in-register (no (E,T,H) in HBM).
    out = jnp.zeros(hn.shape, jnp.float32)                      # (T, H)
    for e in range(E):                                          # static unroll (E=12)
        he = h1[:, e * I:(e + 1) * I]                           # (T, I)
        oe = (jnp.dot(he, w2_ref[e], preferred_element_type=jnp.float32)
              + b2_ref[e])                                      # (T, H)
        out = out + cw[:, e:e + 1] * oe

    # --- PHI protection filter: MLP on output.mean(dim=1) per batch ---
    pooled = jnp.concatenate(
        [jnp.mean(out[b * S:(b + 1) * S, :], axis=0, keepdims=True) for b in range(B)],
        axis=0)                                                 # (B, H)
    ph = jnp.maximum(
        jnp.dot(pooled, pw1_ref[...], preferred_element_type=jnp.float32) + pb1_ref[...],
        0.0)
    phi = jax.nn.sigmoid(
        jnp.dot(ph, pw2_ref[...], preferred_element_type=jnp.float32) + pb2_ref[...])  # (B, 1)
    phi_ref[...] = phi

    # Reference semantics: output * (1 - phi_mask*0.8) with phi_mask (B,1,1,1)
    # broadcasts (B,S,H) -> (B,B,S,H); hidden = residual + output.
    factor = 1.0 - 0.8 * (phi > 0.7).astype(jnp.float32)        # (B, 1)
    res = res_ref[...]                                          # (T, H)
    for b1 in range(B):                                         # static unroll
        hid_ref[b1] = res + out * factor[b1:b1 + 1, 0:1]        # (T, H)

    # --- uncertainty head on output4.mean(dim=1) = mean over the second batch axis ---
    mean_b = jnp.zeros((S, H), jnp.float32)
    for b in range(B):
        mean_b = mean_b + out[b * S:(b + 1) * S, :]
    mean_b = mean_b / float(B)                                  # (S, H)
    pooled_u = jnp.concatenate(
        [mean_b * factor[b1:b1 + 1, 0:1] for b1 in range(B)], axis=0)   # (T, H)
    uh = jnp.maximum(
        jnp.dot(pooled_u, uw1_ref[...], preferred_element_type=jnp.float32) + ub1_ref[...],
        0.0)
    unc_ref[...] = jax.nn.sigmoid(
        jnp.dot(uh, uw2_ref[...], preferred_element_type=jnp.float32) + ub2_ref[...])   # (T, 1)


# ============================ glue (plain JAX) ============================

def rope_cos_sin(seq_len, dim):
    # Standard (LLaMA-style) rotary embedding tables.
    inv_freq = 1.0 / (10000.0 ** (jnp.arange(0, dim, 2, dtype=jnp.float32) / dim))
    t = jnp.arange(seq_len, dtype=jnp.float32)
    freqs = jnp.outer(t, inv_freq)                     # (S, dim/2)
    emb = jnp.concatenate([freqs, freqs], axis=-1)     # (S, dim)
    return jnp.cos(emb), jnp.sin(emb)


def init_params(key):
    def dense(k, shape, scale=0.02):
        return scale * jax.random.normal(k, shape, dtype=jnp.float32)

    keys = jax.random.split(key, 16)
    p = {}
    p['ln1_g'] = jnp.ones((H,), jnp.float32)
    p['ln2_g'] = jnp.ones((H,), jnp.float32)
    # attention projections (stored as (in, out) == PyTorch weight.T), no bias
    p['wq'] = dense(keys[0], (H, H))
    p['wk'] = dense(keys[1], (H, H))
    p['wv'] = dense(keys[2], (H, H))
    p['wo'] = dense(keys[3], (H, H))
    p['medical_bias'] = jnp.zeros((NH,), jnp.float32)       # torch init: zeros(1,NH,1,1)
    # MedicalRouter (assumed): linear gate -> expert_logits; softmax -> specialty dist;
    # linear+sigmoid -> urgency score.
    p['router_w'] = dense(keys[4], (H, E))
    p['router_b'] = jnp.zeros((E,), jnp.float32)
    p['urgency_w'] = dense(keys[5], (H, 1))
    p['urgency_b'] = jnp.zeros((1,), jnp.float32)
    # HealthExpert FFNs (MedicalExpert assumed: Linear(H,I) -> GELU -> Linear(I,H)), stacked.
    p['exp_w1'] = dense(keys[6], (E, H, I))
    p['exp_b1'] = jnp.zeros((E, 1, I), jnp.float32)
    p['exp_w2'] = dense(keys[7], (E, I, H))
    p['exp_b2'] = jnp.zeros((E, 1, H), jnp.float32)
    # PHI filter: Linear(H,H/2) -> ReLU -> Linear(H/2,1) -> Sigmoid
    p['phi_w1'] = dense(keys[8], (H, H // 2))
    p['phi_b1'] = jnp.zeros((H // 2,), jnp.float32)
    p['phi_w2'] = dense(keys[9], (H // 2, 1))
    p['phi_b2'] = jnp.zeros((1,), jnp.float32)
    # uncertainty estimator: Linear(H,H/4) -> ReLU -> Linear(H/4,1) -> Sigmoid
    p['unc_w1'] = dense(keys[10], (H, H // 4))
    p['unc_b1'] = jnp.zeros((H // 4,), jnp.float32)
    p['unc_w2'] = dense(keys[11], (H // 4, 1))
    p['unc_b2'] = jnp.zeros((1,), jnp.float32)
    return p


def transformer_block(params, x):
    """MedicalHealthTransformerBlock.forward (attention_mask=None)."""
    Bq, Sq, Hq = x.shape
    Tq = Bq * Sq
    x2d = x.reshape(Tq, Hq)

    # ---- fused parameter prep (tiny reshapes / concats, folded by XLA) ----
    wqkv = jnp.concatenate([params['wq'], params['wk'], params['wv']], axis=1)   # (H, 3H)
    wrt = jnp.concatenate([params['router_w'], params['urgency_w']], axis=1)     # (H, E+1)
    brt = jnp.concatenate([params['router_b'], params['urgency_b']]).reshape(1, E + 1)
    w1cat = jnp.transpose(params['exp_w1'], (1, 0, 2)).reshape(Hq, E * I)        # (H, E*I)
    b1cat = params['exp_b1'].reshape(1, E * I)
    cos, sin = rope_cos_sin(Sq, HD)

    # ---------------- Kernel 1: attention block + ln2 + router heads ----------------
    h2d, hn2d, head = pl.pallas_call(
        _attn_router_kernel,
        out_shape=(jax.ShapeDtypeStruct((Tq, Hq), jnp.float32),
                   jax.ShapeDtypeStruct((Tq, Hq), jnp.float32),
                   jax.ShapeDtypeStruct((Tq, E + 1), jnp.float32)),
        in_specs=[pl.BlockSpec(memory_space=pltpu.MemorySpace.SMEM)]
                + [pl.BlockSpec(memory_space=pltpu.MemorySpace.VMEM)] * 9,
    )(params['medical_bias'], x2d,
      params['ln1_g'].reshape(1, Hq), params['ln2_g'].reshape(1, Hq),
      wqkv, params['wo'], cos, sin, wrt, brt)

    # ---------------- routing glue (plain JAX, vectorized) ----------------
    logits = head[:, :E].reshape(Bq, Sq, E)
    urgency = jax.nn.sigmoid(head[:, E:]).reshape(Bq, Sq, 1)
    probs = jax.nn.softmax(logits, axis=-1)               # single softmax, reused below
    top_vals, top_idx = jax.lax.top_k(probs, TOP_K)       # (B,S,K)
    expert_weights = jax.nn.softmax(top_vals, axis=-1)    # (B,S,K)

    # Reference combine semantics: each expert's output scaled by the MEAN of its
    # gating weights over the tokens that selected it, applied only to those tokens.
    sel = top_idx[..., None] == jnp.arange(E)[None, None, None, :]   # (B,S,K,E)
    tok_sel = jnp.any(sel, axis=2)                                   # (B,S,E)
    cnt = jnp.sum(tok_sel, axis=(0, 1)).astype(jnp.float32)          # (E,)
    w_sum = jnp.sum(jnp.where(sel, expert_weights[..., None], 0.0), axis=(0, 1, 2))
    scalar_w = w_sum / jnp.maximum(cnt, 1.0)                         # (E,) 0 when unused
    combine_w = tok_sel.reshape(Tq, E).astype(jnp.float32) * scalar_w[None, :]   # (T, E)

    # ---------------- Kernel 2: experts + combine + PHI + uncertainty ----------------
    hid_bth, phi_score, unc2d = pl.pallas_call(
        _moe_kernel,
        out_shape=(jax.ShapeDtypeStruct((Bq, Tq, Hq), jnp.float32),
                   jax.ShapeDtypeStruct((Bq, 1), jnp.float32),
                   jax.ShapeDtypeStruct((Tq, 1), jnp.float32)),
    )(hn2d, h2d, combine_w, w1cat, b1cat, params['exp_w2'], params['exp_b2'],
      params['phi_w1'], params['phi_b1'].reshape(1, -1),
      params['phi_w2'], params['phi_b2'].reshape(1, 1),
      params['unc_w1'], params['unc_b1'].reshape(1, -1),
      params['unc_w2'], params['unc_b2'].reshape(1, 1))

    # Shape follows the reference module's PHI-mask broadcast (rank-4 output).
    hidden = hid_bth.reshape(Bq, Bq, Sq, Hq)

    aux = {'specialty_distribution': probs,
           'urgency_score': urgency,
           'expert_usage': top_idx,
           'phi_risk': phi_score,
           'uncertainty': unc2d.reshape(Bq, Sq, 1)}
    # TODO(synk): per-expert aux heads (confidence / drug_interaction / triage /
    # risk_predictor / phi_detector) feed only scalar aux metrics and depend on the
    # undefined MedicalExpert base class; omitted.
    return hidden, aux


if __name__ == "__main__":
    key = jax.random.PRNGKey(0)
    pkey, xkey = jax.random.split(key)
    params = init_params(pkey)
    x = jax.random.normal(xkey, (B, S, H), dtype=jnp.float32)

    fwd = jax.jit(transformer_block)
    hidden, aux = fwd(params, x)
    jax.block_until_ready(hidden)

    assert hidden.shape == (B, B, S, H), hidden.shape
    assert aux['specialty_distribution'].shape == (B, S, E)
    assert aux['urgency_score'].shape == (B, S, 1)
    assert aux['expert_usage'].shape == (B, S, TOP_K)
    assert aux['phi_risk'].shape == (B, 1)
    assert aux['uncertainty'].shape == (B, S, 1)
    assert bool(jnp.all(jnp.isfinite(hidden)))
    print("KERNEL_OK")
</pallas_src>

<mosaic_0001>
module attributes {stable_mosaic.version = 11 : i64} {
  func.func @_attn_router_kernel(%arg0: memref<4xf32, #tpu.memory_space<smem>>, %arg1: memref<16x32xf32, #tpu.memory_space<vmem>>, %arg2: memref<1x32xf32, #tpu.memory_space<vmem>>, %arg3: memref<1x32xf32, #tpu.memory_space<vmem>>, %arg4: memref<32x96xf32, #tpu.memory_space<vmem>>, %arg5: memref<32x32xf32, #tpu.memory_space<vmem>>, %arg6: memref<8x8xf32, #tpu.memory_space<vmem>>, %arg7: memref<8x8xf32, #tpu.memory_space<vmem>>, %arg8: memref<32x13xf32, #tpu.memory_space<vmem>>, %arg9: memref<1x13xf32, #tpu.memory_space<vmem>>, %arg10: memref<16x32xf32, #tpu.memory_space<vmem>>, %arg11: memref<16x32xf32, #tpu.memory_space<vmem>>, %arg12: memref<16x13xf32, #tpu.memory_space<vmem>>) attributes {dimension_semantics = [], scalar_prefetch = 0 : i64, scratch_operands = 0 : i64, tpu.core_type = #tpu.core_type<tc>} {
    %c0 = arith.constant 0 : index
    %c0_0 = arith.constant 0 : index
    %0 = vector.load %arg1[%c0, %c0_0] : memref<16x32xf32, #tpu.memory_space<vmem>>, vector<16x32xf32>
    %1 = arith.mulf %0, %0 : vector<16x32xf32>
    %cst = arith.constant dense<0.000000e+00> : vector<16xf32>
    %2 = vector.multi_reduction <add>, %1, %cst [1] : vector<16x32xf32> to vector<16xf32>
    %3 = vector.shape_cast %2 : vector<16xf32> to vector<16x1xf32>
    %cst_1 = arith.constant 3.200000e+01 : f32
    %4 = vector.broadcast %cst_1 : f32 to vector<16x1xf32>
    %5 = arith.divf %3, %4 : vector<16x1xf32>
    %cst_2 = arith.constant 9.99999997E-7 : f32
    %6 = vector.broadcast %cst_2 : f32 to vector<16x1xf32>
    %7 = arith.addf %5, %6 : vector<16x1xf32>
    %8 = math.rsqrt %7 : vector<16x1xf32>
    %9 = vector.broadcast %8 : vector<16x1xf32> to vector<16x32xf32>
    %10 = arith.mulf %0, %9 : vector<16x32xf32>
    %c0_3 = arith.constant 0 : index
    %c0_4 = arith.constant 0 : index
    %11 = vector.load %arg2[%c0_3, %c0_4] : memref<1x32xf32, #tpu.memory_space<vmem>>, vector<1x32xf32>
    %12 = vector.broadcast %11 : vector<1x32xf32> to vector<16x32xf32>
    %13 = arith.mulf %10, %12 : vector<16x32xf32>
    %c0_5 = arith.constant 0 : index
    %c0_6 = arith.constant 0 : index
    %14 = vector.load %arg4[%c0_5, %c0_6] : memref<32x96xf32, #tpu.memory_space<vmem>>, vector<32x96xf32>
    %cst_7 = arith.constant dense<0.000000e+00> : vector<16x96xf32>
    %15 = tpu.matmul %13, %14, %cst_7 {dimension_numbers = #tpu.dot_dimension_numbers<[1], [0], [0], [1], [0, 0, 1, 1], [], []>} : vector<16x32xf32>, vector<32x96xf32>, vector<16x96xf32> -> vector<16x96xf32>
    %c0_8 = arith.constant 0 : index
    %c0_9 = arith.constant 0 : index
    %16 = vector.load %arg6[%c0_8, %c0_9] : memref<8x8xf32, #tpu.memory_space<vmem>>, vector<8x8xf32>
    %c0_10 = arith.constant 0 : index
    %c0_11 = arith.constant 0 : index
    %17 = vector.load %arg7[%c0_10, %c0_11] : memref<8x8xf32, #tpu.memory_space<vmem>>, vector<8x8xf32>
    %18 = vector.extract_strided_slice %15 {offsets = [0, 0], sizes = [8, 8], strides = [1, 1]} : vector<16x96xf32> to vector<8x8xf32>
    %19 = vector.extract_strided_slice %18 {offsets = [0, 4], sizes = [8, 4], strides = [1, 1]} : vector<8x8xf32> to vector<8x4xf32>
    %cst_12 = arith.constant 0.000000e+00 : f32
    %20 = vector.broadcast %cst_12 : f32 to vector<8x4xf32>
    %21 = arith.subf %20, %19 : vector<8x4xf32>
    %22 = vector.extract_strided_slice %18 {offsets = [0, 0], sizes = [8, 4], strides = [1, 1]} : vector<8x8xf32> to vector<8x4xf32>
    %23 = tpu.concatenate %21, %22 in 1 : vector<8x4xf32>, vector<8x4xf32> -> vector<8x8xf32>
    %24 = arith.mulf %18, %16 : vector<8x8xf32>
    %25 = arith.mulf %23, %17 : vector<8x8xf32>
    %26 = arith.addf %24, %25 : vector<8x8xf32>
    %27 = vector.extract_strided_slice %15 {offsets = [0, 32], sizes = [8, 8], strides = [1, 1]} : vector<16x96xf32> to vector<8x8xf32>
    %28 = vector.extract_strided_slice %27 {offsets = [0, 4], sizes = [8, 4], strides = [1, 1]} : vector<8x8xf32> to vector<8x4xf32>
    %cst_13 = arith.constant 0.000000e+00 : f32
    %29 = vector.broadcast %cst_13 : f32 to vector<8x4xf32>
    %30 = arith.subf %29, %28 : vector<8x4xf32>
    %31 = vector.extract_strided_slice %27 {offsets = [0, 0], sizes = [8, 4], strides = [1, 1]} : vector<8x8xf32> to vector<8x4xf32>
    %32 = tpu.concatenate %30, %31 in 1 : vector<8x4xf32>, vector<8x4xf32> -> vector<8x8xf32>
    %33 = arith.mulf %27, %16 : vector<8x8xf32>
    %34 = arith.mulf %32, %17 : vector<8x8xf32>
    %35 = arith.addf %33, %34 : vector<8x8xf32>
    %36 = vector.extract_strided_slice %15 {offsets = [0, 64], sizes = [8, 8], strides = [1, 1]} : vector<16x96xf32> to vector<8x8xf32>
    %cst_14 = arith.constant dense<0.000000e+00> : vector<8x8xf32>
    %37 = tpu.matmul %26, %35, %cst_14 {dimension_numbers = #tpu.dot_dimension_numbers<[1], [1], [0], [0], [0, 0, 1, 0], [], []>} : vector<8x8xf32>, vector<8x8xf32>, vector<8x8xf32> -> vector<8x8xf32>
    %cst_15 = arith.constant 0.353553385 : f32
    %38 = vector.broadcast %cst_15 : f32 to vector<8x8xf32>
    %39 = arith.mulf %37, %38 : vector<8x8xf32>
    %c0_16 = arith.constant 0 : index
    %40 = memref.load %arg0[%c0_16] : memref<4xf32, #tpu.memory_space<smem>>
    %41 = vector.broadcast %40 : f32 to vector<8x8xf32>
    %42 = arith.addf %39, %41 : vector<8x8xf32>
    %cst_17 = arith.constant dense<0xFF800000> : vector<8xf32>
    %43 = vector.multi_reduction <maximumf>, %42, %cst_17 [1] : vector<8x8xf32> to vector<8xf32>
    %44 = vector.shape_cast %43 : vector<8xf32> to vector<8x1xf32>
    %45 = vector.broadcast %44 : vector<8x1xf32> to vector<8x8xf32>
    %46 = arith.subf %42, %45 : vector<8x8xf32>
    %47 = math.exp %46 : vector<8x8xf32>
    %cst_18 = arith.constant dense<0.000000e+00> : vector<8xf32>
    %48 = vector.multi_reduction <add>, %47, %cst_18 [1] : vector<8x8xf32> to vector<8xf32>
    %49 = vector.shape_cast %48 : vector<8xf32> to vector<8x1xf32>
    %50 = vector.broadcast %49 : vector<8x1xf32> to vector<8x8xf32>
    %51 = arith.divf %47, %50 : vector<8x8xf32>
    %cst_19 = arith.constant dense<0.000000e+00> : vector<8x8xf32>
    %52 = tpu.matmul %51, %36, %cst_19 {dimension_numbers = #tpu.dot_dimension_numbers<[1], [0], [0], [1], [0, 0, 1, 1], [], []>} : vector<8x8xf32>, vector<8x8xf32>, vector<8x8xf32> -> vector<8x8xf32>
    %53 = vector.extract_strided_slice %15 {offsets = [0, 8], sizes = [8, 8], strides = [1, 1]} : vector<16x96xf32> to vector<8x8xf32>
    %54 = vector.extract_strided_slice %53 {offsets = [0, 4], sizes = [8, 4], strides = [1, 1]} : vector<8x8xf32> to vector<8x4xf32>
    %cst_20 = arith.constant 0.000000e+00 : f32
    %55 = vector.broadcast %cst_20 : f32 to vector<8x4xf32>
    %56 = arith.subf %55, %54 : vector<8x4xf32>
    %57 = vector.extract_strided_slice %53 {offsets = [0, 0], sizes = [8, 4], strides = [1, 1]} : vector<8x8xf32> to vector<8x4xf32>
    %58 = tpu.concatenate %56, %57 in 1 : vector<8x4xf32>, vector<8x4xf32> -> vector<8x8xf32>
    %59 = arith.mulf %53, %16 : vector<8x8xf32>
    %60 = arith.mulf %58, %17 : vector<8x8xf32>
    %61 = arith.addf %59, %60 : vector<8x8xf32>
    %62 = vector.extract_strided_slice %15 {offsets = [0, 40], sizes = [8, 8], strides = [1, 1]} : vector<16x96xf32> to vector<8x8xf32>
    %63 = vector.extract_strided_slice %62 {offsets = [0, 4], sizes = [8, 4], strides = [1, 1]} : vector<8x8xf32> to vector<8x4xf32>
    %cst_21 = arith.constant 0.000000e+00 : f32
    %64 = vector.broadcast %cst_21 : f32 to vector<8x4xf32>
    %65 = arith.subf %64, %63 : vector<8x4xf32>
    %66 = vector.extract_strided_slice %62 {offsets = [0, 0], sizes = [8, 4], strides = [1, 1]} : vector<8x8xf32> to vector<8x4xf32>
    %67 = tpu.concatenate %65, %66 in 1 : vector<8x4xf32>, vector<8x4xf32> -> vector<8x8xf32>
    %68 = arith.mulf %62, %16 : vector<8x8xf32>
    %69 = arith.mulf %67, %17 : vector<8x8xf32>
    %70 = arith.addf %68, %69 : vector<8x8xf32>
    %71 = vector.extract_strided_slice %15 {offsets = [0, 72], sizes = [8, 8], strides = [1, 1]} : vector<16x96xf32> to vector<8x8xf32>
    %cst_22 = arith.constant dense<0.000000e+00> : vector<8x8xf32>
    %72 = tpu.matmul %61, %70, %cst_22 {dimension_numbers = #tpu.dot_dimension_numbers<[1], [1], [0], [0], [0, 0, 1, 0], [], []>} : vector<8x8xf32>, vector<8x8xf32>, vector<8x8xf32> -> vector<8x8xf32>
    %cst_23 = arith.constant 0.353553385 : f32
    %73 = vector.broadcast %cst_23 : f32 to vector<8x8xf32>
    %74 = arith.mulf %72, %73 : vector<8x8xf32>
    %c1 = arith.constant 1 : index
    %75 = memref.load %arg0[%c1] : memref<4xf32, #tpu.memory_space<smem>>
    %76 = vector.broadcast %75 : f32 to vector<8x8xf32>
    %77 = arith.addf %74, %76 : vector<8x8xf32>
    %cst_24 = arith.constant dense<0xFF800000> : vector<8xf32>
    %78 = vector.multi_reduction <maximumf>, %77, %cst_24 [1] : vector<8x8xf32> to vector<8xf32>
    %79 = vector.shape_cast %78 : vector<8xf32> to vector<8x1xf32>
    %80 = vector.broadcast %79 : vector<8x1xf32> to vector<8x8xf32>
    %81 = arith.subf %77, %80 : vector<8x8xf32>
    %82 = math.exp %81 : vector<8x8xf32>
    %cst_25 = arith.constant dense<0.000000e+00> : vector<8xf32>
    %83 = vector.multi_reduction <add>, %82, %cst_25 [1] : vector<8x8xf32> to vector<8xf32>
    %84 = vector.shape_cast %83 : vector<8xf32> to vector<8x1xf32>
    %85 = vector.broadcast %84 : vector<8x1xf32> to vector<8x8xf32>
    %86 = arith.divf %82, %85 : vector<8x8xf32>
    %cst_26 = arith.constant dense<0.000000e+00> : vector<8x8xf32>
    %87 = tpu.matmul %86, %71, %cst_26 {dimension_numbers = #tpu.dot_dimension_numbers<[1], [0], [0], [1], [0, 0, 1, 1], [], []>} : vector<8x8xf32>, vector<8x8xf32>, vector<8x8xf32> -> vector<8x8xf32>
    %88 = vector.extract_strided_slice %15 {offsets = [0, 16], sizes = [8, 8], strides = [1, 1]} : vector<16x96xf32> to vector<8x8xf32>
    %89 = vector.extract_strided_slice %88 {offsets = [0, 4], sizes = [8, 4], strides = [1, 1]} : vector<8x8xf32> to vector<8x4xf32>
    %cst_27 = arith.constant 0.000000e+00 : f32
    %90 = vector.broadcast %cst_27 : f32 to vector<8x4xf32>
    %91 = arith.subf %90, %89 : vector<8x4xf32>
    %92 = vector.extract_strided_slice %88 {offsets = [0, 0], sizes = [8, 4], strides = [1, 1]} : vector<8x8xf32> to vector<8x4xf32>
    %93 = tpu.concatenate %91, %92 in 1 : vector<8x4xf32>, vector<8x4xf32> -> vector<8x8xf32>
    %94 = arith.mulf %88, %16 : vector<8x8xf32>
    %95 = arith.mulf %93, %17 : vector<8x8xf32>
    %96 = arith.addf %94, %95 : vector<8x8xf32>
    %97 = vector.extract_strided_slice %15 {offsets = [0, 48], sizes = [8, 8], strides = [1, 1]} : vector<16x96xf32> to vector<8x8xf32>
    %98 = vector.extract_strided_slice %97 {offsets = [0, 4], sizes = [8, 4], strides = [1, 1]} : vector<8x8xf32> to vector<8x4xf32>
    %cst_28 = arith.constant 0.000000e+00 : f32
    %99 = vector.broadcast %cst_28 : f32 to vector<8x4xf32>
    %100 = arith.subf %99, %98 : vector<8x4xf32>
    %101 = vector.extract_strided_slice %97 {offsets = [0, 0], sizes = [8, 4], strides = [1, 1]} : vector<8x8xf32> to vector<8x4xf32>
    %102 = tpu.concatenate %100, %101 in 1 : vector<8x4xf32>, vector<8x4xf32> -> vector<8x8xf32>
    %103 = arith.mulf %97, %16 : vector<8x8xf32>
    %104 = arith.mulf %102, %17 : vector<8x8xf32>
    %105 = arith.addf %103, %104 : vector<8x8xf32>
    %106 = vector.extract_strided_slice %15 {offsets = [0, 80], sizes = [8, 8], strides = [1, 1]} : vector<16x96xf32> to vector<8x8xf32>
    %cst_29 = arith.constant dense<0.000000e+00> : vector<8x8xf32>
    %107 = tpu.matmul %96, %105, %cst_29 {dimension_numbers = #tpu.dot_dimension_numbers<[1], [1], [0], [0], [0, 0, 1, 0], [], []>} : vector<8x8xf32>, vector<8x8xf32>, vector<8x8xf32> -> vector<8x8xf32>
    %cst_30 = arith.constant 0.353553385 : f32
    %108 = vector.broadcast %cst_30 : f32 to vector<8x8xf32>
    %109 = arith.mulf %107, %108 : vector<8x8xf32>
    %c2 = arith.constant 2 : index
    %110 = memref.load %arg0[%c2] : memref<4xf32, #tpu.memory_space<smem>>
    %111 = vector.broadcast %110 : f32 to vector<8x8xf32>
    %112 = arith.addf %109, %111 : vector<8x8xf32>
    %cst_31 = arith.constant dense<0xFF800000> : vector<8xf32>
    %113 = vector.multi_reduction <maximumf>, %112, %cst_31 [1] : vector<8x8xf32> to vector<8xf32>
    %114 = vector.shape_cast %113 : vector<8xf32> to vector<8x1xf32>
    %115 = vector.broadcast %114 : vector<8x1xf32> to vector<8x8xf32>
    %116 = arith.subf %112, %115 : vector<8x8xf32>
    %117 = math.exp %116 : vector<8x8xf32>
    %cst_32 = arith.constant dense<0.000000e+00> : vector<8xf32>
    %118 = vector.multi_reduction <add>, %117, %cst_32 [1] : vector<8x8xf32> to vector<8xf32>
    %119 = vector.shape_cast %118 : vector<8xf32> to vector<8x1xf32>
    %120 = vector.broadcast %119 : vector<8x1xf32> to vector<8x8xf32>
    %121 = arith.divf %117, %120 : vector<8x8xf32>
    %cst_33 = arith.constant dense<0.000000e+00> : vector<8x8xf32>
    %122 = tpu.matmul %121, %106, %cst_33 {dimension_numbers = #tpu.dot_dimension_numbers<[1], [0], [0], [1], [0, 0, 1, 1], [], []>} : vector<8x8xf32>, vector<8x8xf32>, vector<8x8xf32> -> vector<8x8xf32>
    %123 = vector.extract_strided_slice %15 {offsets = [0, 24], sizes = [8, 8], strides = [1, 1]} : vector<16x96xf32> to vector<8x8xf32>
    %124 = vector.extract_strided_slice %123 {offsets = [0, 4], sizes = [8, 4], strides = [1, 1]} : vector<8x8xf32> to vector<8x4xf32>
    %cst_34 = arith.constant 0.000000e+00 : f32
    %125 = vector.broadcast %cst_34 : f32 to vector<8x4xf32>
    %126 = arith.subf %125, %124 : vector<8x4xf32>
    %127 = vector.extract_strided_slice %123 {offsets = [0, 0], sizes = [8, 4], strides = [1, 1]} : vector<8x8xf32> to vector<8x4xf32>
    %128 = tpu.concatenate %126, %127 in 1 : vector<8x4xf32>, vector<8x4xf32> -> vector<8x8xf32>
    %129 = arith.mulf %123, %16 : vector<8x8xf32>
    %130 = arith.mulf %128, %17 : vector<8x8xf32>
    %131 = arith.addf %129, %130 : vector<8x8xf32>
    %132 = vector.extract_strided_slice %15 {offsets = [0, 56], sizes = [8, 8], strides = [1, 1]} : vector<16x96xf32> to vector<8x8xf32>
    %133 = vector.extract_strided_slice %132 {offsets = [0, 4], sizes = [8, 4], strides = [1, 1]} : vector<8x8xf32> to vector<8x4xf32>
    %cst_35 = arith.constant 0.000000e+00 : f32
    %134 = vector.broadcast %cst_35 : f32 to vector<8x4xf32>
    %135 = arith.subf %134, %133 : vector<8x4xf32>
    %136 = vector.extract_strided_slice %132 {offsets = [0, 0], sizes = [8, 4], strides = [1, 1]} : vector<8x8xf32> to vector<8x4xf32>
    %137 = tpu.concatenate %135, %136 in 1 : vector<8x4xf32>, vector<8x4xf32> -> vector<8x8xf32>
    %138 = arith.mulf %132, %16 : vector<8x8xf32>
    %139 = arith.mulf %137, %17 : vector<8x8xf32>
    %140 = arith.addf %138, %139 : vector<8x8xf32>
    %141 = vector.extract_strided_slice %15 {offsets = [0, 88], sizes = [8, 8], strides = [1, 1]} : vector<16x96xf32> to vector<8x8xf32>
    %cst_36 = arith.constant dense<0.000000e+00> : vector<8x8xf32>
    %142 = tpu.matmul %131, %140, %cst_36 {dimension_numbers = #tpu.dot_dimension_numbers<[1], [1], [0], [0], [0, 0, 1, 0], [], []>} : vector<8x8xf32>, vector<8x8xf32>, vector<8x8xf32> -> vector<8x8xf32>
    %cst_37 = arith.constant 0.353553385 : f32
    %143 = vector.broadcast %cst_37 : f32 to vector<8x8xf32>
    %144 = arith.mulf %142, %143 : vector<8x8xf32>
    %c3 = arith.constant 3 : index
    %145 = memref.load %arg0[%c3] : memref<4xf32, #tpu.memory_space<smem>>
    %146 = vector.broadcast %145 : f32 to vector<8x8xf32>
    %147 = arith.addf %144, %146 : vector<8x8xf32>
    %cst_38 = arith.constant dense<0xFF800000> : vector<8xf32>
    %148 = vector.multi_reduction <maximumf>, %147, %cst_38 [1] : vector<8x8xf32> to vector<8xf32>
    %149 = vector.shape_cast %148 : vector<8xf32> to vector<8x1xf32>
    %150 = vector.broadcast %149 : vector<8x1xf32> to vector<8x8xf32>
    %151 = arith.subf %147, %150 : vector<8x8xf32>
    %152 = math.exp %151 : vector<8x8xf32>
    %cst_39 = arith.constant dense<0.000000e+00> : vector<8xf32>
    %153 = vector.multi_reduction <add>, %152, %cst_39 [1] : vector<8x8xf32> to vector<8xf32>
    %154 = vector.shape_cast %153 : vector<8xf32> to vector<8x1xf32>
    %155 = vector.broadcast %154 : vector<8x1xf32> to vector<8x8xf32>
    %156 = arith.divf %152, %155 : vector<8x8xf32>
    %cst_40 = arith.constant dense<0.000000e+00> : vector<8x8xf32>
    %157 = tpu.matmul %156, %141, %cst_40 {dimension_numbers = #tpu.dot_dimension_numbers<[1], [0], [0], [1], [0, 0, 1, 1], [], []>} : vector<8x8xf32>, vector<8x8xf32>, vector<8x8xf32> -> vector<8x8xf32>
    %158 = tpu.concatenate %52, %87, %122, %157 in 1 : vector<8x8xf32>, vector<8x8xf32>, vector<8x8xf32>, vector<8x8xf32> -> vector<8x32xf32>
    %159 = vector.extract_strided_slice %15 {offsets = [8, 0], sizes = [8, 8], strides = [1, 1]} : vector<16x96xf32> to vector<8x8xf32>
    %160 = vector.extract_strided_slice %159 {offsets = [0, 4], sizes = [8, 4], strides = [1, 1]} : vector<8x8xf32> to vector<8x4xf32>
    %cst_41 = arith.constant 0.000000e+00 : f32
    %161 = vector.broadcast %cst_41 : f32 to vector<8x4xf32>
    %162 = arith.subf %161, %160 : vector<8x4xf32>
    %163 = vector.extract_strided_slice %159 {offsets = [0, 0], sizes = [8, 4], strides = [1, 1]} : vector<8x8xf32> to vector<8x4xf32>
    %164 = tpu.concatenate %162, %163 in 1 : vector<8x4xf32>, vector<8x4xf32> -> vector<8x8xf32>
    %165 = arith.mulf %159, %16 : vector<8x8xf32>
    %166 = arith.mulf %164, %17 : vector<8x8xf32>
    %167 = arith.addf %165, %166 : vector<8x8xf32>
    %168 = vector.extract_strided_slice %15 {offsets = [8, 32], sizes = [8, 8], strides = [1, 1]} : vector<16x96xf32> to vector<8x8xf32>
    %169 = vector.extract_strided_slice %168 {offsets = [0, 4], sizes = [8, 4], strides = [1, 1]} : vector<8x8xf32> to vector<8x4xf32>
    %cst_42 = arith.constant 0.000000e+00 : f32
    %170 = vector.broadcast %cst_42 : f32 to vector<8x4xf32>
    %171 = arith.subf %170, %169 : vector<8x4xf32>
    %172 = vector.extract_strided_slice %168 {offsets = [0, 0], sizes = [8, 4], strides = [1, 1]} : vector<8x8xf32> to vector<8x4xf32>
    %173 = tpu.concatenate %171, %172 in 1 : vector<8x4xf32>, vector<8x4xf32> -> vector<8x8xf32>
    %174 = arith.mulf %168, %16 : vector<8x8xf32>
    %175 = arith.mulf %173, %17 : vector<8x8xf32>
    %176 = arith.addf %174, %175 : vector<8x8xf32>
    %177 = vector.extract_strided_slice %15 {offsets = [8, 64], sizes = [8, 8], strides = [1, 1]} : vector<16x96xf32> to vector<8x8xf32>
    %cst_43 = arith.constant dense<0.000000e+00> : vector<8x8xf32>
    %178 = tpu.matmul %167, %176, %cst_43 {dimension_numbers = #tpu.dot_dimension_numbers<[1], [1], [0], [0], [0, 0, 1, 0], [], []>} : vector<8x8xf32>, vector<8x8xf32>, vector<8x8xf32> -> vector<8x8xf32>
    %cst_44 = arith.constant 0.353553385 : f32
    %179 = vector.broadcast %cst_44 : f32 to vector<8x8xf32>
    %180 = arith.mulf %178, %179 : vector<8x8xf32>
    %c0_45 = arith.constant 0 : index
    %181 = memref.load %arg0[%c0_45] : memref<4xf32, #tpu.memory_space<smem>>
    %182 = vector.broadcast %181 : f32 to vector<8x8xf32>
    %183 = arith.addf %180, %182 : vector<8x8xf32>
    %cst_46 = arith.constant dense<0xFF800000> : vector<8xf32>
    %184 = vector.multi_reduction <maximumf>, %183, %cst_46 [1] : vector<8x8xf32> to vector<8xf32>
    %185 = vector.shape_cast %184 : vector<8xf32> to vector<8x1xf32>
    %186 = vector.broadcast %185 : vector<8x1xf32> to vector<8x8xf32>
    %187 = arith.subf %183, %186 : vector<8x8xf32>
    %188 = math.exp %187 : vector<8x8xf32>
    %cst_47 = arith.constant dense<0.000000e+00> : vector<8xf32>
    %189 = vector.multi_reduction <add>, %188, %cst_47 [1] : vector<8x8xf32> to vector<8xf32>
    %190 = vector.shape_cast %189 : vector<8xf32> to vector<8x1xf32>
    %191 = vector.broadcast %190 : vector<8x1xf32> to vector<8x8xf32>
    %192 = arith.divf %188, %191 : vector<8x8xf32>
    %cst_48 = arith.constant dense<0.000000e+00> : vector<8x8xf32>
    %193 = tpu.matmul %192, %177, %cst_48 {dimension_numbers = #tpu.dot_dimension_numbers<[1], [0], [0], [1], [0, 0, 1, 1], [], []>} : vector<8x8xf32>, vector<8x8xf32>, vector<8x8xf32> -> vector<8x8xf32>
    %194 = vector.extract_strided_slice %15 {offsets = [8, 8], sizes = [8, 8], strides = [1, 1]} : vector<16x96xf32> to vector<8x8xf32>
    %195 = vector.extract_strided_slice %194 {offsets = [0, 4], sizes = [8, 4], strides = [1, 1]} : vector<8x8xf32> to vector<8x4xf32>
    %cst_49 = arith.constant 0.000000e+00 : f32
    %196 = vector.broadcast %cst_49 : f32 to vector<8x4xf32>
    %197 = arith.subf %196, %195 : vector<8x4xf32>
    %198 = vector.extract_strided_slice %194 {offsets = [0, 0], sizes = [8, 4], strides = [1, 1]} : vector<8x8xf32> to vector<8x4xf32>
    %199 = tpu.concatenate %197, %198 in 1 : vector<8x4xf32>, vector<8x4xf32> -> vector<8x8xf32>
    %200 = arith.mulf %194, %16 : vector<8x8xf32>
    %201 = arith.mulf %199, %17 : vector<8x8xf32>
    %202 = arith.addf %200, %201 : vector<8x8xf32>
    %203 = vector.extract_strided_slice %15 {offsets = [8, 40], sizes = [8, 8], strides = [1, 1]} : vector<16x96xf32> to vector<8x8xf32>
    %204 = vector.extract_strided_slice %203 {offsets = [0, 4], sizes = [8, 4], strides = [1, 1]} : vector<8x8xf32> to vector<8x4xf32>
    %cst_50 = arith.constant 0.000000e+00 : f32
    %205 = vector.broadcast %cst_50 : f32 to vector<8x4xf32>
    %206 = arith.subf %205, %204 : vector<8x4xf32>
    %207 = vector.extract_strided_slice %203 {offsets = [0, 0], sizes = [8, 4], strides = [1, 1]} : vector<8x8xf32> to vector<8x4xf32>
    %208 = tpu.concatenate %206, %207 in 1 : vector<8x4xf32>, vector<8x4xf32> -> vector<8x8xf32>
    %209 = arith.mulf %203, %16 : vector<8x8xf32>
    %210 = arith.mulf %208, %17 : vector<8x8xf32>
    %211 = arith.addf %209, %210 : vector<8x8xf32>
    %212 = vector.extract_strided_slice %15 {offsets = [8, 72], sizes = [8, 8], strides = [1, 1]} : vector<16x96xf32> to vector<8x8xf32>
    %cst_51 = arith.constant dense<0.000000e+00> : vector<8x8xf32>
    %213 = tpu.matmul %202, %211, %cst_51 {dimension_numbers = #tpu.dot_dimension_numbers<[1], [1], [0], [0], [0, 0, 1, 0], [], []>} : vector<8x8xf32>, vector<8x8xf32>, vector<8x8xf32> -> vector<8x8xf32>
    %cst_52 = arith.constant 0.353553385 : f32
    %214 = vector.broadcast %cst_52 : f32 to vector<8x8xf32>
    %215 = arith.mulf %213, %214 : vector<8x8xf32>
    %c1_53 = arith.constant 1 : index
    %216 = memref.load %arg0[%c1_53] : memref<4xf32, #tpu.memory_space<smem>>
    %217 = vector.broadcast %216 : f32 to vector<8x8xf32>
    %218 = arith.addf %215, %217 : vector<8x8xf32>
    %cst_54 = arith.constant dense<0xFF800000> : vector<8xf32>
    %219 = vector.multi_reduction <maximumf>, %218, %cst_54 [1] : vector<8x8xf32> to vector<8xf32>
    %220 = vector.shape_cast %219 : vector<8xf32> to vector<8x1xf32>
    %221 = vector.broadcast %220 : vector<8x1xf32> to vector<8x8xf32>
    %222 = arith.subf %218, %221 : vector<8x8xf32>
    %223 = math.exp %222 : vector<8x8xf32>
    %cst_55 = arith.constant dense<0.000000e+00> : vector<8xf32>
    %224 = vector.multi_reduction <add>, %223, %cst_55 [1] : vector<8x8xf32> to vector<8xf32>
    %225 = vector.shape_cast %224 : vector<8xf32> to vector<8x1xf32>
    %226 = vector.broadcast %225 : vector<8x1xf32> to vector<8x8xf32>
    %227 = arith.divf %223, %226 : vector<8x8xf32>
    %cst_56 = arith.constant dense<0.000000e+00> : vector<8x8xf32>
    %228 = tpu.matmul %227, %212, %cst_56 {dimension_numbers = #tpu.dot_dimension_numbers<[1], [0], [0], [1], [0, 0, 1, 1], [], []>} : vector<8x8xf32>, vector<8x8xf32>, vector<8x8xf32> -> vector<8x8xf32>
    %229 = vector.extract_strided_slice %15 {offsets = [8, 16], sizes = [8, 8], strides = [1, 1]} : vector<16x96xf32> to vector<8x8xf32>
    %230 = vector.extract_strided_slice %229 {offsets = [0, 4], sizes = [8, 4], strides = [1, 1]} : vector<8x8xf32> to vector<8x4xf32>
    %cst_57 = arith.constant 0.000000e+00 : f32
    %231 = vector.broadcast %cst_57 : f32 to vector<8x4xf32>
    %232 = arith.subf %231, %230 : vector<8x4xf32>
    %233 = vector.extract_strided_slice %229 {offsets = [0, 0], sizes = [8, 4], strides = [1, 1]} : vector<8x8xf32> to vector<8x4xf32>
    %234 = tpu.concatenate %232, %233 in 1 : vector<8x4xf32>, vector<8x4xf32> -> vector<8x8xf32>
    %235 = arith.mulf %229, %16 : vector<8x8xf32>
    %236 = arith.mulf %234, %17 : vector<8x8xf32>
    %237 = arith.addf %235, %236 : vector<8x8xf32>
    %238 = vector.extract_strided_slice %15 {offsets = [8, 48], sizes = [8, 8], strides = [1, 1]} : vector<16x96xf32> to vector<8x8xf32>
    %239 = vector.extract_strided_slice %238 {offsets = [0, 4], sizes = [8, 4], strides = [1, 1]} : vector<8x8xf32> to vector<8x4xf32>
    %cst_58 = arith.constant 0.000000e+00 : f32
    %240 = vector.broadcast %cst_58 : f32 to vector<8x4xf32>
    %241 = arith.subf %240, %239 : vector<8x4xf32>
    %242 = vector.extract_strided_slice %238 {offsets = [0, 0], sizes = [8, 4], strides = [1, 1]} : vector<8x8xf32> to vector<8x4xf32>
    %243 = tpu.concatenate %241, %242 in 1 : vector<8x4xf32>, vector<8x4xf32> -> vector<8x8xf32>
    %244 = arith.mulf %238, %16 : vector<8x8xf32>
    %245 = arith.mulf %243, %17 : vector<8x8xf32>
    %246 = arith.addf %244, %245 : vector<8x8xf32>
    %247 = vector.extract_strided_slice %15 {offsets = [8, 80], sizes = [8, 8], strides = [1, 1]} : vector<16x96xf32> to vector<8x8xf32>
    %cst_59 = arith.constant dense<0.000000e+00> : vector<8x8xf32>
    %248 = tpu.matmul %237, %246, %cst_59 {dimension_numbers = #tpu.dot_dimension_numbers<[1], [1], [0], [0], [0, 0, 1, 0], [], []>} : vector<8x8xf32>, vector<8x8xf32>, vector<8x8xf32> -> vector<8x8xf32>
    %cst_60 = arith.constant 0.353553385 : f32
    %249 = vector.broadcast %cst_60 : f32 to vector<8x8xf32>
    %250 = arith.mulf %248, %249 : vector<8x8xf32>
    %c2_61 = arith.constant 2 : index
    %251 = memref.load %arg0[%c2_61] : memref<4xf32, #tpu.memory_space<smem>>
    %252 = vector.broadcast %251 : f32 to vector<8x8xf32>
    %253 = arith.addf %250, %252 : vector<8x8xf32>
    %cst_62 = arith.constant dense<0xFF800000> : vector<8xf32>
    %254 = vector.multi_reduction <maximumf>, %253, %cst_62 [1] : vector<8x8xf32> to vector<8xf32>
    %255 = vector.shape_cast %254 : vector<8xf32> to vector<8x1xf32>
    %256 = vector.broadcast %255 : vector<8x1xf32> to vector<8x8xf32>
    %257 = arith.subf %253, %256 : vector<8x8xf32>
    %258 = math.exp %257 : vector<8x8xf32>
    %cst_63 = arith.constant dense<0.000000e+00> : vector<8xf32>
    %259 = vector.multi_reduction <add>, %258, %cst_63 [1] : vector<8x8xf32> to vector<8xf32>
    %260 = vector.shape_cast %259 : vector<8xf32> to vector<8x1xf32>
    %261 = vector.broadcast %260 : vector<8x1xf32> to vector<8x8xf32>
    %262 = arith.divf %258, %261 : vector<8x8xf32>
    %cst_64 = arith.constant dense<0.000000e+00> : vector<8x8xf32>
    %263 = tpu.matmul %262, %247, %cst_64 {dimension_numbers = #tpu.dot_dimension_numbers<[1], [0], [0], [1], [0, 0, 1, 1], [], []>} : vector<8x8xf32>, vector<8x8xf32>, vector<8x8xf32> -> vector<8x8xf32>
    %264 = vector.extract_strided_slice %15 {offsets = [8, 24], sizes = [8, 8], strides = [1, 1]} : vector<16x96xf32> to vector<8x8xf32>
    %265 = vector.extract_strided_slice %264 {offsets = [0, 4], sizes = [8, 4], strides = [1, 1]} : vector<8x8xf32> to vector<8x4xf32>
    %cst_65 = arith.constant 0.000000e+00 : f32
    %266 = vector.broadcast %cst_65 : f32 to vector<8x4xf32>
    %267 = arith.subf %266, %265 : vector<8x4xf32>
    %268 = vector.extract_strided_slice %264 {offsets = [0, 0], sizes = [8, 4], strides = [1, 1]} : vector<8x8xf32> to vector<8x4xf32>
    %269 = tpu.concatenate %267, %268 in 1 : vector<8x4xf32>, vector<8x4xf32> -> vector<8x8xf32>
    %270 = arith.mulf %264, %16 : vector<8x8xf32>
    %271 = arith.mulf %269, %17 : vector<8x8xf32>
    %272 = arith.addf %270, %271 : vector<8x8xf32>
    %273 = vector.extract_strided_slice %15 {offsets = [8, 56], sizes = [8, 8], strides = [1, 1]} : vector<16x96xf32> to vector<8x8xf32>
    %274 = vector.extract_strided_slice %273 {offsets = [0, 4], sizes = [8, 4], strides = [1, 1]} : vector<8x8xf32> to vector<8x4xf32>
    %cst_66 = arith.constant 0.000000e+00 : f32
    %275 = vector.broadcast %cst_66 : f32 to vector<8x4xf32>
    %276 = arith.subf %275, %274 : vector<8x4xf32>
    %277 = vector.extract_strided_slice %273 {offsets = [0, 0], sizes = [8, 4], strides = [1, 1]} : vector<8x8xf32> to vector<8x4xf32>
    %278 = tpu.concatenate %276, %277 in 1 : vector<8x4xf32>, vector<8x4xf32> -> vector<8x8xf32>
    %279 = arith.mulf %273, %16 : vector<8x8xf32>
    %280 = arith.mulf %278, %17 : vector<8x8xf32>
    %281 = arith.addf %279, %280 : vector<8x8xf32>
    %282 = vector.extract_strided_slice %15 {offsets = [8, 88], sizes = [8, 8], strides = [1, 1]} : vector<16x96xf32> to vector<8x8xf32>
    %cst_67 = arith.constant dense<0.000000e+00> : vector<8x8xf32>
    %283 = tpu.matmul %272, %281, %cst_67 {dimension_numbers = #tpu.dot_dimension_numbers<[1], [1], [0], [0], [0, 0, 1, 0], [], []>} : vector<8x8xf32>, vector<8x8xf32>, vector<8x8xf32> -> vector<8x8xf32>
    %cst_68 = arith.constant 0.353553385 : f32
    %284 = vector.broadcast %cst_68 : f32 to vector<8x8xf32>
    %285 = arith.mulf %283, %284 : vector<8x8xf32>
    %c3_69 = arith.constant 3 : index
    %286 = memref.load %arg0[%c3_69] : memref<4xf32, #tpu.memory_space<smem>>
    %287 = vector.broadcast %286 : f32 to vector<8x8xf32>
    %288 = arith.addf %285, %287 : vector<8x8xf32>
    %cst_70 = arith.constant dense<0xFF800000> : vector<8xf32>
    %289 = vector.multi_reduction <maximumf>, %288, %cst_70 [1] : vector<8x8xf32> to vector<8xf32>
    %290 = vector.shape_cast %289 : vector<8xf32> to vector<8x1xf32>
    %291 = vector.broadcast %290 : vector<8x1xf32> to vector<8x8xf32>
    %292 = arith.subf %288, %291 : vector<8x8xf32>
    %293 = math.exp %292 : vector<8x8xf32>
    %cst_71 = arith.constant dense<0.000000e+00> : vector<8xf32>
    %294 = vector.multi_reduction <add>, %293, %cst_71 [1] : vector<8x8xf32> to vector<8xf32>
    %295 = vector.shape_cast %294 : vector<8xf32> to vector<8x1xf32>
    %296 = vector.broadcast %295 : vector<8x1xf32> to vector<8x8xf32>
    %297 = arith.divf %293, %296 : vector<8x8xf32>
    %cst_72 = arith.constant dense<0.000000e+00> : vector<8x8xf32>
    %298 = tpu.matmul %297, %282, %cst_72 {dimension_numbers = #tpu.dot_dimension_numbers<[1], [0], [0], [1], [0, 0, 1, 1], [], []>} : vector<8x8xf32>, vector<8x8xf32>, vector<8x8xf32> -> vector<8x8xf32>
    %299 = tpu.concatenate %193, %228, %263, %298 in 1 : vector<8x8xf32>, vector<8x8xf32>, vector<8x8xf32>, vector<8x8xf32> -> vector<8x32xf32>
    %300 = tpu.concatenate %158, %299 in 0 : vector<8x32xf32>, vector<8x32xf32> -> vector<16x32xf32>
    %c0_73 = arith.constant 0 : index
    %c0_74 = arith.constant 0 : index
    %301 = vector.load %arg5[%c0_73, %c0_74] : memref<32x32xf32, #tpu.memory_space<vmem>>, vector<32x32xf32>
    %cst_75 = arith.constant dense<0.000000e+00> : vector<16x32xf32>
    %302 = tpu.matmul %300, %301, %cst_75 {dimension_numbers = #tpu.dot_dimension_numbers<[1], [0], [0], [1], [0, 0, 1, 1], [], []>} : vector<16x32xf32>, vector<32x32xf32>, vector<16x32xf32> -> vector<16x32xf32>
    %303 = arith.addf %0, %302 : vector<16x32xf32>
    %c0_76 = arith.constant 0 : index
    %c0_77 = arith.constant 0 : index
    %304 = vector.load %arg10[%c0_76, %c0_77] : memref<16x32xf32, #tpu.memory_space<vmem>>, vector<16x32xf32>
    tpu.vector_store %arg10[%c0_76, %c0_77], %303 {strides = array<i32>} : memref<16x32xf32, #tpu.memory_space<vmem>>, vector<16x32xf32>,
    %305 = arith.mulf %303, %303 : vector<16x32xf32>
    %cst_78 = arith.constant dense<0.000000e+00> : vector<16xf32>
    %306 = vector.multi_reduction <add>, %305, %cst_78 [1] : vector<16x32xf32> to vector<16xf32>
    %307 = vector.shape_cast %306 : vector<16xf32> to vector<16x1xf32>
    %cst_79 = arith.constant 3.200000e+01 : f32
    %308 = vector.broadcast %cst_79 : f32 to vector<16x1xf32>
    %309 = arith.divf %307, %308 : vector<16x1xf32>
    %cst_80 = arith.constant 9.99999997E-7 : f32
    %310 = vector.broadcast %cst_80 : f32 to vector<16x1xf32>
    %311 = arith.addf %309, %310 : vector<16x1xf32>
    %312 = math.rsqrt %311 : vector<16x1xf32>
    %313 = vector.broadcast %312 : vector<16x1xf32> to vector<16x32xf32>
    %314 = arith.mulf %303, %313 : vector<16x32xf32>
    %c0_81 = arith.constant 0 : index
    %c0_82 = arith.constant 0 : index
    %315 = vector.load %arg3[%c0_81, %c0_82] : memref<1x32xf32, #tpu.memory_space<vmem>>, vector<1x32xf32>
    %316 = vector.broadcast %315 : vector<1x32xf32> to vector<16x32xf32>
    %317 = arith.mulf %314, %316 : vector<16x32xf32>
    %c0_83 = arith.constant 0 : index
    %c0_84 = arith.constant 0 : index
    %318 = vector.load %arg11[%c0_83, %c0_84] : memref<16x32xf32, #tpu.memory_space<vmem>>, vector<16x32xf32>
    tpu.vector_store %arg11[%c0_83, %c0_84], %317 {strides = array<i32>} : memref<16x32xf32, #tpu.memory_space<vmem>>, vector<16x32xf32>,
    %c0_85 = arith.constant 0 : index
    %c0_86 = arith.constant 0 : index
    %319 = vector.load %arg8[%c0_85, %c0_86] : memref<32x13xf32, #tpu.memory_space<vmem>>, vector<32x13xf32>
    %cst_87 = arith.constant dense<0.000000e+00> : vector<16x13xf32>
    %320 = tpu.matmul %317, %319, %cst_87 {dimension_numbers = #tpu.dot_dimension_numbers<[1], [0], [0], [1], [0, 0, 1, 1], [], []>} : vector<16x32xf32>, vector<32x13xf32>, vector<16x13xf32> -> vector<16x13xf32>
    %c0_88 = arith.constant 0 : index
    %c0_89 = arith.constant 0 : index
    %321 = vector.load %arg9[%c0_88, %c0_89] : memref<1x13xf32, #tpu.memory_space<vmem>>, vector<1x13xf32>
    %322 = vector.broadcast %321 : vector<1x13xf32> to vector<16x13xf32>
    %323 = arith.addf %320, %322 : vector<16x13xf32>
    %c0_90 = arith.constant 0 : index
    %c0_91 = arith.constant 0 : index
    %324 = vector.load %arg12[%c0_90, %c0_91] : memref<16x13xf32, #tpu.memory_space<vmem>>, vector<16x13xf32>
    tpu.vector_store %arg12[%c0_90, %c0_91], %323 {strides = array<i32>} : memref<16x13xf32, #tpu.memory_space<vmem>>, vector<16x13xf32>,
    return
  }
}

module attributes {stable_mosaic.version = 11 : i64} {
  func.func @_moe_kernel(%arg0: memref<16x32xf32, #tpu.memory_space<vmem>>, %arg1: memref<16x32xf32, #tpu.memory_space<vmem>>, %arg2: memref<16x12xf32, #tpu.memory_space<vmem>>, %arg3: memref<32x768xf32, #tpu.memory_space<vmem>>, %arg4: memref<1x768xf32, #tpu.memory_space<vmem>>, %arg5: memref<12x64x32xf32, #tpu.memory_space<vmem>>, %arg6: memref<12x1x32xf32, #tpu.memory_space<vmem>>, %arg7: memref<32x16xf32, #tpu.memory_space<vmem>>, %arg8: memref<1x16xf32, #tpu.memory_space<vmem>>, %arg9: memref<16x1xf32, #tpu.memory_space<vmem>>, %arg10: memref<1x1xf32, #tpu.memory_space<vmem>>, %arg11: memref<32x8xf32, #tpu.memory_space<vmem>>, %arg12: memref<1x8xf32, #tpu.memory_space<vmem>>, %arg13: memref<8x1xf32, #tpu.memory_space<vmem>>, %arg14: memref<1x1xf32, #tpu.memory_space<vmem>>, %arg15: memref<2x16x32xf32, #tpu.memory_space<vmem>>, %arg16: memref<2x1xf32, #tpu.memory_space<vmem>>, %arg17: memref<16x1xf32, #tpu.memory_space<vmem>>) attributes {dimension_semantics = [], scalar_prefetch = 0 : i64, scratch_operands = 0 : i64, tpu.core_type = #tpu.core_type<tc>} {
    %c0 = arith.constant 0 : index
    %c0_0 = arith.constant 0 : index
    %0 = vector.load %arg0[%c0, %c0_0] : memref<16x32xf32, #tpu.memory_space<vmem>>, vector<16x32xf32>
    %c0_1 = arith.constant 0 : index
    %c0_2 = arith.constant 0 : index
    %1 = vector.load %arg2[%c0_1, %c0_2] : memref<16x12xf32, #tpu.memory_space<vmem>>, vector<16x12xf32>
    %c0_3 = arith.constant 0 : index
    %c0_4 = arith.constant 0 : index
    %2 = vector.load %arg3[%c0_3, %c0_4] : memref<32x768xf32, #tpu.memory_space<vmem>>, vector<32x768xf32>
    %cst = arith.constant dense<0.000000e+00> : vector<16x768xf32>
    %3 = tpu.matmul %0, %2, %cst {dimension_numbers = #tpu.dot_dimension_numbers<[1], [0], [0], [1], [0, 0, 1, 1], [], []>} : vector<16x32xf32>, vector<32x768xf32>, vector<16x768xf32> -> vector<16x768xf32>
    %c0_5 = arith.constant 0 : index
    %c0_6 = arith.constant 0 : index
    %4 = vector.load %arg4[%c0_5, %c0_6] : memref<1x768xf32, #tpu.memory_space<vmem>>, vector<1x768xf32>
    %5 = vector.broadcast %4 : vector<1x768xf32> to vector<16x768xf32>
    %6 = arith.addf %3, %5 : vector<16x768xf32>
    %7 = arith.mulf %6, %6 : vector<16x768xf32>
    %8 = arith.mulf %6, %7 : vector<16x768xf32>
    %cst_7 = arith.constant 4.471500e-02 : f32
    %9 = vector.broadcast %cst_7 : f32 to vector<16x768xf32>
    %10 = arith.mulf %9, %8 : vector<16x768xf32>
    %11 = arith.addf %6, %10 : vector<16x768xf32>
    %cst_8 = arith.constant 0.797884583 : f32
    %12 = vector.broadcast %cst_8 : f32 to vector<16x768xf32>
    %13 = arith.mulf %12, %11 : vector<16x768xf32>
    %14 = math.tanh %13 : vector<16x768xf32>
    %cst_9 = arith.constant 1.000000e+00 : f32
    %15 = vector.broadcast %cst_9 : f32 to vector<16x768xf32>
    %16 = arith.addf %15, %14 : vector<16x768xf32>
    %cst_10 = arith.constant 5.000000e-01 : f32
    %17 = vector.broadcast %cst_10 : f32 to vector<16x768xf32>
    %18 = arith.mulf %17, %16 : vector<16x768xf32>
    %19 = arith.mulf %6, %18 : vector<16x768xf32>
    %cst_11 = arith.constant 0.000000e+00 : f32
    %20 = vector.broadcast %cst_11 : f32 to vector<16x32xf32>
    %21 = vector.extract_strided_slice %19 {offsets = [0, 0], sizes = [16, 64], strides = [1, 1]} : vector<16x768xf32> to vector<16x64xf32>
    %c0_12 = arith.constant 0 : index
    %c0_13 = arith.constant 0 : index
    %c0_14 = arith.constant 0 : index
    %22 = vector.load %arg5[%c0_12, %c0_13, %c0_14] : memref<12x64x32xf32, #tpu.memory_space<vmem>>, vector<1x64x32xf32>
    %23 = vector.shape_cast %22 : vector<1x64x32xf32> to vector<64x32xf32>
    %cst_15 = arith.constant dense<0.000000e+00> : vector<16x32xf32>
    %24 = tpu.matmul %21, %23, %cst_15 {dimension_numbers = #tpu.dot_dimension_numbers<[1], [0], [0], [1], [0, 0, 1, 1], [], []>} : vector<16x64xf32>, vector<64x32xf32>, vector<16x32xf32> -> vector<16x32xf32>
    %c0_16 = arith.constant 0 : index
    %c0_17 = arith.constant 0 : index
    %c0_18 = arith.constant 0 : index
    %25 = vector.load %arg6[%c0_16, %c0_17, %c0_18] : memref<12x1x32xf32, #tpu.memory_space<vmem>>, vector<1x1x32xf32>
    %26 = vector.shape_cast %25 : vector<1x1x32xf32> to vector<1x32xf32>
    %27 = vector.broadcast %26 : vector<1x32xf32> to vector<16x32xf32>
    %28 = arith.addf %24, %27 : vector<16x32xf32>
    %29 = vector.extract_strided_slice %1 {offsets = [0, 0], sizes = [16, 1], strides = [1, 1]} : vector<16x12xf32> to vector<16x1xf32>
    %30 = vector.broadcast %29 : vector<16x1xf32> to vector<16x32xf32>
    %31 = arith.mulf %30, %28 : vector<16x32xf32>
    %32 = arith.addf %20, %31 : vector<16x32xf32>
    %33 = vector.extract_strided_slice %19 {offsets = [0, 64], sizes = [16, 64], strides = [1, 1]} : vector<16x768xf32> to vector<16x64xf32>
    %c1 = arith.constant 1 : index
    %c0_19 = arith.constant 0 : index
    %c0_20 = arith.constant 0 : index
    %34 = vector.load %arg5[%c1, %c0_19, %c0_20] : memref<12x64x32xf32, #tpu.memory_space<vmem>>, vector<1x64x32xf32>
    %35 = vector.shape_cast %34 : vector<1x64x32xf32> to vector<64x32xf32>
    %cst_21 = arith.constant dense<0.000000e+00> : vector<16x32xf32>
    %36 = tpu.matmul %33, %35, %cst_21 {dimension_numbers = #tpu.dot_dimension_numbers<[1], [0], [0], [1], [0, 0, 1, 1], [], []>} : vector<16x64xf32>, vector<64x32xf32>, vector<16x32xf32> -> vector<16x32xf32>
    %c1_22 = arith.constant 1 : index
    %c0_23 = arith.constant 0 : index
    %c0_24 = arith.constant 0 : index
    %37 = vector.load %arg6[%c1_22, %c0_23, %c0_24] : memref<12x1x32xf32, #tpu.memory_space<vmem>>, vector<1x1x32xf32>
    %38 = vector.shape_cast %37 : vector<1x1x32xf32> to vector<1x32xf32>
    %39 = vector.broadcast %38 : vector<1x32xf32> to vector<16x32xf32>
    %40 = arith.addf %36, %39 : vector<16x32xf32>
    %41 = vector.extract_strided_slice %1 {offsets = [0, 1], sizes = [16, 1], strides = [1, 1]} : vector<16x12xf32> to vector<16x1xf32>
    %42 = vector.broadcast %41 : vector<16x1xf32> to vector<16x32xf32>
    %43 = arith.mulf %42, %40 : vector<16x32xf32>
    %44 = arith.addf %32, %43 : vector<16x32xf32>
    %45 = vector.extract_strided_slice %19 {offsets = [0, 128], sizes = [16, 64], strides = [1, 1]} : vector<16x768xf32> to vector<16x64xf32>
    %c2 = arith.constant 2 : index
    %c0_25 = arith.constant 0 : index
    %c0_26 = arith.constant 0 : index
    %46 = vector.load %arg5[%c2, %c0_25, %c0_26] : memref<12x64x32xf32, #tpu.memory_space<vmem>>, vector<1x64x32xf32>
    %47 = vector.shape_cast %46 : vector<1x64x32xf32> to vector<64x32xf32>
    %cst_27 = arith.constant dense<0.000000e+00> : vector<16x32xf32>
    %48 = tpu.matmul %45, %47, %cst_27 {dimension_numbers = #tpu.dot_dimension_numbers<[1], [0], [0], [1], [0, 0, 1, 1], [], []>} : vector<16x64xf32>, vector<64x32xf32>, vector<16x32xf32> -> vector<16x32xf32>
    %c2_28 = arith.constant 2 : index
    %c0_29 = arith.constant 0 : index
    %c0_30 = arith.constant 0 : index
    %49 = vector.load %arg6[%c2_28, %c0_29, %c0_30] : memref<12x1x32xf32, #tpu.memory_space<vmem>>, vector<1x1x32xf32>
    %50 = vector.shape_cast %49 : vector<1x1x32xf32> to vector<1x32xf32>
    %51 = vector.broadcast %50 : vector<1x32xf32> to vector<16x32xf32>
    %52 = arith.addf %48, %51 : vector<16x32xf32>
    %53 = vector.extract_strided_slice %1 {offsets = [0, 2], sizes = [16, 1], strides = [1, 1]} : vector<16x12xf32> to vector<16x1xf32>
    %54 = vector.broadcast %53 : vector<16x1xf32> to vector<16x32xf32>
    %55 = arith.mulf %54, %52 : vector<16x32xf32>
    %56 = arith.addf %44, %55 : vector<16x32xf32>
    %57 = vector.extract_strided_slice %19 {offsets = [0, 192], sizes = [16, 64], strides = [1, 1]} : vector<16x768xf32> to vector<16x64xf32>
    %c3 = arith.constant 3 : index
    %c0_31 = arith.constant 0 : index
    %c0_32 = arith.constant 0 : index
    %58 = vector.load %arg5[%c3, %c0_31, %c0_32] : memref<12x64x32xf32, #tpu.memory_space<vmem>>, vector<1x64x32xf32>
    %59 = vector.shape_cast %58 : vector<1x64x32xf32> to vector<64x32xf32>
    %cst_33 = arith.constant dense<0.000000e+00> : vector<16x32xf32>
    %60 = tpu.matmul %57, %59, %cst_33 {dimension_numbers = #tpu.dot_dimension_numbers<[1], [0], [0], [1], [0, 0, 1, 1], [], []>} : vector<16x64xf32>, vector<64x32xf32>, vector<16x32xf32> -> vector<16x32xf32>
    %c3_34 = arith.constant 3 : index
    %c0_35 = arith.constant 0 : index
    %c0_36 = arith.constant 0 : index
    %61 = vector.load %arg6[%c3_34, %c0_35, %c0_36] : memref<12x1x32xf32, #tpu.memory_space<vmem>>, vector<1x1x32xf32>
    %62 = vector.shape_cast %61 : vector<1x1x32xf32> to vector<1x32xf32>
    %63 = vector.broadcast %62 : vector<1x32xf32> to vector<16x32xf32>
    %64 = arith.addf %60, %63 : vector<16x32xf32>
    %65 = vector.extract_strided_slice %1 {offsets = [0, 3], sizes = [16, 1], strides = [1, 1]} : vector<16x12xf32> to vector<16x1xf32>
    %66 = vector.broadcast %65 : vector<16x1xf32> to vector<16x32xf32>
    %67 = arith.mulf %66, %64 : vector<16x32xf32>
    %68 = arith.addf %56, %67 : vector<16x32xf32>
    %69 = vector.extract_strided_slice %19 {offsets = [0, 256], sizes = [16, 64], strides = [1, 1]} : vector<16x768xf32> to vector<16x64xf32>
    %c4 = arith.constant 4 : index
    %c0_37 = arith.constant 0 : index
    %c0_38 = arith.constant 0 : index
    %70 = vector.load %arg5[%c4, %c0_37, %c0_38] : memref<12x64x32xf32, #tpu.memory_space<vmem>>, vector<1x64x32xf32>
    %71 = vector.shape_cast %70 : vector<1x64x32xf32> to vector<64x32xf32>
    %cst_39 = arith.constant dense<0.000000e+00> : vector<16x32xf32>
    %72 = tpu.matmul %69, %71, %cst_39 {dimension_numbers = #tpu.dot_dimension_numbers<[1], [0], [0], [1], [0, 0, 1, 1], [], []>} : vector<16x64xf32>, vector<64x32xf32>, vector<16x32xf32> -> vector<16x32xf32>
    %c4_40 = arith.constant 4 : index
    %c0_41 = arith.constant 0 : index
    %c0_42 = arith.constant 0 : index
    %73 = vector.load %arg6[%c4_40, %c0_41, %c0_42] : memref<12x1x32xf32, #tpu.memory_space<vmem>>, vector<1x1x32xf32>
    %74 = vector.shape_cast %73 : vector<1x1x32xf32> to vector<1x32xf32>
    %75 = vector.broadcast %74 : vector<1x32xf32> to vector<16x32xf32>
    %76 = arith.addf %72, %75 : vector<16x32xf32>
    %77 = vector.extract_strided_slice %1 {offsets = [0, 4], sizes = [16, 1], strides = [1, 1]} : vector<16x12xf32> to vector<16x1xf32>
    %78 = vector.broadcast %77 : vector<16x1xf32> to vector<16x32xf32>
    %79 = arith.mulf %78, %76 : vector<16x32xf32>
    %80 = arith.addf %68, %79 : vector<16x32xf32>
    %81 = vector.extract_strided_slice %19 {offsets = [0, 320], sizes = [16, 64], strides = [1, 1]} : vector<16x768xf32> to vector<16x64xf32>
    %c5 = arith.constant 5 : index
    %c0_43 = arith.constant 0 : index
    %c0_44 = arith.constant 0 : index
    %82 = vector.load %arg5[%c5, %c0_43, %c0_44] : memref<12x64x32xf32, #tpu.memory_space<vmem>>, vector<1x64x32xf32>
    %83 = vector.shape_cast %82 : vector<1x64x32xf32> to vector<64x32xf32>
    %cst_45 = arith.constant dense<0.000000e+00> : vector<16x32xf32>
    %84 = tpu.matmul %81, %83, %cst_45 {dimension_numbers = #tpu.dot_dimension_numbers<[1], [0], [0], [1], [0, 0, 1, 1], [], []>} : vector<16x64xf32>, vector<64x32xf32>, vector<16x32xf32> -> vector<16x32xf32>
    %c5_46 = arith.constant 5 : index
    %c0_47 = arith.constant 0 : index
    %c0_48 = arith.constant 0 : index
    %85 = vector.load %arg6[%c5_46, %c0_47, %c0_48] : memref<12x1x32xf32, #tpu.memory_space<vmem>>, vector<1x1x32xf32>
    %86 = vector.shape_cast %85 : vector<1x1x32xf32> to vector<1x32xf32>
    %87 = vector.broadcast %86 : vector<1x32xf32> to vector<16x32xf32>
    %88 = arith.addf %84, %87 : vector<16x32xf32>
    %89 = vector.extract_strided_slice %1 {offsets = [0, 5], sizes = [16, 1], strides = [1, 1]} : vector<16x12xf32> to vector<16x1xf32>
    %90 = vector.broadcast %89 : vector<16x1xf32> to vector<16x32xf32>
    %91 = arith.mulf %90, %88 : vector<16x32xf32>
    %92 = arith.addf %80, %91 : vector<16x32xf32>
    %93 = vector.extract_strided_slice %19 {offsets = [0, 384], sizes = [16, 64], strides = [1, 1]} : vector<16x768xf32> to vector<16x64xf32>
    %c6 = arith.constant 6 : index
    %c0_49 = arith.constant 0 : index
    %c0_50 = arith.constant 0 : index
    %94 = vector.load %arg5[%c6, %c0_49, %c0_50] : memref<12x64x32xf32, #tpu.memory_space<vmem>>, vector<1x64x32xf32>
    %95 = vector.shape_cast %94 : vector<1x64x32xf32> to vector<64x32xf32>
    %cst_51 = arith.constant dense<0.000000e+00> : vector<16x32xf32>
    %96 = tpu.matmul %93, %95, %cst_51 {dimension_numbers = #tpu.dot_dimension_numbers<[1], [0], [0], [1], [0, 0, 1, 1], [], []>} : vector<16x64xf32>, vector<64x32xf32>, vector<16x32xf32> -> vector<16x32xf32>
    %c6_52 = arith.constant 6 : index
    %c0_53 = arith.constant 0 : index
    %c0_54 = arith.constant 0 : index
    %97 = vector.load %arg6[%c6_52, %c0_53, %c0_54] : memref<12x1x32xf32, #tpu.memory_space<vmem>>, vector<1x1x32xf32>
    %98 = vector.shape_cast %97 : vector<1x1x32xf32> to vector<1x32xf32>
    %99 = vector.broadcast %98 : vector<1x32xf32> to vector<16x32xf32>
    %100 = arith.addf %96, %99 : vector<16x32xf32>
    %101 = vector.extract_strided_slice %1 {offsets = [0, 6], sizes = [16, 1], strides = [1, 1]} : vector<16x12xf32> to vector<16x1xf32>
    %102 = vector.broadcast %101 : vector<16x1xf32> to vector<16x32xf32>
    %103 = arith.mulf %102, %100 : vector<16x32xf32>
    %104 = arith.addf %92, %103 : vector<16x32xf32>
    %105 = vector.extract_strided_slice %19 {offsets = [0, 448], sizes = [16, 64], strides = [1, 1]} : vector<16x768xf32> to vector<16x64xf32>
    %c7 = arith.constant 7 : index
    %c0_55 = arith.constant 0 : index
    %c0_56 = arith.constant 0 : index
    %106 = vector.load %arg5[%c7, %c0_55, %c0_56] : memref<12x64x32xf32, #tpu.memory_space<vmem>>, vector<1x64x32xf32>
    %107 = vector.shape_cast %106 : vector<1x64x32xf32> to vector<64x32xf32>
    %cst_57 = arith.constant dense<0.000000e+00> : vector<16x32xf32>
    %108 = tpu.matmul %105, %107, %cst_57 {dimension_numbers = #tpu.dot_dimension_numbers<[1], [0], [0], [1], [0, 0, 1, 1], [], []>} : vector<16x64xf32>, vector<64x32xf32>, vector<16x32xf32> -> vector<16x32xf32>
    %c7_58 = arith.constant 7 : index
    %c0_59 = arith.constant 0 : index
    %c0_60 = arith.constant 0 : index
    %109 = vector.load %arg6[%c7_58, %c0_59, %c0_60] : memref<12x1x32xf32, #tpu.memory_space<vmem>>, vector<1x1x32xf32>
    %110 = vector.shape_cast %109 : vector<1x1x32xf32> to vector<1x32xf32>
    %111 = vector.broadcast %110 : vector<1x32xf32> to vector<16x32xf32>
    %112 = arith.addf %108, %111 : vector<16x32xf32>
    %113 = vector.extract_strided_slice %1 {offsets = [0, 7], sizes = [16, 1], strides = [1, 1]} : vector<16x12xf32> to vector<16x1xf32>
    %114 = vector.broadcast %113 : vector<16x1xf32> to vector<16x32xf32>
    %115 = arith.mulf %114, %112 : vector<16x32xf32>
    %116 = arith.addf %104, %115 : vector<16x32xf32>
    %117 = vector.extract_strided_slice %19 {offsets = [0, 512], sizes = [16, 64], strides = [1, 1]} : vector<16x768xf32> to vector<16x64xf32>
    %c8 = arith.constant 8 : index
    %c0_61 = arith.constant 0 : index
    %c0_62 = arith.constant 0 : index
    %118 = vector.load %arg5[%c8, %c0_61, %c0_62] : memref<12x64x32xf32, #tpu.memory_space<vmem>>, vector<1x64x32xf32>
    %119 = vector.shape_cast %118 : vector<1x64x32xf32> to vector<64x32xf32>
    %cst_63 = arith.constant dense<0.000000e+00> : vector<16x32xf32>
    %120 = tpu.matmul %117, %119, %cst_63 {dimension_numbers = #tpu.dot_dimension_numbers<[1], [0], [0], [1], [0, 0, 1, 1], [], []>} : vector<16x64xf32>, vector<64x32xf32>, vector<16x32xf32> -> vector<16x32xf32>
    %c8_64 = arith.constant 8 : index
    %c0_65 = arith.constant 0 : index
    %c0_66 = arith.constant 0 : index
    %121 = vector.load %arg6[%c8_64, %c0_65, %c0_66] : memref<12x1x32xf32, #tpu.memory_space<vmem>>, vector<1x1x32xf32>
    %122 = vector.shape_cast %121 : vector<1x1x32xf32> to vector<1x32xf32>
    %123 = vector.broadcast %122 : vector<1x32xf32> to vector<16x32xf32>
    %124 = arith.addf %120, %123 : vector<16x32xf32>
    %125 = vector.extract_strided_slice %1 {offsets = [0, 8], sizes = [16, 1], strides = [1, 1]} : vector<16x12xf32> to vector<16x1xf32>
    %126 = vector.broadcast %125 : vector<16x1xf32> to vector<16x32xf32>
    %127 = arith.mulf %126, %124 : vector<16x32xf32>
    %128 = arith.addf %116, %127 : vector<16x32xf32>
    %129 = vector.extract_strided_slice %19 {offsets = [0, 576], sizes = [16, 64], strides = [1, 1]} : vector<16x768xf32> to vector<16x64xf32>
    %c9 = arith.constant 9 : index
    %c0_67 = arith.constant 0 : index
    %c0_68 = arith.constant 0 : index
    %130 = vector.load %arg5[%c9, %c0_67, %c0_68] : memref<12x64x32xf32, #tpu.memory_space<vmem>>, vector<1x64x32xf32>
    %131 = vector.shape_cast %130 : vector<1x64x32xf32> to vector<64x32xf32>
    %cst_69 = arith.constant dense<0.000000e+00> : vector<16x32xf32>
    %132 = tpu.matmul %129, %131, %cst_69 {dimension_numbers = #tpu.dot_dimension_numbers<[1], [0], [0], [1], [0, 0, 1, 1], [], []>} : vector<16x64xf32>, vector<64x32xf32>, vector<16x32xf32> -> vector<16x32xf32>
    %c9_70 = arith.constant 9 : index
    %c0_71 = arith.constant 0 : index
    %c0_72 = arith.constant 0 : index
    %133 = vector.load %arg6[%c9_70, %c0_71, %c0_72] : memref<12x1x32xf32, #tpu.memory_space<vmem>>, vector<1x1x32xf32>
    %134 = vector.shape_cast %133 : vector<1x1x32xf32> to vector<1x32xf32>
    %135 = vector.broadcast %134 : vector<1x32xf32> to vector<16x32xf32>
    %136 = arith.addf %132, %135 : vector<16x32xf32>
    %137 = vector.extract_strided_slice %1 {offsets = [0, 9], sizes = [16, 1], strides = [1, 1]} : vector<16x12xf32> to vector<16x1xf32>
    %138 = vector.broadcast %137 : vector<16x1xf32> to vector<16x32xf32>
    %139 = arith.mulf %138, %136 : vector<16x32xf32>
    %140 = arith.addf %128, %139 : vector<16x32xf32>
    %141 = vector.extract_strided_slice %19 {offsets = [0, 640], sizes = [16, 64], strides = [1, 1]} : vector<16x768xf32> to vector<16x64xf32>
    %c10 = arith.constant 10 : index
    %c0_73 = arith.constant 0 : index
    %c0_74 = arith.constant 0 : index
    %142 = vector.load %arg5[%c10, %c0_73, %c0_74] : memref<12x64x32xf32, #tpu.memory_space<vmem>>, vector<1x64x32xf32>
    %143 = vector.shape_cast %142 : vector<1x64x32xf32> to vector<64x32xf32>
    %cst_75 = arith.constant dense<0.000000e+00> : vector<16x32xf32>
    %144 = tpu.matmul %141, %143, %cst_75 {dimension_numbers = #tpu.dot_dimension_numbers<[1], [0], [0], [1], [0, 0, 1, 1], [], []>} : vector<16x64xf32>, vector<64x32xf32>, vector<16x32xf32> -> vector<16x32xf32>
    %c10_76 = arith.constant 10 : index
    %c0_77 = arith.constant 0 : index
    %c0_78 = arith.constant 0 : index
    %145 = vector.load %arg6[%c10_76, %c0_77, %c0_78] : memref<12x1x32xf32, #tpu.memory_space<vmem>>, vector<1x1x32xf32>
    %146 = vector.shape_cast %145 : vector<1x1x32xf32> to vector<1x32xf32>
    %147 = vector.broadcast %146 : vector<1x32xf32> to vector<16x32xf32>
    %148 = arith.addf %144, %147 : vector<16x32xf32>
    %149 = vector.extract_strided_slice %1 {offsets = [0, 10], sizes = [16, 1], strides = [1, 1]} : vector<16x12xf32> to vector<16x1xf32>
    %150 = vector.broadcast %149 : vector<16x1xf32> to vector<16x32xf32>
    %151 = arith.mulf %150, %148 : vector<16x32xf32>
    %152 = arith.addf %140, %151 : vector<16x32xf32>
    %153 = vector.extract_strided_slice %19 {offsets = [0, 704], sizes = [16, 64], strides = [1, 1]} : vector<16x768xf32> to vector<16x64xf32>
    %c11 = arith.constant 11 : index
    %c0_79 = arith.constant 0 : index
    %c0_80 = arith.constant 0 : index
    %154 = vector.load %arg5[%c11, %c0_79, %c0_80] : memref<12x64x32xf32, #tpu.memory_space<vmem>>, vector<1x64x32xf32>
    %155 = vector.shape_cast %154 : vector<1x64x32xf32> to vector<64x32xf32>
    %cst_81 = arith.constant dense<0.000000e+00> : vector<16x32xf32>
    %156 = tpu.matmul %153, %155, %cst_81 {dimension_numbers = #tpu.dot_dimension_numbers<[1], [0], [0], [1], [0, 0, 1, 1], [], []>} : vector<16x64xf32>, vector<64x32xf32>, vector<16x32xf32> -> vector<16x32xf32>
    %c11_82 = arith.constant 11 : index
    %c0_83 = arith.constant 0 : index
    %c0_84 = arith.constant 0 : index
    %157 = vector.load %arg6[%c11_82, %c0_83, %c0_84] : memref<12x1x32xf32, #tpu.memory_space<vmem>>, vector<1x1x32xf32>
    %158 = vector.shape_cast %157 : vector<1x1x32xf32> to vector<1x32xf32>
    %159 = vector.broadcast %158 : vector<1x32xf32> to vector<16x32xf32>
    %160 = arith.addf %156, %159 : vector<16x32xf32>
    %161 = vector.extract_strided_slice %1 {offsets = [0, 11], sizes = [16, 1], strides = [1, 1]} : vector<16x12xf32> to vector<16x1xf32>
    %162 = vector.broadcast %161 : vector<16x1xf32> to vector<16x32xf32>
    %163 = arith.mulf %162, %160 : vector<16x32xf32>
    %164 = arith.addf %152, %163 : vector<16x32xf32>
    %165 = vector.extract_strided_slice %164 {offsets = [0, 0], sizes = [8, 32], strides = [1, 1]} : vector<16x32xf32> to vector<8x32xf32>
    %cst_85 = arith.constant dense<0.000000e+00> : vector<32xf32>
    %166 = vector.multi_reduction <add>, %165, %cst_85 [0] : vector<8x32xf32> to vector<32xf32>
    %167 = vector.shape_cast %166 : vector<32xf32> to vector<1x32xf32>
    %cst_86 = arith.constant 8.000000e+00 : f32
    %168 = vector.broadcast %cst_86 : f32 to vector<1x32xf32>
    %169 = arith.divf %167, %168 : vector<1x32xf32>
    %170 = vector.extract_strided_slice %164 {offsets = [8, 0], sizes = [8, 32], strides = [1, 1]} : vector<16x32xf32> to vector<8x32xf32>
    %cst_87 = arith.constant dense<0.000000e+00> : vector<32xf32>
    %171 = vector.multi_reduction <add>, %170, %cst_87 [0] : vector<8x32xf32> to vector<32xf32>
    %172 = vector.shape_cast %171 : vector<32xf32> to vector<1x32xf32>
    %cst_88 = arith.constant 8.000000e+00 : f32
    %173 = vector.broadcast %cst_88 : f32 to vector<1x32xf32>
    %174 = arith.divf %172, %173 : vector<1x32xf32>
    %175 = tpu.concatenate %169, %174 in 0 : vector<1x32xf32>, vector<1x32xf32> -> vector<2x32xf32>
    %c0_89 = arith.constant 0 : index
    %c0_90 = arith.constant 0 : index
    %176 = vector.load %arg7[%c0_89, %c0_90] : memref<32x16xf32, #tpu.memory_space<vmem>>, vector<32x16xf32>
    %cst_91 = arith.constant dense<0.000000e+00> : vector<2x16xf32>
    %177 = tpu.matmul %175, %176, %cst_91 {dimension_numbers = #tpu.dot_dimension_numbers<[1], [0], [0], [1], [0, 0, 1, 1], [], []>} : vector<2x32xf32>, vector<32x16xf32>, vector<2x16xf32> -> vector<2x16xf32>
    %c0_92 = arith.constant 0 : index
    %c0_93 = arith.constant 0 : index
    %178 = vector.load %arg8[%c0_92, %c0_93] : memref<1x16xf32, #tpu.memory_space<vmem>>, vector<1x16xf32>
    %179 = vector.broadcast %178 : vector<1x16xf32> to vector<2x16xf32>
    %180 = arith.addf %177, %179 : vector<2x16xf32>
    %cst_94 = arith.constant 0.000000e+00 : f32
    %181 = vector.broadcast %cst_94 : f32 to vector<2x16xf32>
    %182 = arith.maximumf %180, %181 : vector<2x16xf32>
    %c0_95 = arith.constant 0 : index
    %c0_96 = arith.constant 0 : index
    %183 = vector.load %arg9[%c0_95, %c0_96] : memref<16x1xf32, #tpu.memory_space<vmem>>, vector<16x1xf32>
    %cst_97 = arith.constant dense<0.000000e+00> : vector<2x1xf32>
    %184 = tpu.matmul %182, %183, %cst_97 {dimension_numbers = #tpu.dot_dimension_numbers<[1], [0], [0], [1], [0, 0, 1, 1], [], []>} : vector<2x16xf32>, vector<16x1xf32>, vector<2x1xf32> -> vector<2x1xf32>
    %c0_98 = arith.constant 0 : index
    %c0_99 = arith.constant 0 : index
    %185 = vector.load %arg10[%c0_98, %c0_99] : memref<1x1xf32, #tpu.memory_space<vmem>>, vector<1x1xf32>
    %186 = vector.broadcast %185 : vector<1x1xf32> to vector<2x1xf32>
    %187 = arith.addf %184, %186 : vector<2x1xf32>
    %188 = arith.negf %187 : vector<2x1xf32>
    %189 = math.exp %188 : vector<2x1xf32>
    %cst_100 = arith.constant 1.000000e+00 : f32
    %190 = vector.broadcast %cst_100 : f32 to vector<2x1xf32>
    %191 = arith.addf %190, %189 : vector<2x1xf32>
    %192 = arith.divf %190, %191 : vector<2x1xf32>
    %c0_101 = arith.constant 0 : index
    %c0_102 = arith.constant 0 : index
    %193 = vector.load %arg16[%c0_101, %c0_102] : memref<2x1xf32, #tpu.memory_space<vmem>>, vector<2x1xf32>
    tpu.vector_store %arg16[%c0_101, %c0_102], %192 {strides = array<i32>} : memref<2x1xf32, #tpu.memory_space<vmem>>, vector<2x1xf32>,
    %cst_103 = arith.constant 0.699999988 : f32
    %194 = vector.broadcast %cst_103 : f32 to vector<2x1xf32>
    %195 = arith.cmpf ogt, %192, %194 : vector<2x1xf32>
    %196 = arith.extui %195 : vector<2x1xi1> to vector<2x1xi32>
    %197 = arith.sitofp %196 : vector<2x1xi32> to vector<2x1xf32>
    %cst_104 = arith.constant 8.000000e-01 : f32
    %198 = vector.broadcast %cst_104 : f32 to vector<2x1xf32>
    %199 = arith.mulf %198, %197 : vector<2x1xf32>
    %cst_105 = arith.constant 1.000000e+00 : f32
    %200 = vector.broadcast %cst_105 : f32 to vector<2x1xf32>
    %201 = arith.subf %200, %199 : vector<2x1xf32>
    %c0_106 = arith.constant 0 : index
    %c0_107 = arith.constant 0 : index
    %202 = vector.load %arg1[%c0_106, %c0_107] : memref<16x32xf32, #tpu.memory_space<vmem>>, vector<16x32xf32>
    %203 = vector.extract_strided_slice %201 {offsets = [0, 0], sizes = [1, 1], strides = [1, 1]} : vector<2x1xf32> to vector<1x1xf32>
    %204 = vector.broadcast %203 : vector<1x1xf32> to vector<16x32xf32>
    %205 = arith.mulf %164, %204 : vector<16x32xf32>
    %206 = arith.addf %202, %205 : vector<16x32xf32>
    %c0_108 = arith.constant 0 : index
    %c0_109 = arith.constant 0 : index
    %c0_110 = arith.constant 0 : index
    %207 = vector.load %arg15[%c0_108, %c0_109, %c0_110] : memref<2x16x32xf32, #tpu.memory_space<vmem>>, vector<1x16x32xf32>
    %208 = vector.shape_cast %207 : vector<1x16x32xf32> to vector<16x32xf32>
    %209 = vector.shape_cast %206 : vector<16x32xf32> to vector<1x16x32xf32>
    tpu.vector_store %arg15[%c0_108, %c0_109, %c0_110], %209 {strides = array<i32>} : memref<2x16x32xf32, #tpu.memory_space<vmem>>, vector<1x16x32xf32>,
    %210 = vector.extract_strided_slice %201 {offsets = [1, 0], sizes = [1, 1], strides = [1, 1]} : vector<2x1xf32> to vector<1x1xf32>
    %211 = vector.broadcast %210 : vector<1x1xf32> to vector<16x32xf32>
    %212 = arith.mulf %164, %211 : vector<16x32xf32>
    %213 = arith.addf %202, %212 : vector<16x32xf32>
    %c1_111 = arith.constant 1 : index
    %c0_112 = arith.constant 0 : index
    %c0_113 = arith.constant 0 : index
    %214 = vector.load %arg15[%c1_111, %c0_112, %c0_113] : memref<2x16x32xf32, #tpu.memory_space<vmem>>, vector<1x16x32xf32>
    %215 = vector.shape_cast %214 : vector<1x16x32xf32> to vector<16x32xf32>
    %216 = vector.shape_cast %213 : vector<16x32xf32> to vector<1x16x32xf32>
    tpu.vector_store %arg15[%c1_111, %c0_112, %c0_113], %216 {strides = array<i32>} : memref<2x16x32xf32, #tpu.memory_space<vmem>>, vector<1x16x32xf32>,
    %cst_114 = arith.constant 0.000000e+00 : f32
    %217 = vector.broadcast %cst_114 : f32 to vector<8x32xf32>
    %218 = vector.extract_strided_slice %164 {offsets = [0, 0], sizes = [8, 32], strides = [1, 1]} : vector<16x32xf32> to vector<8x32xf32>
    %219 = arith.addf %217, %218 : vector<8x32xf32>
    %220 = vector.extract_strided_slice %164 {offsets = [8, 0], sizes = [8, 32], strides = [1, 1]} : vector<16x32xf32> to vector<8x32xf32>
    %221 = arith.addf %219, %220 : vector<8x32xf32>
    %cst_115 = arith.constant 2.000000e+00 : f32
    %222 = vector.broadcast %cst_115 : f32 to vector<8x32xf32>
    %223 = arith.divf %221, %222 : vector<8x32xf32>
    %224 = vector.extract_strided_slice %201 {offsets = [0, 0], sizes = [1, 1], strides = [1, 1]} : vector<2x1xf32> to vector<1x1xf32>
    %225 = vector.broadcast %224 : vector<1x1xf32> to vector<8x32xf32>
    %226 = arith.mulf %223, %225 : vector<8x32xf32>
    %227 = vector.extract_strided_slice %201 {offsets = [1, 0], sizes = [1, 1], strides = [1, 1]} : vector<2x1xf32> to vector<1x1xf32>
    %228 = vector.broadcast %227 : vector<1x1xf32> to vector<8x32xf32>
    %229 = arith.mulf %223, %228 : vector<8x32xf32>
    %230 = tpu.concatenate %226, %229 in 0 : vector<8x32xf32>, vector<8x32xf32> -> vector<16x32xf32>
    %c0_116 = arith.constant 0 : index
    %c0_117 = arith.constant 0 : index
    %231 = vector.load %arg11[%c0_116, %c0_117] : memref<32x8xf32, #tpu.memory_space<vmem>>, vector<32x8xf32>
    %cst_118 = arith.constant dense<0.000000e+00> : vector<16x8xf32>
    %232 = tpu.matmul %230, %231, %cst_118 {dimension_numbers = #tpu.dot_dimension_numbers<[1], [0], [0], [1], [0, 0, 1, 1], [], []>} : vector<16x32xf32>, vector<32x8xf32>, vector<16x8xf32> -> vector<16x8xf32>
    %c0_119 = arith.constant 0 : index
    %c0_120 = arith.constant 0 : index
    %233 = vector.load %arg12[%c0_119, %c0_120] : memref<1x8xf32, #tpu.memory_space<vmem>>, vector<1x8xf32>
    %234 = vector.broadcast %233 : vector<1x8xf32> to vector<16x8xf32>
    %235 = arith.addf %232, %234 : vector<16x8xf32>
    %cst_121 = arith.constant 0.000000e+00 : f32
    %236 = vector.broadcast %cst_121 : f32 to vector<16x8xf32>
    %237 = arith.maximumf %235, %236 : vector<16x8xf32>
    %c0_122 = arith.constant 0 : index
    %c0_123 = arith.constant 0 : index
    %238 = vector.load %arg13[%c0_122, %c0_123] : memref<8x1xf32, #tpu.memory_space<vmem>>, vector<8x1xf32>
    %cst_124 = arith.constant dense<0.000000e+00> : vector<16x1xf32>
    %239 = tpu.matmul %237, %238, %cst_124 {dimension_numbers = #tpu.dot_dimension_numbers<[1], [0], [0], [1], [0, 0, 1, 1], [], []>} : vector<16x8xf32>, vector<8x1xf32>, vector<16x1xf32> -> vector<16x1xf32>
    %c0_125 = arith.constant 0 : index
    %c0_126 = arith.constant 0 : index
    %240 = vector.load %arg14[%c0_125, %c0_126] : memref<1x1xf32, #tpu.memory_space<vmem>>, vector<1x1xf32>
    %241 = vector.broadcast %240 : vector<1x1xf32> to vector<16x1xf32>
    %242 = arith.addf %239, %241 : vector<16x1xf32>
    %243 = arith.negf %242 : vector<16x1xf32>
    %244 = math.exp %243 : vector<16x1xf32>
    %cst_127 = arith.constant 1.000000e+00 : f32
    %245 = vector.broadcast %cst_127 : f32 to vector<16x1xf32>
    %246 = arith.addf %245, %244 : vector<16x1xf32>
    %247 = arith.divf %245, %246 : vector<16x1xf32>
    %c0_128 = arith.constant 0 : index
    %c0_129 = arith.constant 0 : index
    %248 = vector.load %arg17[%c0_128, %c0_129] : memref<16x1xf32, #tpu.memory_space<vmem>>, vector<16x1xf32>
    tpu.vector_store %arg17[%c0_128, %c0_129], %247 {strides = array<i32>} : memref<16x1xf32, #tpu.memory_space<vmem>>, vector<16x1xf32>,
    return
  }
}

</mosaic_0001>

<llo_original>
// kernel: div.16
$region0: #{div.16}
  %s0 = inlined_call_operand.vmem [shape: f32[16], index: 0, kind: input, shape index: {}]
  %s1 = inlined_call_operand.vmem [shape: f32[2,8], index: 1, kind: output, shape index: {}]
  $region1: #{div.16} parent=0
    #allocation0 [shape = 'u8[4096]{0}', space=vmem, size = 0x1000, scoped, tag = 'scoped mem for output reshape']
    #allocation1 [shape = 'u8[4096]{0}', space=vmem, size = 0x1000, scoped, tag = 'scoped mem for input reshape']
    %s3 = sshll.u32 1, 1
    %s4 = ssub.s32 %s3, 1
    %v5 = vld [vmem:[%s0] sm:%s4]
    %6 = vst [vmem:[#allocation1] sm:%s4] %v5
    %v7 = vld [vmem:[#allocation1] sm:$0x1]
    %vm8 = vcmask 64512
    %9 = vst.msk [vmem:[#allocation0] sm:$0x1] %vm8, %v7
    %v10 = vld [vmem:[#allocation1] sm:$0x1]
    %11 = vrot.lane.b32.xlu0 %v10, 120
    %v12 = vpop.permute.xlu0 %11
    %vm13 = vcmask 64512
    %s14 = scalar_lea.vmem [#allocation0], 1
    %15 = vst.msk [vmem:[%s14] sm:$0x1] %vm13, %v12
    %s17 = sshll.u32 1, 2
    %s18 = ssub.s32 %s17, 1
    %v20 = vld [vmem:[#allocation0] sm:%s18]
    %s21 = sshll.u32 1, 2
    %s22 = ssub.s32 %s21, 1
    %23 = vst [vmem:[%s1] sm:%s22] %v20

// kernel: transformer_block.3
$region0: #{transformer_block.3}
  #allocation0 [shape = 'u32[]', space=smem, size = 0x4, offset = 0x4, fixed_abs, tag = 'smem constant byte address 0x4 - core index']
  #allocation1 [shape = 'u32[144,128]{1,0:T(1,128)}', space=vmem, size = 0x12000, scoped, tag = 'internal scratch']
  #allocation2 [shape = 'f32[1,1]{1,0:T(1,128)S(1)}', space=vmem, size = 0x200, scoped, tag = 'scoped memory for transformer_block.3']
  #allocation3 [shape = 'f32[1,1]{1,0:T(1,128)S(1)}', space=vmem, size = 0x200, scoped, tag = 'scoped memory for transformer_block.3']
  %s0 = inlined_call_operand.vmem [shape: f32[16,32], index: 0, kind: input, shape index: {}]
  %s1 = inlined_call_operand.vmem [shape: f32[16,32], index: 1, kind: input, shape index: {}]
  %s2 = inlined_call_operand.vmem [shape: f32[16,12], index: 2, kind: input, shape index: {}]
  %s3 = inlined_call_operand.vmem [shape: f32[32,768], index: 3, kind: input, shape index: {}]
  %s4 = inlined_call_operand.vmem [shape: f32[1,768], index: 4, kind: input, shape index: {}]
  %s5 = inlined_call_operand.vmem [shape: f32[12,64,32], index: 5, kind: input, shape index: {}]
  %s6 = inlined_call_operand.vmem [shape: f32[12,1,32], index: 6, kind: input, shape index: {}]
  %s7 = inlined_call_operand.vmem [shape: f32[32,16], index: 7, kind: input, shape index: {}]
  %s8 = inlined_call_operand.vmem [shape: f32[1,16], index: 8, kind: input, shape index: {}]
  %s9 = inlined_call_operand.vmem [shape: f32[16,1], index: 9, kind: input, shape index: {}]
  %s10 = inlined_call_operand.<no memory space> [shape: f32[1,1], index: 10, kind: input, shape index: {}]
  %s11 = inlined_call_operand.vmem [shape: f32[32,8], index: 11, kind: input, shape index: {}]
  %s12 = inlined_call_operand.vmem [shape: f32[1,8], index: 12, kind: input, shape index: {}]
  %s13 = inlined_call_operand.vmem [shape: f32[8,1], index: 13, kind: input, shape index: {}]
  %s14 = inlined_call_operand.<no memory space> [shape: f32[1,1], index: 14, kind: input, shape index: {}]
  %s15 = inlined_call_operand.hbm [shape: f32[2,16,32], index: 15, kind: output, shape index: {0}]
  %s16 = inlined_call_operand.vmem [shape: f32[2,1], index: 16, kind: output, shape index: {1}]
  %s17 = inlined_call_operand.vmem [shape: f32[16,1], index: 17, kind: output, shape index: {2}]
  %18 = xla_tuple %s15, %s16, %s17
  %s19 = sld [smem:[#allocation0]]
  $region86: #{transformer_block.3} parent=0
    _
  %s21 = ssub.s32 1, %s19
  %s22 = scalar_select 0, %s21, %s19
  %v23 = vstv %s10
  %24 = vst [vmem:[#allocation2] sm:$0x1] %v23
  %v25 = vstv %s14
  %26 = vst [vmem:[#allocation3] sm:$0x1] %v25
  $region1: #{transformer_block.3} parent=0
    #allocation4 [shape = 'u8[16384]{0}', space=vmem, size = 0x4000, scoped, tag = 'output window, operand 0, single buffered']
    #allocation5 [shape = 's32[1]{0}', space=sflag, size = 0x4, scoped, tag = 'scoped memory for transformer_block.3']
    %27 = vsyncpa [#allocation5], 0
    // Predicated region
    $region2: #{transformer_block.3} parent=1 // pred_check
      _
    $region3: #{transformer_block.3} parent=1 // pred_check_branch
      %29 = sbr.rel (0) target = $region5
    $region4: #{transformer_block.3} parent=1 // pred_region
      _
    $region5: #{transformer_block.3} parent=1 // pred_fallthru
      _
    // Predicated region
    $region6: #{transformer_block.3} parent=1 // pred_check
      _
    $region7: #{transformer_block.3} parent=1 // pred_check_branch
      %31 = sbr.rel (0) target = $region9
    $region8: #{transformer_block.3} parent=1 // pred_region
      _
    $region9: #{transformer_block.3} parent=1 // pred_fallthru
      _
    // Predicated region
    $region10: #{transformer_block.3} parent=1 // pred_check
      _
    $region11: #{transformer_block.3} parent=1 // pred_check_branch
      %33 = sbr.rel (0) target = $region13
    $region12: #{transformer_block.3} parent=1 // pred_region
      _
    $region13: #{transformer_block.3} parent=1 // pred_fallthru
      _
    // Predicated region
    $region14: #{transformer_block.3} parent=1 // pred_check
      _
    $region15: #{transformer_block.3} parent=1 // pred_check_branch
      %35 = sbr.rel (0) target = $region17
    $region16: #{transformer_block.3} parent=1 // pred_region
      _
    $region17: #{transformer_block.3} parent=1 // pred_fallthru
      _
    // Predicated region
    $region18: #{transformer_block.3} parent=1 // pred_check
      _
    $region19: #{transformer_block.3} parent=1 // pred_check_branch
      %37 = sbr.rel (0) target = $region21
    $region20: #{transformer_block.3} parent=1 // pred_region
      _
    $region21: #{transformer_block.3} parent=1 // pred_fallthru
      _
    // Predicated region
    $region22: #{transformer_block.3} parent=1 // pred_check
      _
    $region23: #{transformer_block.3} parent=1 // pred_check_branch
      %39 = sbr.rel (0) target = $region25
    $region24: #{transformer_block.3} parent=1 // pred_region
      _
    $region25: #{transformer_block.3} parent=1 // pred_fallthru
      _
    // Predicated region
    $region26: #{transformer_block.3} parent=1 // pred_check
      _
    $region27: #{transformer_block.3} parent=1 // pred_check_branch
      %41 = sbr.rel (0) target = $region29
    $region28: #{transformer_block.3} parent=1 // pred_region
      _
    $region29: #{transformer_block.3} parent=1 // pred_fallthru
      _
    // Predicated region
    $region30: #{transformer_block.3} parent=1 // pred_check
      _
    $region31: #{transformer_block.3} parent=1 // pred_check_branch
      %43 = sbr.rel (0) target = $region33
    $region32: #{transformer_block.3} parent=1 // pred_region
      _
    $region33: #{transformer_block.3} parent=1 // pred_fallthru
      _
    // Predicated region
    $region34: #{transformer_block.3} parent=1 // pred_check
      _
    $region35: #{transformer_block.3} parent=1 // pred_check_branch
      %45 = sbr.rel (0) target = $region37
    $region36: #{transformer_block.3} parent=1 // pred_region
      _
    $region37: #{transformer_block.3} parent=1 // pred_fallthru
      _
    // Predicated region
    $region38: #{transformer_block.3} parent=1 // pred_check
      _
    $region39: #{transformer_block.3} parent=1 // pred_check_branch
      %47 = sbr.rel (0) target = $region41
    $region40: #{transformer_block.3} parent=1 // pred_region
      _
    $region41: #{transformer_block.3} parent=1 // pred_fallthru
      _
    // Predicated region
    $region42: #{transformer_block.3} parent=1 // pred_check
      _
    $region43: #{transformer_block.3} parent=1 // pred_check_branch
      %49 = sbr.rel (0) target = $region45
    $region44: #{transformer_block.3} parent=1 // pred_region
      _
    $region45: #{transformer_block.3} parent=1 // pred_fallthru
      _
    // Predicated region
    $region46: #{transformer_block.3} parent=1 // pred_check
      _
    $region47: #{transformer_block.3} parent=1 // pred_check_branch
      %51 = sbr.rel (0) target = $region49
    $region48: #{transformer_block.3} parent=1 // pred_region
      _
    $region49: #{transformer_block.3} parent=1 // pred_fallthru
      _
    // Predicated region
    $region50: #{transformer_block.3} parent=1 // pred_check
      _
    $region51: #{transformer_block.3} parent=1 // pred_check_branch
      %53 = sbr.rel (0) target = $region53
    $region52: #{transformer_block.3} parent=1 // pred_region
      _
    $region53: #{transformer_block.3} parent=1 // pred_fallthru
      _
    // Predicated region
    $region54: #{transformer_block.3} parent=1 // pred_check
      _
    $region55: #{transformer_block.3} parent=1 // pred_check_branch
      %55 = sbr.rel (0) target = $region57
    $region56: #{transformer_block.3} parent=1 // pred_region
      _
    $region57: #{transformer_block.3} parent=1 // pred_fallthru
      _
    // Predicated region
    $region58: #{transformer_block.3} parent=1 // pred_check
      _
    $region59: #{transformer_block.3} parent=1 // pred_check_branch
      %57 = sbr.rel (0) target = $region61
    $region60: #{transformer_block.3} parent=1 // pred_region
      _
    $region61: #{transformer_block.3} parent=1 // pred_fallthru
      _
    %v58 = vld [vmem:[%s0] sm:$0xff]
    %v59 = vld [vmem:[%s0 + $0x8] sm:$0xff]
    %v60 = vld [vmem:[%s2] sm:$0xff]
    %v61 = vld [vmem:[%s2 + $0x8] sm:$0xff]
    %v62 = vld [vmem:[%s3] sm:$0xff]
    %v63 = vld [vmem:[%s3 + $0x8] sm:$0xff]
    %v64 = vld [vmem:[%s3 + $0x10] sm:$0xff]
    %v65 = vld [vmem:[%s3 + $0x18] sm:$0xff]
    %v66 = vld [vmem:[%s3 + $0x20] sm:$0xff]
    %v67 = vld [vmem:[%s3 + $0x28] sm:$0xff]
    %v68 = vld [vmem:[%s3 + $0x30] sm:$0xff]
    %v69 = vld [vmem:[%s3 + $0x38] sm:$0xff]
    %v70 = vld [vmem:[%s3 + $0x40] sm:$0xff]
    %v71 = vld [vmem:[%s3 + $0x48] sm:$0xff]
    %v72 = vld [vmem:[%s3 + $0x50] sm:$0xff]
    %v73 = vld [vmem:[%s3 + $0x58] sm:$0xff]
    %v74 = vld [vmem:[%s3 + $0x60] sm:$0xff]
    %v75 = vld [vmem:[%s3 + $0x68] sm:$0xff]
    %v76 = vld [vmem:[%s3 + $0x70] sm:$0xff]
    %v77 = vld [vmem:[%s3 + $0x78] sm:$0xff]
    %v78 = vld [vmem:[%s3 + $0x80] sm:$0xff]
    %v79 = vld [vmem:[%s3 + $0x88] sm:$0xff]
    %v80 = vld [vmem:[%s3 + $0x90] sm:$0xff]
    %v81 = vld [vmem:[%s3 + $0x98] sm:$0xff]
    %v82 = vld [vmem:[%s3 + $0xa0] sm:$0xff]
    %v83 = vld [vmem:[%s3 + $0xa8] sm:$0xff]
    %v84 = vld [vmem:[%s3 + $0xb0] sm:$0xff]
    %v85 = vld [vmem:[%s3 + $0xb8] sm:$0xff]
    %v86 = vld [vmem:[%s4] sm:$0x3f]
    %v88 = vlaneseq
    %v89 = vshrl.u32 %v88, 7
    %v90 = vsub.s32 0, %v89
    %v91 = vrot.slane %v86, %v90
    %v92 = vlaneseq
    %v93 = vshrl.u32 %v92, 7
    %v94 = vsub.s32 1, %v93
    %v95 = vrot.slane %v86, %v94
    %v96 = vlaneseq
    %v97 = vshrl.u32 %v96, 7
    %v98 = vsub.s32 2, %v97
    %v99 = vrot.slane %v86, %v98
    %v100 = vlaneseq
    %v101 = vshrl.u32 %v100, 7
    %v102 = vsub.s32 3, %v101
    %v103 = vrot.slane %v86, %v102
    %v104 = vlaneseq
    %v105 = vshrl.u32 %v104, 7
    %v106 = vsub.s32 4, %v105
    %v107 = vrot.slane %v86, %v106
    %v108 = vlaneseq
    %v109 = vshrl.u32 %v108, 7
    %v110 = vsub.s32 5, %v109
    %v111 = vrot.slane %v86, %v110
    %vm118 = vcmask 261120
    %v120 = vsel %vm118, %v58, 0
    %v123 = vsel %vm118, %v59, 0
    %125 = vmatprep.subr.mxu0 0.0
    %126 = vmatpush1.msra.mxu0 0.0
    %127 = vmatprep.subr.mxu0 0.0
    %128 = vmatpush1.msra.mxu0 0.0
    %129 = vmatprep.subr.mxu0 0.0
    %130 = vmatpush1.msra.mxu0 0.0
    %131 = vmatprep.subr.mxu0 0.0
    %132 = vmatpush1.msra.mxu0 0.0
    %133 = vmatprep.subr.mxu0 0.0
    %134 = vmatpush1.msra.mxu0 0.0
    %135 = vmatprep.subr.mxu0 0.0
    %136 = vmatpush1.msra.mxu0 0.0
    %137 = vmatprep.subr.mxu0 0.0
    %138 = vmatpush1.msra.mxu0 0.0
    %139 = vmatprep.subr.mxu0 0.0
    %140 = vmatpush1.msra.mxu0 0.0
    %141 = vmatprep.subr.mxu0 0.0
    %142 = vmatpush1.msra.mxu0 0.0
    %143 = vmatprep.subr.mxu0 0.0
    %144 = vmatpush1.msra.mxu0 0.0
    %145 = vmatprep.subr.mxu0 0.0
    %146 = vmatpush1.msra.mxu0 0.0
    %147 = vmatprep.subr.mxu0 0.0
    %148 = vmatpush1.msra.mxu0 0.0
    %149 = vmatprep.subr.mxu0 %v81
    %150 = vmatpush1.msra.mxu0 %v80
    %151 = vmatprep.subr.mxu0 %v75
    %152 = vmatpush1.msra.mxu0 %v74
    %153 = vmatprep.subr.mxu0 %v69
    %154 = vmatpush1.msra.mxu0 %v68
    %155 = vmatprep.subr.mxu0 %v63
    %156 = vmatpush1.msra.mxu0 %v62
    %157 = vmatprep.subr.mxu0 0.0
    %158 = vmatpush2.msra.mxu0 0.0
    %159 = vmatprep.subr.mxu0 0.0
    %160 = vmatpush2.msra.mxu0 0.0
    %161 = vmatprep.subr.mxu0 0.0
    %162 = vmatpush2.msra.mxu0 0.0
    %163 = vmatprep.subr.mxu0 0.0
    %164 = vmatpush2.msra.mxu0 0.0
    %165 = vmatprep.subr.mxu0 0.0
    %166 = vmatpush2.msra.mxu0 0.0
    %167 = vmatprep.subr.mxu0 0.0
    %168 = vmatpush2.msra.mxu0 0.0
    %169 = vmatprep.subr.mxu0 0.0
    %170 = vmatpush2.msra.mxu0 0.0
    %171 = vmatprep.subr.mxu0 0.0
    %172 = vmatpush2.msra.mxu0 0.0
    %173 = vmatprep.subr.mxu0 0.0
    %174 = vmatpush2.msra.mxu0 0.0
    %175 = vmatprep.subr.mxu0 0.0
    %176 = vmatpush2.msra.mxu0 0.0
    %177 = vmatprep.subr.mxu0 0.0
    %178 = vmatpush2.msra.mxu0 0.0
    %179 = vmatprep.subr.mxu0 0.0
    %180 = vmatpush2.msra.mxu0 0.0
    %181 = vmatprep.subr.mxu0 0.0
    %182 = vmatpush2.msra.mxu0 0.0
    %183 = vmatprep.subr.mxu0 0.0
    %184 = vmatpush2.msra.mxu0 0.0
    %185 = vmatprep.subr.mxu0 0.0
    %186 = vmatpush2.msra.mxu0 0.0
    %187 = vmatprep.subr.mxu0 0.0
    %188 = vmatpush2.msra.mxu0 0.0
    %189 = vmatprep.mubr.f32.mxu0 0.0
    %190 = vmatmul.mubr.f32.gmra.mxu0 %v120
    %v191 = vpop.f32.mrf.mxu0
    %v192 = vadd.f32 %v91, %v191
    %v193 = vpop.f32.mrf.mxu0
    %v194 = vadd.f32 %v95, %v193
    %195 = vmatprep.mubr.f32.mxu0 0.0
    %196 = vmatmul.mubr.f32.gmra.mxu0 %v123
    %v197 = vpop.f32.mrf.mxu0
    %v198 = vadd.f32 %v91, %v197
    %v199 = vpop.f32.mrf.mxu0
    %v200 = vadd.f32 %v95, %v199
    %201 = vdwg.mxu0
    %202 = vmatprep.subr.mxu0 0.0
    %203 = vmatpush1.msra.mxu0 0.0
    %204 = vmatprep.subr.mxu0 0.0
    %205 = vmatpush1.msra.mxu0 0.0
    %206 = vmatprep.subr.mxu0 0.0
    %207 = vmatpush1.msra.mxu0 0.0
    %208 = vmatprep.subr.mxu0 0.0
    %209 = vmatpush1.msra.mxu0 0.0
    %210 = vmatprep.subr.mxu0 0.0
    %211 = vmatpush1.msra.mxu0 0.0
    %212 = vmatprep.subr.mxu0 0.0
    %213 = vmatpush1.msra.mxu0 0.0
    %214 = vmatprep.subr.mxu0 0.0
    %215 = vmatpush1.msra.mxu0 0.0
    %216 = vmatprep.subr.mxu0 0.0
    %217 = vmatpush1.msra.mxu0 0.0
    %218 = vmatprep.subr.mxu0 0.0
    %219 = vmatpush1.msra.mxu0 0.0
    %220 = vmatprep.subr.mxu0 0.0
    %221 = vmatpush1.msra.mxu0 0.0
    %222 = vmatprep.subr.mxu0 0.0
    %223 = vmatpush1.msra.mxu0 0.0
    %224 = vmatprep.subr.mxu0 0.0
    %225 = vmatpush1.msra.mxu0 0.0
    %226 = vmatprep.subr.mxu0 %v83
    %227 = vmatpush1.msra.mxu0 %v82
    %228 = vmatprep.subr.mxu0 %v77
    %229 = vmatpush1.msra.mxu0 %v76
    %230 = vmatprep.subr.mxu0 %v71
    %231 = vmatpush1.msra.mxu0 %v70
    %232 = vmatprep.subr.mxu0 %v65
    %233 = vmatpush1.msra.mxu0 %v64
    %234 = vmatprep.subr.mxu0 0.0
    %235 = vmatpush2.msra.mxu0 0.0
    %236 = vmatprep.subr.mxu0 0.0
    %237 = vmatpush2.msra.mxu0 0.0
    %238 = vmatprep.subr.mxu0 0.0
    %239 = vmatpush2.msra.mxu0 0.0
    %240 = vmatprep.subr.mxu0 0.0
    %241 = vmatpush2.msra.mxu0 0.0
    %242 = vmatprep.subr.mxu0 0.0
    %243 = vmatpush2.msra.mxu0 0.0
    %244 = vmatprep.subr.mxu0 0.0
    %245 = vmatpush2.msra.mxu0 0.0
    %246 = vmatprep.subr.mxu0 0.0
    %247 = vmatpush2.msra.mxu0 0.0
    %248 = vmatprep.subr.mxu0 0.0
    %249 = vmatpush2.msra.mxu0 0.0
    %250 = vmatprep.subr.mxu0 0.0
    %251 = vmatpush2.msra.mxu0 0.0
    %252 = vmatprep.subr.mxu0 0.0
    %253 = vmatpush2.msra.mxu0 0.0
    %254 = vmatprep.subr.mxu0 0.0
    %255 = vmatpush2.msra.mxu0 0.0
    %256 = vmatprep.subr.mxu0 0.0
    %257 = vmatpush2.msra.mxu0 0.0
    %258 = vmatprep.subr.mxu0 0.0
    %259 = vmatpush2.msra.mxu0 0.0
    %260 = vmatprep.subr.mxu0 0.0
    %261 = vmatpush2.msra.mxu0 0.0
    %262 = vmatprep.subr.mxu0 0.0
    %263 = vmatpush2.msra.mxu0 0.0
    %264 = vmatprep.subr.mxu0 0.0
    %265 = vmatpush2.msra.mxu0 0.0
    %266 = vmatprep.mubr.f32.mxu0 0.0
    %267 = vmatmul.mubr.f32.gmra.mxu0 %v120
    %v268 = vpop.f32.mrf.mxu0
    %v269 = vadd.f32 %v99, %v268
    %v270 = vpop.f32.mrf.mxu0
    %v271 = vadd.f32 %v103, %v270
    %272 = vmatprep.mubr.f32.mxu0 0.0
    %273 = vmatmul.mubr.f32.gmra.mxu0 %v123
    %v274 = vpop.f32.mrf.mxu0
    %v275 = vadd.f32 %v99, %v274
    %v276 = vpop.f32.mrf.mxu0
    %v277 = vadd.f32 %v103, %v276
    %278 = vdwg.mxu0
    %279 = vmatprep.subr.mxu0 0.0
    %280 = vmatpush1.msra.mxu0 0.0
    %281 = vmatprep.subr.mxu0 0.0
    %282 = vmatpush1.msra.mxu0 0.0
    %283 = vmatprep.subr.mxu0 0.0
    %284 = vmatpush1.msra.mxu0 0.0
    %285 = vmatprep.subr.mxu0 0.0
    %286 = vmatpush1.msra.mxu0 0.0
    %287 = vmatprep.subr.mxu0 0.0
    %288 = vmatpush1.msra.mxu0 0.0
    %289 = vmatprep.subr.mxu0 0.0
    %290 = vmatpush1.msra.mxu0 0.0
    %291 = vmatprep.subr.mxu0 0.0
    %292 = vmatpush1.msra.mxu0 0.0
    %293 = vmatprep.subr.mxu0 0.0
    %294 = vmatpush1.msra.mxu0 0.0
    %295 = vmatprep.subr.mxu0 0.0
    %296 = vmatpush1.msra.mxu0 0.0
    %297 = vmatprep.subr.mxu0 0.0
    %298 = vmatpush1.msra.mxu0 0.0
    %299 = vmatprep.subr.mxu0 0.0
    %300 = vmatpush1.msra.mxu0 0.0
    %301 = vmatprep.subr.mxu0 0.0
    %302 = vmatpush1.msra.mxu0 0.0
    %303 = vmatprep.subr.mxu0 %v85
    %304 = vmatpush1.msra.mxu0 %v84
    %305 = vmatprep.subr.mxu0 %v79
    %306 = vmatpush1.msra.mxu0 %v78
    %307 = vmatprep.subr.mxu0 %v73
    %308 = vmatpush1.msra.mxu0 %v72
    %309 = vmatprep.subr.mxu0 %v67
    %310 = vmatpush1.msra.mxu0 %v66
    %311 = vmatprep.subr.mxu0 0.0
    %312 = vmatpush2.msra.mxu0 0.0
    %313 = vmatprep.subr.mxu0 0.0
    %314 = vmatpush2.msra.mxu0 0.0
    %315 = vmatprep.subr.mxu0 0.0
    %316 = vmatpush2.msra.mxu0 0.0
    %317 = vmatprep.subr.mxu0 0.0
    %318 = vmatpush2.msra.mxu0 0.0
    %319 = vmatprep.subr.mxu0 0.0
    %320 = vmatpush2.msra.mxu0 0.0
    %321 = vmatprep.subr.mxu0 0.0
    %322 = vmatpush2.msra.mxu0 0.0
    %323 = vmatprep.subr.mxu0 0.0
    %324 = vmatpush2.msra.mxu0 0.0
    %325 = vmatprep.subr.mxu0 0.0
    %326 = vmatpush2.msra.mxu0 0.0
    %327 = vmatprep.subr.mxu0 0.0
    %328 = vmatpush2.msra.mxu0 0.0
    %329 = vmatprep.subr.mxu0 0.0
    %330 = vmatpush2.msra.mxu0 0.0
    %331 = vmatprep.subr.mxu0 0.0
    %332 = vmatpush2.msra.mxu0 0.0
    %333 = vmatprep.subr.mxu0 0.0
    %334 = vmatpush2.msra.mxu0 0.0
    %335 = vmatprep.subr.mxu0 0.0
    %336 = vmatpush2.msra.mxu0 0.0
    %337 = vmatprep.subr.mxu0 0.0
    %338 = vmatpush2.msra.mxu0 0.0
    %339 = vmatprep.subr.mxu0 0.0
    %340 = vmatpush2.msra.mxu0 0.0
    %341 = vmatprep.subr.mxu0 0.0
    %342 = vmatpush2.msra.mxu0 0.0
    %343 = vmatprep.mubr.f32.mxu0 0.0
    %344 = vmatmul.mubr.f32.gmra.mxu0 %v120
    %v345 = vpop.f32.mrf.mxu0
    %v346 = vadd.f32 %v107, %v345
    %v347 = vpop.f32.mrf.mxu0
    %v348 = vadd.f32 %v111, %v347
    %349 = vmatprep.mubr.f32.mxu0 0.0
    %350 = vmatmul.mubr.f32.gmra.mxu0 %v123
    %v351 = vpop.f32.mrf.mxu0
    %v352 = vadd.f32 %v107, %v351
    %v353 = vpop.f32.mrf.mxu0
    %v354 = vadd.f32 %v111, %v353
    %355 = vdwg.mxu0
    %v356 = vmul.f32 %v192, %v192
    %v357 = vmul.f32 %v194, %v194
    %v358 = vmul.f32 %v269, %v269
    %v359 = vmul.f32 %v271, %v271
    %v360 = vmul.f32 %v346, %v346
    %v361 = vmul.f32 %v348, %v348
    %v362 = vmul.f32 %v198, %v198
    %v363 = vmul.f32 %v200, %v200
    %v364 = vmul.f32 %v275, %v275
    %v365 = vmul.f32 %v277, %v277
    %v366 = vmul.f32 %v352, %v352
    %v367 = vmul.f32 %v354, %v354
    %v368 = vmul.f32 %v192, %v356
    %v369 = vmul.f32 %v194, %v357
    %v370 = vmul.f32 %v269, %v358
    %v371 = vmul.f32 %v271, %v359
    %v372 = vmul.f32 %v346, %v360
    %v373 = vmul.f32 %v348, %v361
    %v374 = vmul.f32 %v198, %v362
    %v375 = vmul.f32 %v200, %v363
    %v376 = vmul.f32 %v275, %v364
    %v377 = vmul.f32 %v277, %v365
    %v378 = vmul.f32 %v352, %v366
    %v379 = vmul.f32 %v354, %v367
    %v380 = vmul.f32 %v368, 0.044715
    %v381 = vmul.f32 %v369, 0.044715
    %v382 = vmul.f32 %v370, 0.044715
    %v383 = vmul.f32 %v371, 0.044715
    %v384 = vmul.f32 %v372, 0.044715
    %v385 = vmul.f32 %v373, 0.044715
    %v386 = vmul.f32 %v374, 0.044715
    %v387 = vmul.f32 %v375, 0.044715
    %v388 = vmul.f32 %v376, 0.044715
    %v389 = vmul.f32 %v377, 0.044715
    %v390 = vmul.f32 %v378, 0.044715
    %v391 = vmul.f32 %v379, 0.044715
    %v392 = vadd.f32 %v192, %v380
    %v393 = vadd.f32 %v194, %v381
    %v394 = vadd.f32 %v269, %v382
    %v395 = vadd.f32 %v271, %v383
    %v396 = vadd.f32 %v346, %v384
    %v397 = vadd.f32 %v348, %v385
    %v398 = vadd.f32 %v198, %v386
    %v399 = vadd.f32 %v200, %v387
    %v400 = vadd.f32 %v275, %v388
    %v401 = vadd.f32 %v277, %v389
    %v402 = vadd.f32 %v352, %v390
    %v403 = vadd.f32 %v354, %v391
    %v404 = vmul.f32 %v392, 0.7978846
    %v405 = vmul.f32 %v393, 0.7978846
    %v406 = vmul.f32 %v394, 0.7978846
    %v407 = vmul.f32 %v395, 0.7978846
    %v408 = vmul.f32 %v396, 0.7978846
    %v409 = vmul.f32 %v397, 0.7978846
    %v410 = vmul.f32 %v398, 0.7978846
    %v411 = vmul.f32 %v399, 0.7978846
    %v412 = vmul.f32 %v400, 0.7978846
    %v413 = vmul.f32 %v401, 0.7978846
    %v414 = vmul.f32 %v402, 0.7978846
    %v415 = vmul.f32 %v403, 0.7978846
    %v416 = vtanh.pop %v404
    %v417 = vtanh.pop %v405
    %v418 = vtanh.pop %v406
    %v419 = vtanh.pop %v407
    %v420 = vtanh.pop %v408
    %v421 = vtanh.pop %v409
    %v422 = vtanh.pop %v410
    %v423 = vtanh.pop %v411
    %v424 = vtanh.pop %v412
    %v425 = vtanh.pop %v413
    %v426 = vtanh.pop %v414
    %v427 = vtanh.pop %v415
    %v428 = vadd.f32 %v416, 1.0
    %v429 = vadd.f32 %v417, 1.0
    %v430 = vadd.f32 %v418, 1.0
    %v431 = vadd.f32 %v419, 1.0
    %v432 = vadd.f32 %v420, 1.0
    %v433 = vadd.f32 %v421, 1.0
    %v434 = vadd.f32 %v422, 1.0
    %v435 = vadd.f32 %v423, 1.0
    %v436 = vadd.f32 %v424, 1.0
    %v437 = vadd.f32 %v425, 1.0
    %v438 = vadd.f32 %v426, 1.0
    %v439 = vadd.f32 %v427, 1.0
    %v440 = vmul.f32 %v428, 0.5
    %v441 = vmul.f32 %v429, 0.5
    %v442 = vmul.f32 %v430, 0.5
    %v443 = vmul.f32 %v431, 0.5
    %v444 = vmul.f32 %v432, 0.5
    %v445 = vmul.f32 %v433, 0.5
    %v446 = vmul.f32 %v434, 0.5
    %v447 = vmul.f32 %v435, 0.5
    %v448 = vmul.f32 %v436, 0.5
    %v449 = vmul.f32 %v437, 0.5
    %v450 = vmul.f32 %v438, 0.5
    %v451 = vmul.f32 %v439, 0.5
    %v452 = vmul.f32 %v192, %v440
    %v453 = vmul.f32 %v194, %v441
    %v454 = vmul.f32 %v269, %v442
    %v455 = vmul.f32 %v271, %v443
    %v456 = vmul.f32 %v346, %v444
    %v457 = vmul.f32 %v348, %v445
    %v458 = vmul.f32 %v198, %v446
    %v459 = vmul.f32 %v200, %v447
    %v460 = vmul.f32 %v275, %v448
    %v461 = vmul.f32 %v277, %v449
    %v462 = vmul.f32 %v352, %v450
    %v463 = vmul.f32 %v354, %v451
    %v464 = vld [vmem:[%s5] sm:$0xff]
    %v465 = vld [vmem:[%s5 + $0x8] sm:$0xff]
    %v466 = vld [vmem:[%s5 + $0x10] sm:$0xff]
    %v467 = vld [vmem:[%s5 + $0x18] sm:$0xff]
    %v468 = vld [vmem:[%s5 + $0x20] sm:$0xff]
    %v469 = vld [vmem:[%s5 + $0x28] sm:$0xff]
    %v470 = vld [vmem:[%s5 + $0x30] sm:$0xff]
    %v471 = vld [vmem:[%s5 + $0x38] sm:$0xff]
    %v472 = vld [vmem:[%s6] sm:$0x1]
    %v474 = vlaneseq
    %v475 = vshrl.u32 %v474, 7
    %v476 = vsub.s32 0, %v475
    %v477 = vrot.slane %v472, %v476
    %vm479 = vcmask 523264
    %v481 = vsel %vm479, %v452, 0
    %v484 = vsel %vm479, %v458, 0
    %486 = vmatprep.subr.mxu0 0.0
    %487 = vmatpush1.msra.mxu0 0.0
    %488 = vmatprep.subr.mxu0 0.0
    %489 = vmatpush1.msra.mxu0 0.0
    %490 = vmatprep.subr.mxu0 0.0
    %491 = vmatpush1.msra.mxu0 0.0
    %492 = vmatprep.subr.mxu0 0.0
    %493 = vmatpush1.msra.mxu0 0.0
    %494 = vmatprep.subr.mxu0 0.0
    %495 = vmatpush1.msra.mxu0 0.0
    %496 = vmatprep.subr.mxu0 0.0
    %497 = vmatpush1.msra.mxu0 0.0
    %498 = vmatprep.subr.mxu0 0.0
    %499 = vmatpush1.msra.mxu0 0.0
    %500 = vmatprep.subr.mxu0 0.0
    %501 = vmatpush1.msra.mxu0 0.0
    %502 = vmatprep.subr.mxu0 0.0
    %503 = vmatpush1.msra.mxu0 %v471
    %504 = vmatprep.subr.mxu0 0.0
    %505 = vmatpush1.msra.mxu0 %v470
    %506 = vmatprep.subr.mxu0 0.0
    %507 = vmatpush1.msra.mxu0 %v469
    %508 = vmatprep.subr.mxu0 0.0
    %509 = vmatpush1.msra.mxu0 %v468
    %510 = vmatprep.subr.mxu0 0.0
    %511 = vmatpush1.msra.mxu0 %v467
    %512 = vmatprep.subr.mxu0 0.0
    %513 = vmatpush1.msra.mxu0 %v466
    %514 = vmatprep.subr.mxu0 0.0
    %515 = vmatpush1.msra.mxu0 %v465
    %516 = vmatprep.subr.mxu0 0.0
    %517 = vmatpush1.msra.mxu0 %v464
    %518 = vmatprep.subr.mxu0 0.0
    %519 = vmatpush2.msra.mxu0 0.0
    %520 = vmatprep.subr.mxu0 0.0
    %521 = vmatpush2.msra.mxu0 0.0
    %522 = vmatprep.subr.mxu0 0.0
    %523 = vmatpush2.msra.mxu0 0.0
    %524 = vmatprep.subr.mxu0 0.0
    %525 = vmatpush2.msra.mxu0 0.0
    %526 = vmatprep.subr.mxu0 0.0
    %527 = vmatpush2.msra.mxu0 0.0
    %528 = vmatprep.subr.mxu0 0.0
    %529 = vmatpush2.msra.mxu0 0.0
    %530 = vmatprep.subr.mxu0 0.0
    %531 = vmatpush2.msra.mxu0 0.0
    %532 = vmatprep.subr.mxu0 0.0
    %533 = vmatpush2.msra.mxu0 0.0
    %534 = vmatprep.subr.mxu0 0.0
    %535 = vmatpush2.msra.mxu0 0.0
    %536 = vmatprep.subr.mxu0 0.0
    %537 = vmatpush2.msra.mxu0 0.0
    %538 = vmatprep.subr.mxu0 0.0
    %539 = vmatpush2.msra.mxu0 0.0
    %540 = vmatprep.subr.mxu0 0.0
    %541 = vmatpush2.msra.mxu0 0.0
    %542 = vmatprep.subr.mxu0 0.0
    %543 = vmatpush2.msra.mxu0 0.0
    %544 = vmatprep.subr.mxu0 0.0
    %545 = vmatpush2.msra.mxu0 0.0
    %546 = vmatprep.subr.mxu0 0.0
    %547 = vmatpush2.msra.mxu0 0.0
    %548 = vmatprep.subr.mxu0 0.0
    %549 = vmatpush2.msra.mxu0 0.0
    %550 = vmatprep.mubr.f32.mxu0 0.0
    %551 = vmatmul.mubr.f32.gmra.mxu0 %v481
    %v552 = vpop.f32.mrf.mxu0
    %v553 = vadd.f32 %v477, %v552
    %v554 = vpop.f32.mrf.mxu0
    %555 = vmatprep.mubr.f32.mxu0 0.0
    %556 = vmatmul.mubr.f32.gmra.mxu0 %v484
    %v557 = vpop.f32.mrf.mxu0
    %v558 = vadd.f32 %v477, %v557
    %v559 = vpop.f32.mrf.mxu0
    %560 = vdwg.mxu0
    %562 = vset.pattern.permute.xlu0 0
    %563 = vperm.xlu0 %562, %v60
    %v564 = vpop.permute.xlu0 %563
    %567 = vset.pattern.permute.xlu0 0
    %568 = vperm.xlu0 %567, %v61
    %v569 = vpop.permute.xlu0 %568
    %v571 = vmul.f32 %v564, %v553
    %v572 = vmul.f32 %v569, %v558
    %v573 = vadd.f32 %v571, 0.0
    %v574 = vadd.f32 %v572, 0.0
    %s575 = scalar_lea.vmem %s5, 64
    %v576 = vld [vmem:[%s575] sm:$0xff]
    %v577 = vld [vmem:[%s575 + $0x8] sm:$0xff]
    %v578 = vld [vmem:[%s575 + $0x10] sm:$0xff]
    %v579 = vld [vmem:[%s575 + $0x18] sm:$0xff]
    %v580 = vld [vmem:[%s575 + $0x20] sm:$0xff]
    %v581 = vld [vmem:[%s575 + $0x28] sm:$0xff]
    %v582 = vld [vmem:[%s575 + $0x30] sm:$0xff]
    %v583 = vld [vmem:[%s575 + $0x38] sm:$0xff]
    %s584 = scalar_lea.vmem %s6, 1
    %v585 = vld [vmem:[%s584] sm:$0x1]
    %v587 = vlaneseq
    %v588 = vshrl.u32 %v587, 7
    %v589 = vsub.s32 0, %v588
    %v590 = vrot.slane %v585, %v589
    %592 = vrot.lane.b32.xlu0 %v452, 64
    %v593 = vpop.permute.xlu0 %592
    %594 = vrot.lane.b32.xlu0 %v458, 64
    %v595 = vpop.permute.xlu0 %594
    %v596 = vsel %vm479, %v593, 0
    %v598 = vsel %vm479, %v595, 0
    %600 = vmatprep.subr.mxu0 0.0
    %601 = vmatpush1.msra.mxu0 0.0
    %602 = vmatprep.subr.mxu0 0.0
    %603 = vmatpush1.msra.mxu0 0.0
    %604 = vmatprep.subr.mxu0 0.0
    %605 = vmatpush1.msra.mxu0 0.0
    %606 = vmatprep.subr.mxu0 0.0
    %607 = vmatpush1.msra.mxu0 0.0
    %608 = vmatprep.subr.mxu0 0.0
    %609 = vmatpush1.msra.mxu0 0.0
    %610 = vmatprep.subr.mxu0 0.0
    %611 = vmatpush1.msra.mxu0 0.0
    %612 = vmatprep.subr.mxu0 0.0
    %613 = vmatpush1.msra.mxu0 0.0
    %614 = vmatprep.subr.mxu0 0.0
    %615 = vmatpush1.msra.mxu0 0.0
    %616 = vmatprep.subr.mxu0 0.0
    %617 = vmatpush1.msra.mxu0 %v583
    %618 = vmatprep.subr.mxu0 0.0
    %619 = vmatpush1.msra.mxu0 %v582
    %620 = vmatprep.subr.mxu0 0.0
    %621 = vmatpush1.msra.mxu0 %v581
    %622 = vmatprep.subr.mxu0 0.0
    %623 = vmatpush1.msra.mxu0 %v580
    %624 = vmatprep.subr.mxu0 0.0
    %625 = vmatpush1.msra.mxu0 %v579
    %626 = vmatprep.subr.mxu0 0.0
    %627 = vmatpush1.msra.mxu0 %v578
    %628 = vmatprep.subr.mxu0 0.0
    %629 = vmatpush1.msra.mxu0 %v577
    %630 = vmatprep.subr.mxu0 0.0
    %631 = vmatpush1.msra.mxu0 %v576
    %632 = vmatprep.subr.mxu0 0.0
    %633 = vmatpush2.msra.mxu0 0.0
    %634 = vmatprep.subr.mxu0 0.0
    %635 = vmatpush2.msra.mxu0 0.0
    %636 = vmatprep.subr.mxu0 0.0
    %637 = vmatpush2.msra.mxu0 0.0
    %638 = vmatprep.subr.mxu0 0.0
    %639 = vmatpush2.msra.mxu0 0.0
    %640 = vmatprep.subr.mxu0 0.0
    %641 = vmatpush2.msra.mxu0 0.0
    %642 = vmatprep.subr.mxu0 0.0
    %643 = vmatpush2.msra.mxu0 0.0
    %644 = vmatprep.subr.mxu0 0.0
    %645 = vmatpush2.msra.mxu0 0.0
    %646 = vmatprep.subr.mxu0 0.0
    %647 = vmatpush2.msra.mxu0 0.0
    %648 = vmatprep.subr.mxu0 0.0
    %649 = vmatpush2.msra.mxu0 0.0
    %650 = vmatprep.subr.mxu0 0.0
    %651 = vmatpush2.msra.mxu0 0.0
    %652 = vmatprep.subr.mxu0 0.0
    %653 = vmatpush2.msra.mxu0 0.0
    %654 = vmatprep.subr.mxu0 0.0
    %655 = vmatpush2.msra.mxu0 0.0
    %656 = vmatprep.subr.mxu0 0.0
    %657 = vmatpush2.msra.mxu0 0.0
    %658 = vmatprep.subr.mxu0 0.0
    %659 = vmatpush2.msra.mxu0 0.0
    %660 = vmatprep.subr.mxu0 0.0
    %661 = vmatpush2.msra.mxu0 0.0
    %662 = vmatprep.subr.mxu0 0.0
    %663 = vmatpush2.msra.mxu0 0.0
    %664 = vmatprep.mubr.f32.mxu0 0.0
    %665 = vmatmul.mubr.f32.gmra.mxu0 %v596
    %v666 = vpop.f32.mrf.mxu0
    %v667 = vadd.f32 %v590, %v666
    %v668 = vpop.f32.mrf.mxu0
    %669 = vmatprep.mubr.f32.mxu0 0.0
    %670 = vmatmul.mubr.f32.gmra.mxu0 %v598
    %v671 = vpop.f32.mrf.mxu0
    %v672 = vadd.f32 %v590, %v671
    %v673 = vpop.f32.mrf.mxu0
    %674 = vdwg.mxu0
    %675 = vset.pattern.permute.xlu0 1
    %676 = vperm.xlu0 %675, %v60
    %v677 = vpop.permute.xlu0 %676
    %679 = vset.pattern.permute.xlu0 1
    %680 = vperm.xlu0 %679, %v61
    %v681 = vpop.permute.xlu0 %680
    %v683 = vmul.f32 %v677, %v667
    %v684 = vmul.f32 %v681, %v672
    %v685 = vadd.f32 %v573, %v683
    %v686 = vadd.f32 %v574, %v684
    %s687 = scalar_lea.vmem %s5, 128
    %v688 = vld [vmem:[%s687] sm:$0xff]
    %v689 = vld [vmem:[%s687 + $0x8] sm:$0xff]
    %v690 = vld [vmem:[%s687 + $0x10] sm:$0xff]
    %v691 = vld [vmem:[%s687 + $0x18] sm:$0xff]
    %v692 = vld [vmem:[%s687 + $0x20] sm:$0xff]
    %v693 = vld [vmem:[%s687 + $0x28] sm:$0xff]
    %v694 = vld [vmem:[%s687 + $0x30] sm:$0xff]
    %v695 = vld [vmem:[%s687 + $0x38] sm:$0xff]
    %s696 = scalar_lea.vmem %s6, 2
    %v697 = vld [vmem:[%s696] sm:$0x1]
    %v699 = vlaneseq
    %v700 = vshrl.u32 %v699, 7
    %v701 = vsub.s32 0, %v700
    %v702 = vrot.slane %v697, %v701
    %v705 = vsel %vm479, %v453, 0
    %v708 = vsel %vm479, %v459, 0
    %710 = vmatprep.subr.mxu0 0.0
    %711 = vmatpush1.msra.mxu0 0.0
    %712 = vmatprep.subr.mxu0 0.0
    %713 = vmatpush1.msra.mxu0 0.0
    %714 = vmatprep.subr.mxu0 0.0
    %715 = vmatpush1.msra.mxu0 0.0
    %716 = vmatprep.subr.mxu0 0.0
    %717 = vmatpush1.msra.mxu0 0.0
    %718 = vmatprep.subr.mxu0 0.0
    %719 = vmatpush1.msra.mxu0 0.0
    %720 = vmatprep.subr.mxu0 0.0
    %721 = vmatpush1.msra.mxu0 0.0
    %722 = vmatprep.subr.mxu0 0.0
    %723 = vmatpush1.msra.mxu0 0.0
    %724 = vmatprep.subr.mxu0 0.0
    %725 = vmatpush1.msra.mxu0 0.0
    %726 = vmatprep.subr.mxu0 0.0
    %727 = vmatpush1.msra.mxu0 %v695
    %728 = vmatprep.subr.mxu0 0.0
    %729 = vmatpush1.msra.mxu0 %v694
    %730 = vmatprep.subr.mxu0 0.0
    %731 = vmatpush1.msra.mxu0 %v693
    %732 = vmatprep.subr.mxu0 0.0
    %733 = vmatpush1.msra.mxu0 %v692
    %734 = vmatprep.subr.mxu0 0.0
    %735 = vmatpush1.msra.mxu0 %v691
    %736 = vmatprep.subr.mxu0 0.0
    %737 = vmatpush1.msra.mxu0 %v690
    %738 = vmatprep.subr.mxu0 0.0
    %739 = vmatpush1.msra.mxu0 %v689
    %740 = vmatprep.subr.mxu0 0.0
    %741 = vmatpush1.msra.mxu0 %v688
    %742 = vmatprep.subr.mxu0 0.0
    %743 = vmatpush2.msra.mxu0 0.0
    %744 = vmatprep.subr.mxu0 0.0
    %745 = vmatpush2.msra.mxu0 0.0
    %746 = vmatprep.subr.mxu0 0.0
    %747 = vmatpush2.msra.mxu0 0.0
    %748 = vmatprep.subr.mxu0 0.0
    %749 = vmatpush2.msra.mxu0 0.0
    %750 = vmatprep.subr.mxu0 0.0
    %751 = vmatpush2.msra.mxu0 0.0
    %752 = vmatprep.subr.mxu0 0.0
    %753 = vmatpush2.msra.mxu0 0.0
    %754 = vmatprep.subr.mxu0 0.0
    %755 = vmatpush2.msra.mxu0 0.0
    %756 = vmatprep.subr.mxu0 0.0
    %757 = vmatpush2.msra.mxu0 0.0
    %758 = vmatprep.subr.mxu0 0.0
    %759 = vmatpush2.msra.mxu0 0.0
    %760 = vmatprep.subr.mxu0 0.0
    %761 = vmatpush2.msra.mxu0 0.0
    %762 = vmatprep.subr.mxu0 0.0
    %763 = vmatpush2.msra.mxu0 0.0
    %764 = vmatprep.subr.mxu0 0.0
    %765 = vmatpush2.msra.mxu0 0.0
    %766 = vmatprep.subr.mxu0 0.0
    %767 = vmatpush2.msra.mxu0 0.0
    %768 = vmatprep.subr.mxu0 0.0
    %769 = vmatpush2.msra.mxu0 0.0
    %770 = vmatprep.subr.mxu0 0.0
    %771 = vmatpush2.msra.mxu0 0.0
    %772 = vmatprep.subr.mxu0 0.0
    %773 = vmatpush2.msra.mxu0 0.0
    %774 = vmatprep.mubr.f32.mxu0 0.0
    %775 = vmatmul.mubr.f32.gmra.mxu0 %v705
    %v776 = vpop.f32.mrf.mxu0
    %v777 = vadd.f32 %v702, %v776
    %v778 = vpop.f32.mrf.mxu0
    %779 = vmatprep.mubr.f32.mxu0 0.0
    %780 = vmatmul.mubr.f32.gmra.mxu0 %v708
    %v781 = vpop.f32.mrf.mxu0
    %v782 = vadd.f32 %v702, %v781
    %v783 = vpop.f32.mrf.mxu0
    %784 = vdwg.mxu0
    %785 = vset.pattern.permute.xlu0 2
    %786 = vperm.xlu0 %785, %v60
    %v787 = vpop.permute.xlu0 %786
    %789 = vset.pattern.permute.xlu0 2
    %790 = vperm.xlu0 %789, %v61
    %v791 = vpop.permute.xlu0 %790
    %v793 = vmul.f32 %v787, %v777
    %v794 = vmul.f32 %v791, %v782
    %v795 = vadd.f32 %v685, %v793
    %v796 = vadd.f32 %v686, %v794
    %s797 = scalar_lea.vmem %s5, 192
    %v798 = vld [vmem:[%s797] sm:$0xff]
    %v799 = vld [vmem:[%s797 + $0x8] sm:$0xff]
    %v800 = vld [vmem:[%s797 + $0x10] sm:$0xff]
    %v801 = vld [vmem:[%s797 + $0x18] sm:$0xff]
    %v802 = vld [vmem:[%s797 + $0x20] sm:$0xff]
    %v803 = vld [vmem:[%s797 + $0x28] sm:$0xff]
    %v804 = vld [vmem:[%s797 + $0x30] sm:$0xff]
    %v805 = vld [vmem:[%s797 + $0x38] sm:$0xff]
    %s806 = scalar_lea.vmem %s6, 3
    %v807 = vld [vmem:[%s806] sm:$0x1]
    %v809 = vlaneseq
    %v810 = vshrl.u32 %v809, 7
    %v811 = vsub.s32 0, %v810
    %v812 = vrot.slane %v807, %v811
    %814 = vrot.lane.b32.xlu0 %v453, 64
    %v815 = vpop.permute.xlu0 %814
    %816 = vrot.lane.b32.xlu0 %v459, 64
    %v817 = vpop.permute.xlu0 %816
    %v818 = vsel %vm479, %v815, 0
    %v820 = vsel %vm479, %v817, 0
    %822 = vmatprep.subr.mxu0 0.0
    %823 = vmatpush1.msra.mxu0 0.0
    %824 = vmatprep.subr.mxu0 0.0
    %825 = vmatpush1.msra.mxu0 0.0
    %826 = vmatprep.subr.mxu0 0.0
    %827 = vmatpush1.msra.mxu0 0.0
    %828 = vmatprep.subr.mxu0 0.0
    %829 = vmatpush1.msra.mxu0 0.0
    %830 = vmatprep.subr.mxu0 0.0
    %831 = vmatpush1.msra.mxu0 0.0
    %832 = vmatprep.subr.mxu0 0.0
    %833 = vmatpush1.msra.mxu0 0.0
    %834 = vmatprep.subr.mxu0 0.0
    %835 = vmatpush1.msra.mxu0 0.0
    %836 = vmatprep.subr.mxu0 0.0
    %837 = vmatpush1.msra.mxu0 0.0
    %838 = vmatprep.subr.mxu0 0.0
    %839 = vmatpush1.msra.mxu0 %v805
    %840 = vmatprep.subr.mxu0 0.0
    %841 = vmatpush1.msra.mxu0 %v804
    %842 = vmatprep.subr.mxu0 0.0
    %843 = vmatpush1.msra.mxu0 %v803
    %844 = vmatprep.subr.mxu0 0.0
    %845 = vmatpush1.msra.mxu0 %v802
    %846 = vmatprep.subr.mxu0 0.0
    %847 = vmatpush1.msra.mxu0 %v801
    %848 = vmatprep.subr.mxu0 0.0
    %849 = vmatpush1.msra.mxu0 %v800
    %850 = vmatprep.subr.mxu0 0.0
    %851 = vmatpush1.msra.mxu0 %v799
    %852 = vmatprep.subr.mxu0 0.0
    %853 = vmatpush1.msra.mxu0 %v798
    %854 = vmatprep.subr.mxu0 0.0
    %855 = vmatpush2.msra.mxu0 0.0
    %856 = vmatprep.subr.mxu0 0.0
    %857 = vmatpush2.msra.mxu0 0.0
    %858 = vmatprep.subr.mxu0 0.0
    %859 = vmatpush2.msra.mxu0 0.0
    %860 = vmatprep.subr.mxu0 0.0
    %861 = vmatpush2.msra.mxu0 0.0
    %862 = vmatprep.subr.mxu0 0.0
    %863 = vmatpush2.msra.mxu0 0.0
    %864 = vmatprep.subr.mxu0 0.0
    %865 = vmatpush2.msra.mxu0 0.0
    %866 = vmatprep.subr.mxu0 0.0
    %867 = vmatpush2.msra.mxu0 0.0
    %868 = vmatprep.subr.mxu0 0.0
    %869 = vmatpush2.msra.mxu0 0.0
    %870 = vmatprep.subr.mxu0 0.0
    %871 = vmatpush2.msra.mxu0 0.0
    %872 = vmatprep.subr.mxu0 0.0
    %873 = vmatpush2.msra.mxu0 0.0
    %874 = vmatprep.subr.mxu0 0.0
    %875 = vmatpush2.msra.mxu0 0.0
    %876 = vmatprep.subr.mxu0 0.0
    %877 = vmatpush2.msra.mxu0 0.0
    %878 = vmatprep.subr.mxu0 0.0
    %879 = vmatpush2.msra.mxu0 0.0
    %880 = vmatprep.subr.mxu0 0.0
    %881 = vmatpush2.msra.mxu0 0.0
    %882 = vmatprep.subr.mxu0 0.0
    %883 = vmatpush2.msra.mxu0 0.0
    %884 = vmatprep.subr.mxu0 0.0
    %885 = vmatpush2.msra.mxu0 0.0
    %886 = vmatprep.mubr.f32.mxu0 0.0
    %887 = vmatmul.mubr.f32.gmra.mxu0 %v818
    %v888 = vpop.f32.mrf.mxu0
    %v889 = vadd.f32 %v812, %v888
    %v890 = vpop.f32.mrf.mxu0
    %891 = vmatprep.mubr.f32.mxu0 0.0
    %892 = vmatmul.mubr.f32.gmra.mxu0 %v820
    %v893 = vpop.f32.mrf.mxu0
    %v894 = vadd.f32 %v812, %v893
    %v895 = vpop.f32.mrf.mxu0
    %896 = vdwg.mxu0
    %897 = vset.pattern.permute.xlu0 3
    %898 = vperm.xlu0 %897, %v60
    %v899 = vpop.permute.xlu0 %898
    %901 = vset.pattern.permute.xlu0 3
    %902 = vperm.xlu0 %901, %v61
    %v903 = vpop.permute.xlu0 %902
    %v905 = vmul.f32 %v899, %v889
    %v906 = vmul.f32 %v903, %v894
    %v907 = vadd.f32 %v795, %v905
    %v908 = vadd.f32 %v796, %v906
    %s909 = scalar_lea.vmem %s5, 256
    %v910 = vld [vmem:[%s909] sm:$0xff]
    %v911 = vld [vmem:[%s909 + $0x8] sm:$0xff]
    %v912 = vld [vmem:[%s909 + $0x10] sm:$0xff]
    %v913 = vld [vmem:[%s909 + $0x18] sm:$0xff]
    %v914 = vld [vmem:[%s909 + $0x20] sm:$0xff]
    %v915 = vld [vmem:[%s909 + $0x28] sm:$0xff]
    %v916 = vld [vmem:[%s909 + $0x30] sm:$0xff]
    %v917 = vld [vmem:[%s909 + $0x38] sm:$0xff]
    %s918 = scalar_lea.vmem %s6, 4
    %v919 = vld [vmem:[%s918] sm:$0x1]
    %v921 = vlaneseq
    %v922 = vshrl.u32 %v921, 7
    %v923 = vsub.s32 0, %v922
    %v924 = vrot.slane %v919, %v923
    %v927 = vsel %vm479, %v454, 0
    %v930 = vsel %vm479, %v460, 0
    %932 = vmatprep.subr.mxu0 0.0
    %933 = vmatpush1.msra.mxu0 0.0
    %934 = vmatprep.subr.mxu0 0.0
    %935 = vmatpush1.msra.mxu0 0.0
    %936 = vmatprep.subr.mxu0 0.0
    %937 = vmatpush1.msra.mxu0 0.0
    %938 = vmatprep.subr.mxu0 0.0
    %939 = vmatpush1.msra.mxu0 0.0
    %940 = vmatprep.subr.mxu0 0.0
    %941 = vmatpush1.msra.mxu0 0.0
    %942 = vmatprep.subr.mxu0 0.0
    %943 = vmatpush1.msra.mxu0 0.0
    %944 = vmatprep.subr.mxu0 0.0
    %945 = vmatpush1.msra.mxu0 0.0
    %946 = vmatprep.subr.mxu0 0.0
    %947 = vmatpush1.msra.mxu0 0.0
    %948 = vmatprep.subr.mxu0 0.0
    %949 = vmatpush1.msra.mxu0 %v917
    %950 = vmatprep.subr.mxu0 0.0
    %951 = vmatpush1.msra.mxu0 %v916
    %952 = vmatprep.subr.mxu0 0.0
    %953 = vmatpush1.msra.mxu0 %v915
    %954 = vmatprep.subr.mxu0 0.0
    %955 = vmatpush1.msra.mxu0 %v914
    %956 = vmatprep.subr.mxu0 0.0
    %957 = vmatpush1.msra.mxu0 %v913
    %958 = vmatprep.subr.mxu0 0.0
    %959 = vmatpush1.msra.mxu0 %v912
    %960 = vmatprep.subr.mxu0 0.0
    %961 = vmatpush1.msra.mxu0 %v911
    %962 = vmatprep.subr.mxu0 0.0
    %963 = vmatpush1.msra.mxu0 %v910
    %964 = vmatprep.subr.mxu0 0.0
    %965 = vmatpush2.msra.mxu0 0.0
    %966 = vmatprep.subr.mxu0 0.0
    %967 = vmatpush2.msra.mxu0 0.0
    %968 = vmatprep.subr.mxu0 0.0
    %969 = vmatpush2.msra.mxu0 0.0
    %970 = vmatprep.subr.mxu0 0.0
    %971 = vmatpush2.msra.mxu0 0.0
    %972 = vmatprep.subr.mxu0 0.0
    %973 = vmatpush2.msra.mxu0 0.0
    %974 = vmatprep.subr.mxu0 0.0
    %975 = vmatpush2.msra.mxu0 0.0
    %976 = vmatprep.subr.mxu0 0.0
    %977 = vmatpush2.msra.mxu0 0.0
    %978 = vmatprep.subr.mxu0 0.0
    %979 = vmatpush2.msra.mxu0 0.0
    %980 = vmatprep.subr.mxu0 0.0
    %981 = vmatpush2.msra.mxu0 0.0
    %982 = vmatprep.subr.mxu0 0.0
    %983 = vmatpush2.msra.mxu0 0.0
    %984 = vmatprep.subr.mxu0 0.0
    %985 = vmatpush2.msra.mxu0 0.0
    %986 = vmatprep.subr.mxu0 0.0
    %987 = vmatpush2.msra.mxu0 0.0
    %988 = vmatprep.subr.mxu0 0.0
    %989 = vmatpush2.msra.mxu0 0.0
    %990 = vmatprep.subr.mxu0 0.0
    %991 = vmatpush2.msra.mxu0 0.0
    %992 = vmatprep.subr.mxu0 0.0
    %993 = vmatpush2.msra.mxu0 0.0
    %994 = vmatprep.subr.mxu0 0.0
    %995 = vmatpush2.msra.mxu0 0.0
    %996 = vmatprep.mubr.f32.mxu0 0.0
    %997 = vmatmul.mubr.f32.gmra.mxu0 %v927
    %v998 = vpop.f32.mrf.mxu0
    %v999 = vadd.f32 %v924, %v998
    %v1000 = vpop.f32.mrf.mxu0
    %1001 = vmatprep.mubr.f32.mxu0 0.0
    %1002 = vmatmul.mubr.f32.gmra.mxu0 %v930
    %v1003 = vpop.f32.mrf.mxu0
    %v1004 = vadd.f32 %v924, %v1003
    %v1005 = vpop.f32.mrf.mxu0
    %1006 = vdwg.mxu0
    %1007 = vset.pattern.permute.xlu0 4
    %1008 = vperm.xlu0 %1007, %v60
    %v1009 = vpop.permute.xlu0 %1008
    %1011 = vset.pattern.permute.xlu0 4
    %1012 = vperm.xlu0 %1011, %v61
    %v1013 = vpop.permute.xlu0 %1012
    %v1015 = vmul.f32 %v1009, %v999
    %v1016 = vmul.f32 %v1013, %v1004
    %v1017 = vadd.f32 %v907, %v1015
    %v1018 = vadd.f32 %v908, %v1016
    %s1019 = scalar_lea.vmem %s5, 320
    %v1020 = vld [vmem:[%s1019] sm:$0xff]
    %v1021 = vld [vmem:[%s1019 + $0x8] sm:$0xff]
    %v1022 = vld [vmem:[%s1019 + $0x10] sm:$0xff]
    %v1023 = vld [vmem:[%s1019 + $0x18] sm:$0xff]
    %v1024 = vld [vmem:[%s1019 + $0x20] sm:$0xff]
    %v1025 = vld [vmem:[%s1019 + $0x28] sm:$0xff]
    %v1026 = vld [vmem:[%s1019 + $0x30] sm:$0xff]
    %v1027 = vld [vmem:[%s1019 + $0x38] sm:$0xff]
    %s1028 = scalar_lea.vmem %s6, 5
    %v1029 = vld [vmem:[%s1028] sm:$0x1]
    %v1031 = vlaneseq
    %v1032 = vshrl.u32 %v1031, 7
    %v1033 = vsub.s32 0, %v1032
    %v1034 = vrot.slane %v1029, %v1033
    %1036 = vrot.lane.b32.xlu0 %v454, 64
    %v1037 = vpop.permute.xlu0 %1036
    %1038 = vrot.lane.b32.xlu0 %v460, 64
    %v1039 = vpop.permute.xlu0 %1038
    %v1040 = vsel %vm479, %v1037, 0
    %v1042 = vsel %vm479, %v1039, 0
    %1044 = vmatprep.subr.mxu0 0.0
    %1045 = vmatpush1.msra.mxu0 0.0
    %1046 = vmatprep.subr.mxu0 0.0
    %1047 = vmatpush1.msra.mxu0 0.0
    %1048 = vmatprep.subr.mxu0 0.0
    %1049 = vmatpush1.msra.mxu0 0.0
    %1050 = vmatprep.subr.mxu0 0.0
    %1051 = vmatpush1.msra.mxu0 0.0
    %1052 = vmatprep.subr.mxu0 0.0
    %1053 = vmatpush1.msra.mxu0 0.0
    %1054 = vmatprep.subr.mxu0 0.0
    %1055 = vmatpush1.msra.mxu0 0.0
    %1056 = vmatprep.subr.mxu0 0.0
    %1057 = vmatpush1.msra.mxu0 0.0
    %1058 = vmatprep.subr.mxu0 0.0
    %1059 = vmatpush1.msra.mxu0 0.0
    %1060 = vmatprep.subr.mxu0 0.0
    %1061 = vmatpush1.msra.mxu0 %v1027
    %1062 = vmatprep.subr.mxu0 0.0
    %1063 = vmatpush1.msra.mxu0 %v1026
    %1064 = vmatprep.subr.mxu0 0.0
    %1065 = vmatpush1.msra.mxu0 %v1025
    %1066 = vmatprep.subr.mxu0 0.0
    %1067 = vmatpush1.msra.mxu0 %v1024
    %1068 = vmatprep.subr.mxu0 0.0
    %1069 = vmatpush1.msra.mxu0 %v1023
    %1070 = vmatprep.subr.mxu0 0.0
    %1071 = vmatpush1.msra.mxu0 %v1022
    %1072 = vmatprep.subr.mxu0 0.0
    %1073 = vmatpush1.msra.mxu0 %v1021
    %1074 = vmatprep.subr.mxu0 0.0
    %1075 = vmatpush1.msra.mxu0 %v1020
    %1076 = vmatprep.subr.mxu0 0.0
    %1077 = vmatpush2.msra.mxu0 0.0
    %1078 = vmatprep.subr.mxu0 0.0
    %1079 = vmatpush2.msra.mxu0 0.0
    %1080 = vmatprep.subr.mxu0 0.0
    %1081 = vmatpush2.msra.mxu0 0.0
    %1082 = vmatprep.subr.mxu0 0.0
    %1083 = vmatpush2.msra.mxu0 0.0
    %1084 = vmatprep.subr.mxu0 0.0
    %1085 = vmatpush2.msra.mxu0 0.0
    %1086 = vmatprep.subr.mxu0 0.0
    %1087 = vmatpush2.msra.mxu0 0.0
    %1088 = vmatprep.subr.mxu0 0.0
    %1089 = vmatpush2.msra.mxu0 0.0
    %1090 = vmatprep.subr.mxu0 0.0
    %1091 = vmatpush2.msra.mxu0 0.0
    %1092 = vmatprep.subr.mxu0 0.0
    %1093 = vmatpush2.msra.mxu0 0.0
    %1094 = vmatprep.subr.mxu0 0.0
    %1095 = vmatpush2.msra.mxu0 0.0
    %1096 = vmatprep.subr.mxu0 0.0
    %1097 = vmatpush2.msra.mxu0 0.0
    %1098 = vmatprep.subr.mxu0 0.0
    %1099 = vmatpush2.msra.mxu0 0.0
    %1100 = vmatprep.subr.mxu0 0.0
    %1101 = vmatpush2.msra.mxu0 0.0
    %1102 = vmatprep.subr.mxu0 0.0
    %1103 = vmatpush2.msra.mxu0 0.0
    %1104 = vmatprep.subr.mxu0 0.0
    %1105 = vmatpush2.msra.mxu0 0.0
    %1106 = vmatprep.subr.mxu0 0.0
    %1107 = vmatpush2.msra.mxu0 0.0
    %1108 = vmatprep.mubr.f32.mxu0 0.0
    %1109 = vmatmul.mubr.f32.gmra.mxu0 %v1040
    %v1110 = vpop.f32.mrf.mxu0
    %v1111 = vadd.f32 %v1034, %v1110
    %v1112 = vpop.f32.mrf.mxu0
    %1113 = vmatprep.mubr.f32.mxu0 0.0
    %1114 = vmatmul.mubr.f32.gmra.mxu0 %v1042
    %v1115 = vpop.f32.mrf.mxu0
    %v1116 = vadd.f32 %v1034, %v1115
    %v1117 = vpop.f32.mrf.mxu0
    %1118 = vdwg.mxu0
    %1119 = vset.pattern.permute.xlu0 5
    %1120 = vperm.xlu0 %1119, %v60
    %v1121 = vpop.permute.xlu0 %1120
    %1123 = vset.pattern.permute.xlu0 5
    %1124 = vperm.xlu0 %1123, %v61
    %v1125 = vpop.permute.xlu0 %1124
    %v1127 = vmul.f32 %v1121, %v1111
    %v1128 = vmul.f32 %v1125, %v1116
    %v1129 = vadd.f32 %v1017, %v1127
    %v1130 = vadd.f32 %v1018, %v1128
    %s1131 = scalar_lea.vmem %s5, 384
    %v1132 = vld [vmem:[%s1131] sm:$0xff]
    %v1133 = vld [vmem:[%s1131 + $0x8] sm:$0xff]
    %v1134 = vld [vmem:[%s1131 + $0x10] sm:$0xff]
    %v1135 = vld [vmem:[%s1131 + $0x18] sm:$0xff]
    %v1136 = vld [vmem:[%s1131 + $0x20] sm:$0xff]
    %v1137 = vld [vmem:[%s1131 + $0x28] sm:$0xff]
    %v1138 = vld [vmem:[%s1131 + $0x30] sm:$0xff]
    %v1139 = vld [vmem:[%s1131 + $0x38] sm:$0xff]
    %s1140 = scalar_lea.vmem %s6, 6
    %v1141 = vld [vmem:[%s1140] sm:$0x1]
    %v1143 = vlaneseq
    %v1144 = vshrl.u32 %v1143, 7
    %v1145 = vsub.s32 0, %v1144
    %v1146 = vrot.slane %v1141, %v1145
    %v1149 = vsel %vm479, %v455, 0
    %v1152 = vsel %vm479, %v461, 0
    %1154 = vmatprep.subr.mxu0 0.0
    %1155 = vmatpush1.msra.mxu0 0.0
    %1156 = vmatprep.subr.mxu0 0.0
    %1157 = vmatpush1.msra.mxu0 0.0
    %1158 = vmatprep.subr.mxu0 0.0
    %1159 = vmatpush1.msra.mxu0 0.0
    %1160 = vmatprep.subr.mxu0 0.0
    %1161 = vmatpush1.msra.mxu0 0.0
    %1162 = vmatprep.subr.mxu0 0.0
    %1163 = vmatpush1.msra.mxu0 0.0
    %1164 = vmatprep.subr.mxu0 0.0
    %1165 = vmatpush1.msra.mxu0 0.0
    %1166 = vmatprep.subr.mxu0 0.0
    %1167 = vmatpush1.msra.mxu0 0.0
    %1168 = vmatprep.subr.mxu0 0.0
    %1169 = vmatpush1.msra.mxu0 0.0
    %1170 = vmatprep.subr.mxu0 0.0
    %1171 = vmatpush1.msra.mxu0 %v1139
    %1172 = vmatprep.subr.mxu0 0.0
    %1173 = vmatpush1.msra.mxu0 %v1138
    %1174 = vmatprep.subr.mxu0 0.0
    %1175 = vmatpush1.msra.mxu0 %v1137
    %1176 = vmatprep.subr.mxu0 0.0
    %1177 = vmatpush1.msra.mxu0 %v1136
    %1178 = vmatprep.subr.mxu0 0.0
    %1179 = vmatpush1.msra.mxu0 %v1135
    %1180 = vmatprep.subr.mxu0 0.0
    %1181 = vmatpush1.msra.mxu0 %v1134
    %1182 = vmatprep.subr.mxu0 0.0
    %1183 = vmatpush1.msra.mxu0 %v1133
    %1184 = vmatprep.subr.mxu0 0.0
    %1185 = vmatpush1.msra.mxu0 %v1132
    %1186 = vmatprep.subr.mxu0 0.0
    %1187 = vmatpush2.msra.mxu0 0.0
    %1188 = vmatprep.subr.mxu0 0.0
    %1189 = vmatpush2.msra.mxu0 0.0
    %1190 = vmatprep.subr.mxu0 0.0
    %1191 = vmatpush2.msra.mxu0 0.0
    %1192 = vmatprep.subr.mxu0 0.0
    %1193 = vmatpush2.msra.mxu0 0.0
    %1194 = vmatprep.subr.mxu0 0.0
    %1195 = vmatpush2.msra.mxu0 0.0
    %1196 = vmatprep.subr.mxu0 0.0
    %1197 = vmatpush2.msra.mxu0 0.0
    %1198 = vmatprep.subr.mxu0 0.0
    %1199 = vmatpush2.msra.mxu0 0.0
    %1200 = vmatprep.subr.mxu0 0.0
    %1201 = vmatpush2.msra.mxu0 0.0
    %1202 = vmatprep.subr.mxu0 0.0
    %1203 = vmatpush2.msra.mxu0 0.0
    %1204 = vmatprep.subr.mxu0 0.0
    %1205 = vmatpush2.msra.mxu0 0.0
    %1206 = vmatprep.subr.mxu0 0.0
    %1207 = vmatpush2.msra.mxu0 0.0
    %1208 = vmatprep.subr.mxu0 0.0
    %1209 = vmatpush2.msra.mxu0 0.0
    %1210 = vmatprep.subr.mxu0 0.0
    %1211 = vmatpush2.msra.mxu0 0.0
    %1212 = vmatprep.subr.mxu0 0.0
    %1213 = vmatpush2.msra.mxu0 0.0
    %1214 = vmatprep.subr.mxu0 0.0
    %1215 = vmatpush2.msra.mxu0 0.0
    %1216 = vmatprep.subr.mxu0 0.0
    %1217 = vmatpush2.msra.mxu0 0.0
    %1218 = vmatprep.mubr.f32.mxu0 0.0
    %1219 = vmatmul.mubr.f32.gmra.mxu0 %v1149
    %v1220 = vpop.f32.mrf.mxu0
    %v1221 = vadd.f32 %v1146, %v1220
    %v1222 = vpop.f32.mrf.mxu0
    %1223 = vmatprep.mubr.f32.mxu0 0.0
    %1224 = vmatmul.mubr.f32.gmra.mxu0 %v1152
    %v1225 = vpop.f32.mrf.mxu0
    %v1226 = vadd.f32 %v1146, %v1225
    %v1227 = vpop.f32.mrf.mxu0
    %1228 = vdwg.mxu0
    %1229 = vset.pattern.permute.xlu0 6
    %1230 = vperm.xlu0 %1229, %v60
    %v1231 = vpop.permute.xlu0 %1230
    %1233 = vset.pattern.permute.xlu0 6
    %1234 = vperm.xlu0 %1233, %v61
    %v1235 = vpop.permute.xlu0 %1234
    %v1237 = vmul.f32 %v1231, %v1221
    %v1238 = vmul.f32 %v1235, %v1226
    %v1239 = vadd.f32 %v1129, %v1237
    %v1240 = vadd.f32 %v1130, %v1238
    %s1241 = scalar_lea.vmem %s5, 448
    %v1242 = vld [vmem:[%s1241] sm:$0xff]
    %v1243 = vld [vmem:[%s1241 + $0x8] sm:$0xff]
    %v1244 = vld [vmem:[%s1241 + $0x10] sm:$0xff]
    %v1245 = vld [vmem:[%s1241 + $0x18] sm:$0xff]
    %v1246 = vld [vmem:[%s1241 + $0x20] sm:$0xff]
    %v1247 = vld [vmem:[%s1241 + $0x28] sm:$0xff]
    %v1248 = vld [vmem:[%s1241 + $0x30] sm:$0xff]
    %v1249 = vld [vmem:[%s1241 + $0x38] sm:$0xff]
    %s1250 = scalar_lea.vmem %s6, 7
    %v1251 = vld [vmem:[%s1250] sm:$0x1]
    %v1253 = vlaneseq
    %v1254 = vshrl.u32 %v1253, 7
    %v1255 = vsub.s32 0, %v1254
    %v1256 = vrot.slane %v1251, %v1255
    %1258 = vrot.lane.b32.xlu0 %v455, 64
    %v1259 = vpop.permute.xlu0 %1258
    %1260 = vrot.lane.b32.xlu0 %v461, 64
    %v1261 = vpop.permute.xlu0 %1260
    %v1262 = vsel %vm479, %v1259, 0
    %v1264 = vsel %vm479, %v1261, 0
    %1266 = vmatprep.subr.mxu0 0.0
    %1267 = vmatpush1.msra.mxu0 0.0
    %1268 = vmatprep.subr.mxu0 0.0
    %1269 = vmatpush1.msra.mxu0 0.0
    %1270 = vmatprep.subr.mxu0 0.0
    %1271 = vmatpush1.msra.mxu0 0.0
    %1272 = vmatprep.subr.mxu0 0.0
    %1273 = vmatpush1.msra.mxu0 0.0
    %1274 = vmatprep.subr.mxu0 0.0
    %1275 = vmatpush1.msra.mxu0 0.0
    %1276 = vmatprep.subr.mxu0 0.0
    %1277 = vmatpush1.msra.mxu0 0.0
    %1278 = vmatprep.subr.mxu0 0.0
    %1279 = vmatpush1.msra.mxu0 0.0
    %1280 = vmatprep.subr.mxu0 0.0
    %1281 = vmatpush1.msra.mxu0 0.0
    %1282 = vmatprep.subr.mxu0 0.0
    %1283 = vmatpush1.msra.mxu0 %v1249
    %1284 = vmatprep.subr.mxu0 0.0
    %1285 = vmatpush1.msra.mxu0 %v1248
    %1286 = vmatprep.subr.mxu0 0.0
    %1287 = vmatpush1.msra.mxu0 %v1247
    %1288 = vmatprep.subr.mxu0 0.0
    %1289 = vmatpush1.msra.mxu0 %v1246
    %1290 = vmatprep.subr.mxu0 0.0
    %1291 = vmatpush1.msra.mxu0 %v1245
    %1292 = vmatprep.subr.mxu0 0.0
    %1293 = vmatpush1.msra.mxu0 %v1244
    %1294 = vmatprep.subr.mxu0 0.0
    %1295 = vmatpush1.msra.mxu0 %v1243
    %1296 = vmatprep.subr.mxu0 0.0
    %1297 = vmatpush1.msra.mxu0 %v1242
    %1298 = vmatprep.subr.mxu0 0.0
    %1299 = vmatpush2.msra.mxu0 0.0
    %1300 = vmatprep.subr.mxu0 0.0
    %1301 = vmatpush2.msra.mxu0 0.0
    %1302 = vmatprep.subr.mxu0 0.0
    %1303 = vmatpush2.msra.mxu0 0.0
    %1304 = vmatprep.subr.mxu0 0.0
    %1305 = vmatpush2.msra.mxu0 0.0
    %1306 = vmatprep.subr.mxu0 0.0
    %1307 = vmatpush2.msra.mxu0 0.0
    %1308 = vmatprep.subr.mxu0 0.0
    %1309 = vmatpush2.msra.mxu0 0.0
    %1310 = vmatprep.subr.mxu0 0.0
    %1311 = vmatpush2.msra.mxu0 0.0
    %1312 = vmatprep.subr.mxu0 0.0
    %1313 = vmatpush2.msra.mxu0 0.0
    %1314 = vmatprep.subr.mxu0 0.0
    %1315 = vmatpush2.msra.mxu0 0.0
    %1316 = vmatprep.subr.mxu0 0.0
    %1317 = vmatpush2.msra.mxu0 0.0
    %1318 = vmatprep.subr.mxu0 0.0
    %1319 = vmatpush2.msra.mxu0 0.0
    %1320 = vmatprep.subr.mxu0 0.0
    %1321 = vmatpush2.msra.mxu0 0.0
    %1322 = vmatprep.subr.mxu0 0.0
    %1323 = vmatpush2.msra.mxu0 0.0
    %1324 = vmatprep.subr.mxu0 0.0
    %1325 = vmatpush2.msra.mxu0 0.0
    %1326 = vmatprep.subr.mxu0 0.0
    %1327 = vmatpush2.msra.mxu0 0.0
    %1328 = vmatprep.subr.mxu0 0.0
    %1329 = vmatpush2.msra.mxu0 0.0
    %1330 = vmatprep.mubr.f32.mxu0 0.0
    %1331 = vmatmul.mubr.f32.gmra.mxu0 %v1262
    %v1332 = vpop.f32.mrf.mxu0
    %v1333 = vadd.f32 %v1256, %v1332
    %v1334 = vpop.f32.mrf.mxu0
    %1335 = vmatprep.mubr.f32.mxu0 0.0
    %1336 = vmatmul.mubr.f32.gmra.mxu0 %v1264
    %v1337 = vpop.f32.mrf.mxu0
    %v1338 = vadd.f32 %v1256, %v1337
    %v1339 = vpop.f32.mrf.mxu0
    %1340 = vdwg.mxu0
    %1341 = vset.pattern.permute.xlu0 7
    %1342 = vperm.xlu0 %1341, %v60
    %v1343 = vpop.permute.xlu0 %1342
    %1345 = vset.pattern.permute.xlu0 7
    %1346 = vperm.xlu0 %1345, %v61
    %v1347 = vpop.permute.xlu0 %1346
    %v1349 = vmul.f32 %v1343, %v1333
    %v1350 = vmul.f32 %v1347, %v1338
    %v1351 = vadd.f32 %v1239, %v1349
    %v1352 = vadd.f32 %v1240, %v1350
    %s1353 = scalar_lea.vmem %s5, 512
    %v1354 = vld [vmem:[%s1353] sm:$0xff]
    %v1355 = vld [vmem:[%s1353 + $0x8] sm:$0xff]
    %v1356 = vld [vmem:[%s1353 + $0x10] sm:$0xff]
    %v1357 = vld [vmem:[%s1353 + $0x18] sm:$0xff]
    %v1358 = vld [vmem:[%s1353 + $0x20] sm:$0xff]
    %v1359 = vld [vmem:[%s1353 + $0x28] sm:$0xff]
    %v1360 = vld [vmem:[%s1353 + $0x30] sm:$0xff]
    %v1361 = vld [vmem:[%s1353 + $0x38] sm:$0xff]
    %s1362 = scalar_lea.vmem %s6, 8
    %v1363 = vld [vmem:[%s1362] sm:$0x1]
    %v1365 = vlaneseq
    %v1366 = vshrl.u32 %v1365, 7
    %v1367 = vsub.s32 0, %v1366
    %v1368 = vrot.slane %v1363, %v1367
    %v1371 = vsel %vm479, %v456, 0
    %v1374 = vsel %vm479, %v462, 0
    %1376 = vmatprep.subr.mxu0 0.0
    %1377 = vmatpush1.msra.mxu0 0.0
    %1378 = vmatprep.subr.mxu0 0.0
    %1379 = vmatpush1.msra.mxu0 0.0
    %1380 = vmatprep.subr.mxu0 0.0
    %1381 = vmatpush1.msra.mxu0 0.0
    %1382 = vmatprep.subr.mxu0 0.0
    %1383 = vmatpush1.msra.mxu0 0.0
    %1384 = vmatprep.subr.mxu0 0.0
    %1385 = vmatpush1.msra.mxu0 0.0
    %1386 = vmatprep.subr.mxu0 0.0
    %1387 = vmatpush1.msra.mxu0 0.0
    %1388 = vmatprep.subr.mxu0 0.0
    %1389 = vmatpush1.msra.mxu0 0.0
    %1390 = vmatprep.subr.mxu0 0.0
    %1391 = vmatpush1.msra.mxu0 0.0
    %1392 = vmatprep.subr.mxu0 0.0
    %1393 = vmatpush1.msra.mxu0 %v1361
    %1394 = vmatprep.subr.mxu0 0.0
    %1395 = vmatpush1.msra.mxu0 %v1360
    %1396 = vmatprep.subr.mxu0 0.0
    %1397 = vmatpush1.msra.mxu0 %v1359
    %1398 = vmatprep.subr.mxu0 0.0
    %1399 = vmatpush1.msra.mxu0 %v1358
    %1400 = vmatprep.subr.mxu0 0.0
    %1401 = vmatpush1.msra.mxu0 %v1357
    %1402 = vmatprep.subr.mxu0 0.0
    %1403 = vmatpush1.msra.mxu0 %v1356
    %1404 = vmatprep.subr.mxu0 0.0
    %1405 = vmatpush1.msra.mxu0 %v1355
    %1406 = vmatprep.subr.mxu0 0.0
    %1407 = vmatpush1.msra.mxu0 %v1354
    %1408 = vmatprep.subr.mxu0 0.0
    %1409 = vmatpush2.msra.mxu0 0.0
    %1410 = vmatprep.subr.mxu0 0.0
    %1411 = vmatpush2.msra.mxu0 0.0
    %1412 = vmatprep.subr.mxu0 0.0
    %1413 = vmatpush2.msra.mxu0 0.0
    %1414 = vmatprep.subr.mxu0 0.0
    %1415 = vmatpush2.msra.mxu0 0.0
    %1416 = vmatprep.subr.mxu0 0.0
    %1417 = vmatpush2.msra.mxu0 0.0
    %1418 = vmatprep.subr.mxu0 0.0
    %1419 = vmatpush2.msra.mxu0 0.0
    %1420 = vmatprep.subr.mxu0 0.0
    %1421 = vmatpush2.msra.mxu0 0.0
    %1422 = vmatprep.subr.mxu0 0.0
    %1423 = vmatpush2.msra.mxu0 0.0
    %1424 = vmatprep.subr.mxu0 0.0
    %1425 = vmatpush2.msra.mxu0 0.0
    %1426 = vmatprep.subr.mxu0 0.0
    %1427 = vmatpush2.msra.mxu0 0.0
    %1428 = vmatprep.subr.mxu0 0.0
    %1429 = vmatpush2.msra.mxu0 0.0
    %1430 = vmatprep.subr.mxu0 0.0
    %1431 = vmatpush2.msra.mxu0 0.0
    %1432 = vmatprep.subr.mxu0 0.0
    %1433 = vmatpush2.msra.mxu0 0.0
    %1434 = vmatprep.subr.mxu0 0.0
    %1435 = vmatpush2.msra.mxu0 0.0
    %1436 = vmatprep.subr.mxu0 0.0
    %1437 = vmatpush2.msra.mxu0 0.0
    %1438 = vmatprep.subr.mxu0 0.0
    %1439 = vmatpush2.msra.mxu0 0.0
    %1440 = vmatprep.mubr.f32.mxu0 0.0
    %1441 = vmatmul.mubr.f32.gmra.mxu0 %v1371
    %v1442 = vpop.f32.mrf.mxu0
    %v1443 = vadd.f32 %v1368, %v1442
    %v1444 = vpop.f32.mrf.mxu0
    %1445 = vmatprep.mubr.f32.mxu0 0.0
    %1446 = vmatmul.mubr.f32.gmra.mxu0 %v1374
    %v1447 = vpop.f32.mrf.mxu0
    %v1448 = vadd.f32 %v1368, %v1447
    %v1449 = vpop.f32.mrf.mxu0
    %1450 = vdwg.mxu0
    %1451 = vset.pattern.permute.xlu0 8
    %1452 = vperm.xlu0 %1451, %v60
    %v1453 = vpop.permute.xlu0 %1452
    %1455 = vset.pattern.permute.xlu0 8
    %1456 = vperm.xlu0 %1455, %v61
    %v1457 = vpop.permute.xlu0 %1456
    %v1459 = vmul.f32 %v1453, %v1443
    %v1460 = vmul.f32 %v1457, %v1448
    %v1461 = vadd.f32 %v1351, %v1459
    %v1462 = vadd.f32 %v1352, %v1460
    %s1463 = scalar_lea.vmem %s5, 576
    %v1464 = vld [vmem:[%s1463] sm:$0xff]
    %v1465 = vld [vmem:[%s1463 + $0x8] sm:$0xff]
    %v1466 = vld [vmem:[%s1463 + $0x10] sm:$0xff]
    %v1467 = vld [vmem:[%s1463 + $0x18] sm:$0xff]
    %v1468 = vld [vmem:[%s1463 + $0x20] sm:$0xff]
    %v1469 = vld [vmem:[%s1463 + $0x28] sm:$0xff]
    %v1470 = vld [vmem:[%s1463 + $0x30] sm:$0xff]
    %v1471 = vld [vmem:[%s1463 + $0x38] sm:$0xff]
    %s1472 = scalar_lea.vmem %s6, 9
    %v1473 = vld [vmem:[%s1472] sm:$0x1]
    %v1475 = vlaneseq
    %v1476 = vshrl.u32 %v1475, 7
    %v1477 = vsub.s32 0, %v1476
    %v1478 = vrot.slane %v1473, %v1477
    %1480 = vrot.lane.b32.xlu0 %v456, 64
    %v1481 = vpop.permute.xlu0 %1480
    %1482 = vrot.lane.b32.xlu0 %v462, 64
    %v1483 = vpop.permute.xlu0 %1482
    %v1484 = vsel %vm479, %v1481, 0
    %v1486 = vsel %vm479, %v1483, 0
    %1488 = vmatprep.subr.mxu0 0.0
    %1489 = vmatpush1.msra.mxu0 0.0
    %1490 = vmatprep.subr.mxu0 0.0
    %1491 = vmatpush1.msra.mxu0 0.0
    %1492 = vmatprep.subr.mxu0 0.0
    %1493 = vmatpush1.msra.mxu0 0.0
    %1494 = vmatprep.subr.mxu0 0.0
    %1495 = vmatpush1.msra.mxu0 0.0
    %1496 = vmatprep.subr.mxu0 0.0
    %1497 = vmatpush1.msra.mxu0 0.0
    %1498 = vmatprep.subr.mxu0 0.0
    %1499 = vmatpush1.msra.mxu0 0.0
    %1500 = vmatprep.subr.mxu0 0.0
    %1501 = vmatpush1.msra.mxu0 0.0
    %1502 = vmatprep.subr.mxu0 0.0
    %1503 = vmatpush1.msra.mxu0 0.0
    %1504 = vmatprep.subr.mxu0 0.0
    %1505 = vmatpush1.msra.mxu0 %v1471
    %1506 = vmatprep.subr.mxu0 0.0
    %1507 = vmatpush1.msra.mxu0 %v1470
    %1508 = vmatprep.subr.mxu0 0.0
    %1509 = vmatpush1.msra.mxu0 %v1469
    %1510 = vmatprep.subr.mxu0 0.0
    %1511 = vmatpush1.msra.mxu0 %v1468
    %1512 = vmatprep.subr.mxu0 0.0
    %1513 = vmatpush1.msra.mxu0 %v1467
    %1514 = vmatprep.subr.mxu0 0.0
    %1515 = vmatpush1.msra.mxu0 %v1466
    %1516 = vmatprep.subr.mxu0 0.0
    %1517 = vmatpush1.msra.mxu0 %v1465
    %1518 = vmatprep.subr.mxu0 0.0
    %1519 = vmatpush1.msra.mxu0 %v1464
    %1520 = vmatprep.subr.mxu0 0.0
    %1521 = vmatpush2.msra.mxu0 0.0
    %1522 = vmatprep.subr.mxu0 0.0
    %1523 = vmatpush2.msra.mxu0 0.0
    %1524 = vmatprep.subr.mxu0 0.0
    %1525 = vmatpush2.msra.mxu0 0.0
    %1526 = vmatprep.subr.mxu0 0.0
    %1527 = vmatpush2.msra.mxu0 0.0
    %1528 = vmatprep.subr.mxu0 0.0
    %1529 = vmatpush2.msra.mxu0 0.0
    %1530 = vmatprep.subr.mxu0 0.0
    %1531 = vmatpush2.msra.mxu0 0.0
    %1532 = vmatprep.subr.mxu0 0.0
    %1533 = vmatpush2.msra.mxu0 0.0
    %1534 = vmatprep.subr.mxu0 0.0
    %1535 = vmatpush2.msra.mxu0 0.0
    %1536 = vmatprep.subr.mxu0 0.0
    %1537 = vmatpush2.msra.mxu0 0.0
    %1538 = vmatprep.subr.mxu0 0.0
    %1539 = vmatpush2.msra.mxu0 0.0
    %1540 = vmatprep.subr.mxu0 0.0
    %1541 = vmatpush2.msra.mxu0 0.0
    %1542 = vmatprep.subr.mxu0 0.0
    %1543 = vmatpush2.msra.mxu0 0.0
    %1544 = vmatprep.subr.mxu0 0.0
    %1545 = vmatpush2.msra.mxu0 0.0
    %1546 = vmatprep.subr.mxu0 0.0
    %1547 = vmatpush2.msra.mxu0 0.0
    %1548 = vmatprep.subr.mxu0 0.0
    %1549 = vmatpush2.msra.mxu0 0.0
    %1550 = vmatprep.subr.mxu0 0.0
    %1551 = vmatpush2.msra.mxu0 0.0
    %1552 = vmatprep.mubr.f32.mxu0 0.0
    %1553 = vmatmul.mubr.f32.gmra.mxu0 %v1484
    %v1554 = vpop.f32.mrf.mxu0
    %v1555 = vadd.f32 %v1478, %v1554
    %v1556 = vpop.f32.mrf.mxu0
    %1557 = vmatprep.mubr.f32.mxu0 0.0
    %1558 = vmatmul.mubr.f32.gmra.mxu0 %v1486
    %v1559 = vpop.f32.mrf.mxu0
    %v1560 = vadd.f32 %v1478, %v1559
    %v1561 = vpop.f32.mrf.mxu0
    %1562 = vdwg.mxu0
    %1563 = vset.pattern.permute.xlu0 9
    %1564 = vperm.xlu0 %1563, %v60
    %v1565 = vpop.permute.xlu0 %1564
    %1567 = vset.pattern.permute.xlu0 9
    %1568 = vperm.xlu0 %1567, %v61
    %v1569 = vpop.permute.xlu0 %1568
    %v1571 = vmul.f32 %v1565, %v1555
    %v1572 = vmul.f32 %v1569, %v1560
    %v1573 = vadd.f32 %v1461, %v1571
    %v1574 = vadd.f32 %v1462, %v1572
    %s1575 = scalar_lea.vmem %s5, 640
    %v1576 = vld [vmem:[%s1575] sm:$0xff]
    %v1577 = vld [vmem:[%s1575 + $0x8] sm:$0xff]
    %v1578 = vld [vmem:[%s1575 + $0x10] sm:$0xff]
    %v1579 = vld [vmem:[%s1575 + $0x18] sm:$0xff]
    %v1580 = vld [vmem:[%s1575 + $0x20] sm:$0xff]
    %v1581 = vld [vmem:[%s1575 + $0x28] sm:$0xff]
    %v1582 = vld [vmem:[%s1575 + $0x30] sm:$0xff]
    %v1583 = vld [vmem:[%s1575 + $0x38] sm:$0xff]
    %s1584 = scalar_lea.vmem %s6, 10
    %v1585 = vld [vmem:[%s1584] sm:$0x1]
    %v1587 = vlaneseq
    %v1588 = vshrl.u32 %v1587, 7
    %v1589 = vsub.s32 0, %v1588
    %v1590 = vrot.slane %v1585, %v1589
    %v1593 = vsel %vm479, %v457, 0
    %v1596 = vsel %vm479, %v463, 0
    %1598 = vmatprep.subr.mxu0 0.0
    %1599 = vmatpush1.msra.mxu0 0.0
    %1600 = vmatprep.subr.mxu0 0.0
    %1601 = vmatpush1.msra.mxu0 0.0
    %1602 = vmatprep.subr.mxu0 0.0
    %1603 = vmatpush1.msra.mxu0 0.0
    %1604 = vmatprep.subr.mxu0 0.0
    %1605 = vmatpush1.msra.mxu0 0.0
    %1606 = vmatprep.subr.mxu0 0.0
    %1607 = vmatpush1.msra.mxu0 0.0
    %1608 = vmatprep.subr.mxu0 0.0
    %1609 = vmatpush1.msra.mxu0 0.0
    %1610 = vmatprep.subr.mxu0 0.0
    %1611 = vmatpush1.msra.mxu0 0.0
    %1612 = vmatprep.subr.mxu0 0.0
    %1613 = vmatpush1.msra.mxu0 0.0
    %1614 = vmatprep.subr.mxu0 0.0
    %1615 = vmatpush1.msra.mxu0 %v1583
    %1616 = vmatprep.subr.mxu0 0.0
    %1617 = vmatpush1.msra.mxu0 %v1582
    %1618 = vmatprep.subr.mxu0 0.0
    %1619 = vmatpush1.msra.mxu0 %v1581
    %1620 = vmatprep.subr.mxu0 0.0
    %1621 = vmatpush1.msra.mxu0 %v1580
    %1622 = vmatprep.subr.mxu0 0.0
    %1623 = vmatpush1.msra.mxu0 %v1579
    %1624 = vmatprep.subr.mxu0 0.0
    %1625 = vmatpush1.msra.mxu0 %v1578
    %1626 = vmatprep.subr.mxu0 0.0
    %1627 = vmatpush1.msra.mxu0 %v1577
    %1628 = vmatprep.subr.mxu0 0.0
    %1629 = vmatpush1.msra.mxu0 %v1576
    %1630 = vmatprep.subr.mxu0 0.0
    %1631 = vmatpush2.msra.mxu0 0.0
    %1632 = vmatprep.subr.mxu0 0.0
    %1633 = vmatpush2.msra.mxu0 0.0
    %1634 = vmatprep.subr.mxu0 0.0
    %1635 = vmatpush2.msra.mxu0 0.0
    %1636 = vmatprep.subr.mxu0 0.0
    %1637 = vmatpush2.msra.mxu0 0.0
    %1638 = vmatprep.subr.mxu0 0.0
    %1639 = vmatpush2.msra.mxu0 0.0
    %1640 = vmatprep.subr.mxu0 0.0
    %1641 = vmatpush2.msra.mxu0 0.0
    %1642 = vmatprep.subr.mxu0 0.0
    %1643 = vmatpush2.msra.mxu0 0.0
    %1644 = vmatprep.subr.mxu0 0.0
    %1645 = vmatpush2.msra.mxu0 0.0
    %1646 = vmatprep.subr.mxu0 0.0
    %1647 = vmatpush2.msra.mxu0 0.0
    %1648 = vmatprep.subr.mxu0 0.0
    %1649 = vmatpush2.msra.mxu0 0.0
    %1650 = vmatprep.subr.mxu0 0.0
    %1651 = vmatpush2.msra.mxu0 0.0
    %1652 = vmatprep.subr.mxu0 0.0
    %1653 = vmatpush2.msra.mxu0 0.0
    %1654 = vmatprep.subr.mxu0 0.0
    %1655 = vmatpush2.msra.mxu0 0.0
    %1656 = vmatprep.subr.mxu0 0.0
    %1657 = vmatpush2.msra.mxu0 0.0
    %1658 = vmatprep.subr.mxu0 0.0
    %1659 = vmatpush2.msra.mxu0 0.0
    %1660 = vmatprep.subr.mxu0 0.0
    %1661 = vmatpush2.msra.mxu0 0.0
    %1662 = vmatprep.mubr.f32.mxu0 0.0
    %1663 = vmatmul.mubr.f32.gmra.mxu0 %v1593
    %v1664 = vpop.f32.mrf.mxu0
    %v1665 = vadd.f32 %v1590, %v1664
    %v1666 = vpop.f32.mrf.mxu0
    %1667 = vmatprep.mubr.f32.mxu0 0.0
    %1668 = vmatmul.mubr.f32.gmra.mxu0 %v1596
    %v1669 = vpop.f32.mrf.mxu0
    %v1670 = vadd.f32 %v1590, %v1669
    %v1671 = vpop.f32.mrf.mxu0
    %1672 = vdwg.mxu0
    %1673 = vset.pattern.permute.xlu0 10
    %1674 = vperm.xlu0 %1673, %v60
    %v1675 = vpop.permute.xlu0 %1674
    %1677 = vset.pattern.permute.xlu0 10
    %1678 = vperm.xlu0 %1677, %v61
    %v1679 = vpop.permute.xlu0 %1678
    %v1681 = vmul.f32 %v1675, %v1665
    %v1682 = vmul.f32 %v1679, %v1670
    %v1683 = vadd.f32 %v1573, %v1681
    %v1684 = vadd.f32 %v1574, %v1682
    %s1685 = scalar_lea.vmem %s5, 704
    %v1686 = vld [vmem:[%s1685] sm:$0xff]
    %v1687 = vld [vmem:[%s1685 + $0x8] sm:$0xff]
    %v1688 = vld [vmem:[%s1685 + $0x10] sm:$0xff]
    %v1689 = vld [vmem:[%s1685 + $0x18] sm:$0xff]
    %v1690 = vld [vmem:[%s1685 + $0x20] sm:$0xff]
    %v1691 = vld [vmem:[%s1685 + $0x28] sm:$0xff]
    %v1692 = vld [vmem:[%s1685 + $0x30] sm:$0xff]
    %v1693 = vld [vmem:[%s1685 + $0x38] sm:$0xff]
    %s1694 = scalar_lea.vmem %s6, 11
    %v1695 = vld [vmem:[%s1694] sm:$0x1]
    %v1697 = vlaneseq
    %v1698 = vshrl.u32 %v1697, 7
    %v1699 = vsub.s32 0, %v1698
    %v1700 = vrot.slane %v1695, %v1699
    %1702 = vrot.lane.b32.xlu0 %v457, 64
    %v1703 = vpop.permute.xlu0 %1702
    %1704 = vrot.lane.b32.xlu0 %v463, 64
    %v1705 = vpop.permute.xlu0 %1704
    %v1706 = vsel %vm479, %v1703, 0
    %v1708 = vsel %vm479, %v1705, 0
    %1710 = vmatprep.subr.mxu0 0.0
    %1711 = vmatpush1.msra.mxu0 0.0
    %1712 = vmatprep.subr.mxu0 0.0
    %1713 = vmatpush1.msra.mxu0 0.0
    %1714 = vmatprep.subr.mxu0 0.0
    %1715 = vmatpush1.msra.mxu0 0.0
    %1716 = vmatprep.subr.mxu0 0.0
    %1717 = vmatpush1.msra.mxu0 0.0
    %1718 = vmatprep.subr.mxu0 0.0
    %1719 = vmatpush1.msra.mxu0 0.0
    %1720 = vmatprep.subr.mxu0 0.0
    %1721 = vmatpush1.msra.mxu0 0.0
    %1722 = vmatprep.subr.mxu0 0.0
    %1723 = vmatpush1.msra.mxu0 0.0
    %1724 = vmatprep.subr.mxu0 0.0
    %1725 = vmatpush1.msra.mxu0 0.0
    %1726 = vmatprep.subr.mxu0 0.0
    %1727 = vmatpush1.msra.mxu0 %v1693
    %1728 = vmatprep.subr.mxu0 0.0
    %1729 = vmatpush1.msra.mxu0 %v1692
    %1730 = vmatprep.subr.mxu0 0.0
    %1731 = vmatpush1.msra.mxu0 %v1691
    %1732 = vmatprep.subr.mxu0 0.0
    %1733 = vmatpush1.msra.mxu0 %v1690
    %1734 = vmatprep.subr.mxu0 0.0
    %1735 = vmatpush1.msra.mxu0 %v1689
    %1736 = vmatprep.subr.mxu0 0.0
    %1737 = vmatpush1.msra.mxu0 %v1688
    %1738 = vmatprep.subr.mxu0 0.0
    %1739 = vmatpush1.msra.mxu0 %v1687
    %1740 = vmatprep.subr.mxu0 0.0
    %1741 = vmatpush1.msra.mxu0 %v1686
    %1742 = vmatprep.subr.mxu0 0.0
    %1743 = vmatpush2.msra.mxu0 0.0
    %1744 = vmatprep.subr.mxu0 0.0
    %1745 = vmatpush2.msra.mxu0 0.0
    %1746 = vmatprep.subr.mxu0 0.0
    %1747 = vmatpush2.msra.mxu0 0.0
    %1748 = vmatprep.subr.mxu0 0.0
    %1749 = vmatpush2.msra.mxu0 0.0
    %1750 = vmatprep.subr.mxu0 0.0
    %1751 = vmatpush2.msra.mxu0 0.0
    %1752 = vmatprep.subr.mxu0 0.0
    %1753 = vmatpush2.msra.mxu0 0.0
    %1754 = vmatprep.subr.mxu0 0.0
    %1755 = vmatpush2.msra.mxu0 0.0
    %1756 = vmatprep.subr.mxu0 0.0
    %1757 = vmatpush2.msra.mxu0 0.0
    %1758 = vmatprep.subr.mxu0 0.0
    %1759 = vmatpush2.msra.mxu0 0.0
    %1760 = vmatprep.subr.mxu0 0.0
    %1761 = vmatpush2.msra.mxu0 0.0
    %1762 = vmatprep.subr.mxu0 0.0
    %1763 = vmatpush2.msra.mxu0 0.0
    %1764 = vmatprep.subr.mxu0 0.0
    %1765 = vmatpush2.msra.mxu0 0.0
    %1766 = vmatprep.subr.mxu0 0.0
    %1767 = vmatpush2.msra.mxu0 0.0
    %1768 = vmatprep.subr.mxu0 0.0
    %1769 = vmatpush2.msra.mxu0 0.0
    %1770 = vmatprep.subr.mxu0 0.0
    %1771 = vmatpush2.msra.mxu0 0.0
    %1772 = vmatprep.subr.mxu0 0.0
    %1773 = vmatpush2.msra.mxu0 0.0
    %1774 = vmatprep.mubr.f32.mxu0 0.0
    %1775 = vmatmul.mubr.f32.gmra.mxu0 %v1706
    %v1776 = vpop.f32.mrf.mxu0
    %v1777 = vadd.f32 %v1700, %v1776
    %v1778 = vpop.f32.mrf.mxu0
    %1779 = vmatprep.mubr.f32.mxu0 0.0
    %1780 = vmatmul.mubr.f32.gmra.mxu0 %v1708
    %v1781 = vpop.f32.mrf.mxu0
    %v1782 = vadd.f32 %v1700, %v1781
    %v1783 = vpop.f32.mrf.mxu0
    %1784 = vdwg.mxu0
    %1785 = vset.pattern.permute.xlu0 11
    %1786 = vperm.xlu0 %1785, %v60
    %v1787 = vpop.permute.xlu0 %1786
    %1789 = vset.pattern.permute.xlu0 11
    %1790 = vperm.xlu0 %1789, %v61
    %v1791 = vpop.permute.xlu0 %1790
    %v1793 = vmul.f32 %v1787, %v1777
    %v1794 = vmul.f32 %v1791, %v1782
    %v1795 = vadd.f32 %v1683, %v1793
    %v1796 = vadd.f32 %v1684, %v1794
    %v1797 = vsel %vm118, %v1795, 0.0
    %v1798 = vrot.slane %v1797, 4
    %v1799 = vadd.f32 %v1797, %v1798
    %v1800 = vrot.slane %v1799, 2
    %v1801 = vadd.f32 %v1799, %v1800
    %v1802 = vrot.slane %v1801, 1
    %v1803 = vadd.f32 %v1801, %v1802
    %v1804 = vrcp.pop 8.0
    %v1805 = vmul.f32 %v1803, %v1804
    %v1806 = vsel %vm118, %v1796, 0.0
    %v1807 = vrot.slane %v1806, 4
    %v1808 = vadd.f32 %v1806, %v1807
    %v1809 = vrot.slane %v1808, 2
    %v1810 = vadd.f32 %v1808, %v1809
    %v1811 = vrot.slane %v1810, 1
    %v1812 = vadd.f32 %v1810, %v1811
    %v1813 = vmul.f32 %v1812, %v1804
    %vm1814 = vcmask 1040384
    %v1815 = vsel %vm1814, %v1805, %v1813
    %v1816 = vld [vmem:[%s7] sm:$0xff]
    %v1817 = vld [vmem:[%s7 + $0x8] sm:$0xff]
    %v1818 = vld [vmem:[%s7 + $0x10] sm:$0xff]
    %v1819 = vld [vmem:[%s7 + $0x18] sm:$0xff]
    %v1820 = vld [vmem:[%s8] sm:$0x1]
    %v1822 = vlaneseq
    %v1823 = vshrl.u32 %v1822, 7
    %v1824 = vsub.s32 0, %v1823
    %v1825 = vrot.slane %v1820, %v1824
    %v1828 = vsel %vm118, %v1815, 0
    %1830 = vmatprep.subr.mxu0 0.0
    %1831 = vmatpush1.msra.mxu0 0.0
    %1832 = vmatprep.subr.mxu0 0.0
    %1833 = vmatpush1.msra.mxu0 0.0
    %1834 = vmatprep.subr.mxu0 0.0
    %1835 = vmatpush1.msra.mxu0 0.0
    %1836 = vmatprep.subr.mxu0 0.0
    %1837 = vmatpush1.msra.mxu0 0.0
    %1838 = vmatprep.subr.mxu0 0.0
    %1839 = vmatpush1.msra.mxu0 0.0
    %1840 = vmatprep.subr.mxu0 0.0
    %1841 = vmatpush1.msra.mxu0 0.0
    %1842 = vmatprep.subr.mxu0 0.0
    %1843 = vmatpush1.msra.mxu0 0.0
    %1844 = vmatprep.subr.mxu0 0.0
    %1845 = vmatpush1.msra.mxu0 0.0
    %1846 = vmatprep.subr.mxu0 0.0
    %1847 = vmatpush1.msra.mxu0 0.0
    %1848 = vmatprep.subr.mxu0 0.0
    %1849 = vmatpush1.msra.mxu0 0.0
    %1850 = vmatprep.subr.mxu0 0.0
    %1851 = vmatpush1.msra.mxu0 0.0
    %1852 = vmatprep.subr.mxu0 0.0
    %1853 = vmatpush1.msra.mxu0 0.0
    %1854 = vmatprep.subr.mxu0 0.0
    %1855 = vmatpush1.msra.mxu0 %v1819
    %1856 = vmatprep.subr.mxu0 0.0
    %1857 = vmatpush1.msra.mxu0 %v1818
    %1858 = vmatprep.subr.mxu0 0.0
    %1859 = vmatpush1.msra.mxu0 %v1817
    %1860 = vmatprep.subr.mxu0 0.0
    %1861 = vmatpush1.msra.mxu0 %v1816
    %1862 = vmatprep.subr.mxu0 0.0
    %1863 = vmatpush2.msra.mxu0 0.0
    %1864 = vmatprep.subr.mxu0 0.0
    %1865 = vmatpush2.msra.mxu0 0.0
    %1866 = vmatprep.subr.mxu0 0.0
    %1867 = vmatpush2.msra.mxu0 0.0
    %1868 = vmatprep.subr.mxu0 0.0
    %1869 = vmatpush2.msra.mxu0 0.0
    %1870 = vmatprep.subr.mxu0 0.0
    %1871 = vmatpush2.msra.mxu0 0.0
    %1872 = vmatprep.subr.mxu0 0.0
    %1873 = vmatpush2.msra.mxu0 0.0
    %1874 = vmatprep.subr.mxu0 0.0
    %1875 = vmatpush2.msra.mxu0 0.0
    %1876 = vmatprep.subr.mxu0 0.0
    %1877 = vmatpush2.msra.mxu0 0.0
    %1878 = vmatprep.subr.mxu0 0.0
    %1879 = vmatpush2.msra.mxu0 0.0
    %1880 = vmatprep.subr.mxu0 0.0
    %1881 = vmatpush2.msra.mxu0 0.0
    %1882 = vmatprep.subr.mxu0 0.0
    %1883 = vmatpush2.msra.mxu0 0.0
    %1884 = vmatprep.subr.mxu0 0.0
    %1885 = vmatpush2.msra.mxu0 0.0
    %1886 = vmatprep.subr.mxu0 0.0
    %1887 = vmatpush2.msra.mxu0 0.0
    %1888 = vmatprep.subr.mxu0 0.0
    %1889 = vmatpush2.msra.mxu0 0.0
    %1890 = vmatprep.subr.mxu0 0.0
    %1891 = vmatpush2.msra.mxu0 0.0
    %1892 = vmatprep.subr.mxu0 0.0
    %1893 = vmatpush2.msra.mxu0 0.0
    %1894 = vmatprep.mubr.f32.mxu0 0.0
    %1895 = vmatmul.mubr.f32.gmra.mxu0 %v1828
    %v1896 = vpop.f32.mrf.mxu0
    %v1897 = vadd.f32 %v1825, %v1896
    %v1898 = vpop.f32.mrf.mxu0
    %1899 = vdwg.mxu0
    %v1900 = vmax.f32 %v1897, 0.0
    %v1901 = vld [vmem:[%s9] sm:$0xff]
    %v1902 = vld [vmem:[%s9 + $0x8] sm:$0xff]
    %v1903 = vld [vmem:[#allocation2] sm:$0x1]
    %v1905 = vlaneseq
    %v1906 = vshrl.u32 %v1905, 7
    %v1907 = vsub.s32 0, %v1906
    %v1908 = vrot.slane %v1903, %v1907
    %vm1910 = vcmask 130048
    %v1912 = vsel %vm1910, %v1900, 0
    %1914 = vmatprep.subr.mxu0 0.0
    %1915 = vmatpush1.msra.mxu0 0.0
    %1916 = vmatprep.subr.mxu0 0.0
    %1917 = vmatpush1.msra.mxu0 0.0
    %1918 = vmatprep.subr.mxu0 0.0
    %1919 = vmatpush1.msra.mxu0 0.0
    %1920 = vmatprep.subr.mxu0 0.0
    %1921 = vmatpush1.msra.mxu0 0.0
    %1922 = vmatprep.subr.mxu0 0.0
    %1923 = vmatpush1.msra.mxu0 0.0
    %1924 = vmatprep.subr.mxu0 0.0
    %1925 = vmatpush1.msra.mxu0 0.0
    %1926 = vmatprep.subr.mxu0 0.0
    %1927 = vmatpush1.msra.mxu0 0.0
    %1928 = vmatprep.subr.mxu0 0.0
    %1929 = vmatpush1.msra.mxu0 0.0
    %1930 = vmatprep.subr.mxu0 0.0
    %1931 = vmatpush1.msra.mxu0 0.0
    %1932 = vmatprep.subr.mxu0 0.0
    %1933 = vmatpush1.msra.mxu0 0.0
    %1934 = vmatprep.subr.mxu0 0.0
    %1935 = vmatpush1.msra.mxu0 0.0
    %1936 = vmatprep.subr.mxu0 0.0
    %1937 = vmatpush1.msra.mxu0 0.0
    %1938 = vmatprep.subr.mxu0 0.0
    %1939 = vmatpush1.msra.mxu0 0.0
    %1940 = vmatprep.subr.mxu0 0.0
    %1941 = vmatpush1.msra.mxu0 0.0
    %1942 = vmatprep.subr.mxu0 0.0
    %1943 = vmatpush1.msra.mxu0 %v1902
    %1944 = vmatprep.subr.mxu0 0.0
    %1945 = vmatpush1.msra.mxu0 %v1901
    %1946 = vmatprep.subr.mxu0 0.0
    %1947 = vmatpush2.msra.mxu0 0.0
    %1948 = vmatprep.subr.mxu0 0.0
    %1949 = vmatpush2.msra.mxu0 0.0
    %1950 = vmatprep.subr.mxu0 0.0
    %1951 = vmatpush2.msra.mxu0 0.0
    %1952 = vmatprep.subr.mxu0 0.0
    %1953 = vmatpush2.msra.mxu0 0.0
    %1954 = vmatprep.subr.mxu0 0.0
    %1955 = vmatpush2.msra.mxu0 0.0
    %1956 = vmatprep.subr.mxu0 0.0
    %1957 = vmatpush2.msra.mxu0 0.0
    %1958 = vmatprep.subr.mxu0 0.0
    %1959 = vmatpush2.msra.mxu0 0.0
    %1960 = vmatprep.subr.mxu0 0.0
    %1961 = vmatpush2.msra.mxu0 0.0
    %1962 = vmatprep.subr.mxu0 0.0
    %1963 = vmatpush2.msra.mxu0 0.0
    %1964 = vmatprep.subr.mxu0 0.0
    %1965 = vmatpush2.msra.mxu0 0.0
    %1966 = vmatprep.subr.mxu0 0.0
    %1967 = vmatpush2.msra.mxu0 0.0
    %1968 = vmatprep.subr.mxu0 0.0
    %1969 = vmatpush2.msra.mxu0 0.0
    %1970 = vmatprep.subr.mxu0 0.0
    %1971 = vmatpush2.msra.mxu0 0.0
    %1972 = vmatprep.subr.mxu0 0.0
    %1973 = vmatpush2.msra.mxu0 0.0
    %1974 = vmatprep.subr.mxu0 0.0
    %1975 = vmatpush2.msra.mxu0 0.0
    %1976 = vmatprep.subr.mxu0 0.0
    %1977 = vmatpush2.msra.mxu0 0.0
    %1978 = vmatprep.mubr.f32.mxu0 0.0
    %1979 = vmatmul.mubr.f32.gmra.mxu0 %v1912
    %v1980 = vpop.f32.mrf.mxu0
    %v1981 = vadd.f32 %v1908, %v1980
    %v1982 = vpop.f32.mrf.mxu0
    %1983 = vdwg.mxu0
    %v1984 = vxor.u32 %v1981, 2147483648
    %v1985 = vmul.f32 %v1984, 1.442695
    %v1986 = vpow.pop %v1985
    %v1987 = vadd.f32 %v1986, 1.0
    %v1988 = vrcp.pop %v1987
    %v1989 = vmul.f32 1.0, %v1988
    %vm1990 = vcmask 1024
    %1991 = vst.msk [vmem:[%s16] sm:$0x3] %vm1990, %v1989
    %vm1992 = vcmp.gt.f32.partialorder %v1989, 0.7
    %v1993 = vsel %vm1992, 1, 0
    %v1994 = vcvt.s32.f32 %v1993
    %v1995 = vmul.f32 %v1994, 0.8
    %v1996 = vsub.f32 1.0, %v1995
    %v1997 = vld [vmem:[%s1] sm:$0xff]
    %v1998 = vld [vmem:[%s1 + $0x8] sm:$0xff]
    %s2000 = vtos %v1996
    %v2001 = vstv %s2000
    %v2003 = vmul.f32 %v1795, %v2001
    %v2004 = vmul.f32 %v1796, %v2001
    %v2005 = vadd.f32 %v1997, %v2003
    %v2006 = vadd.f32 %v1998, %v2004
    %2007 = vst.msk [vmem:[#allocation4] sm:$0xff] %vm118, %v2005
    %2008 = vst.msk [vmem:[#allocation4 + $0x8] sm:$0xff] %vm118, %v2006
    %v2009 = vrot.slane %v1996, 1
    %s2010 = vtos %v2009
    %v2011 = vstv %s2010
    %v2013 = vmul.f32 %v1795, %v2011
    %v2014 = vmul.f32 %v1796, %v2011
    %v2015 = vadd.f32 %v1997, %v2013
    %v2016 = vadd.f32 %v1998, %v2014
    %s2017 = scalar_lea.vmem [#allocation4], 16
    %2018 = vst.msk [vmem:[%s2017] sm:$0xff] %vm118, %v2015
    %2019 = vst.msk [vmem:[%s2017 + $0x8] sm:$0xff] %vm118, %v2016
    %v2020 = vadd.f32 %v1795, 0.0
    %v2021 = vadd.f32 %v2020, %v1796
    %v2022 = vrcp.pop 2.0
    %v2023 = vmul.f32 %v2021, %v2022
    %v2024 = vmul.f32 %v2023, %v2001
    %v2025 = vmul.f32 %v2023, %v2011
    %v2026 = vld [vmem:[%s11] sm:$0xff]
    %v2027 = vld [vmem:[%s11 + $0x8] sm:$0xff]
    %v2028 = vld [vmem:[%s11 + $0x10] sm:$0xff]
    %v2029 = vld [vmem:[%s11 + $0x18] sm:$0xff]
    %v2030 = vld [vmem:[%s12] sm:$0x1]
    %v2032 = vlaneseq
    %v2033 = vshrl.u32 %v2032, 7
    %v2034 = vsub.s32 0, %v2033
    %v2035 = vrot.slane %v2030, %v2034
    %v2038 = vsel %vm118, %v2024, 0
    %v2041 = vsel %vm118, %v2025, 0
    %2043 = vmatprep.subr.mxu0 0.0
    %2044 = vmatpush1.msra.mxu0 0.0
    %2045 = vmatprep.subr.mxu0 0.0
    %2046 = vmatpush1.msra.mxu0 0.0
    %2047 = vmatprep.subr.mxu0 0.0
    %2048 = vmatpush1.msra.mxu0 0.0
    %2049 = vmatprep.subr.mxu0 0.0
    %2050 = vmatpush1.msra.mxu0 0.0
    %2051 = vmatprep.subr.mxu0 0.0
    %2052 = vmatpush1.msra.mxu0 0.0
    %2053 = vmatprep.subr.mxu0 0.0
    %2054 = vmatpush1.msra.mxu0 0.0
    %2055 = vmatprep.subr.mxu0 0.0
    %2056 = vmatpush1.msra.mxu0 0.0
    %2057 = vmatprep.subr.mxu0 0.0
    %2058 = vmatpush1.msra.mxu0 0.0
    %2059 = vmatprep.subr.mxu0 0.0
    %2060 = vmatpush1.msra.mxu0 0.0
    %2061 = vmatprep.subr.mxu0 0.0
    %2062 = vmatpush1.msra.mxu0 0.0
    %2063 = vmatprep.subr.mxu0 0.0
    %2064 = vmatpush1.msra.mxu0 0.0
    %2065 = vmatprep.subr.mxu0 0.0
    %2066 = vmatpush1.msra.mxu0 0.0
    %2067 = vmatprep.subr.mxu0 0.0
    %2068 = vmatpush1.msra.mxu0 %v2029
    %2069 = vmatprep.subr.mxu0 0.0
    %2070 = vmatpush1.msra.mxu0 %v2028
    %2071 = vmatprep.subr.mxu0 0.0
    %2072 = vmatpush1.msra.mxu0 %v2027
    %2073 = vmatprep.subr.mxu0 0.0
    %2074 = vmatpush1.msra.mxu0 %v2026
    %2075 = vmatprep.subr.mxu0 0.0
    %2076 = vmatpush2.msra.mxu0 0.0
    %2077 = vmatprep.subr.mxu0 0.0
    %2078 = vmatpush2.msra.mxu0 0.0
    %2079 = vmatprep.subr.mxu0 0.0
    %2080 = vmatpush2.msra.mxu0 0.0
    %2081 = vmatprep.subr.mxu0 0.0
    %2082 = vmatpush2.msra.mxu0 0.0
    %2083 = vmatprep.subr.mxu0 0.0
    %2084 = vmatpush2.msra.mxu0 0.0
    %2085 = vmatprep.subr.mxu0 0.0
    %2086 = vmatpush2.msra.mxu0 0.0
    %2087 = vmatprep.subr.mxu0 0.0
    %2088 = vmatpush2.msra.mxu0 0.0
    %2089 = vmatprep.subr.mxu0 0.0
    %2090 = vmatpush2.msra.mxu0 0.0
    %2091 = vmatprep.subr.mxu0 0.0
    %2092 = vmatpush2.msra.mxu0 0.0
    %2093 = vmatprep.subr.mxu0 0.0
    %2094 = vmatpush2.msra.mxu0 0.0
    %2095 = vmatprep.subr.mxu0 0.0
    %2096 = vmatpush2.msra.mxu0 0.0
    %2097 = vmatprep.subr.mxu0 0.0
    %2098 = vmatpush2.msra.mxu0 0.0
    %2099 = vmatprep.subr.mxu0 0.0
    %2100 = vmatpush2.msra.mxu0 0.0
    %2101 = vmatprep.subr.mxu0 0.0
    %2102 = vmatpush2.msra.mxu0 0.0
    %2103 = vmatprep.subr.mxu0 0.0
    %2104 = vmatpush2.msra.mxu0 0.0
    %2105 = vmatprep.subr.mxu0 0.0
    %2106 = vmatpush2.msra.mxu0 0.0
    %2107 = vmatprep.mubr.f32.mxu0 0.0
    %2108 = vmatmul.mubr.f32.gmra.mxu0 %v2038
    %v2109 = vpop.f32.mrf.mxu0
    %v2110 = vadd.f32 %v2035, %v2109
    %v2111 = vpop.f32.mrf.mxu0
    %2112 = vmatprep.mubr.f32.mxu0 0.0
    %2113 = vmatmul.mubr.f32.gmra.mxu0 %v2041
    %v2114 = vpop.f32.mrf.mxu0
    %v2115 = vadd.f32 %v2035, %v2114
    %v2116 = vpop.f32.mrf.mxu0
    %2117 = vdwg.mxu0
    %v2118 = vmax.f32 %v2110, 0.0
    %v2119 = vmax.f32 %v2115, 0.0
    %v2120 = vld [vmem:[%s13] sm:$0xff]
    %v2121 = vld [vmem:[#allocation3] sm:$0x1]
    %v2123 = vlaneseq
    %v2124 = vshrl.u32 %v2123, 7
    %v2125 = vsub.s32 0, %v2124
    %v2126 = vrot.slane %v2121, %v2125
    %vm2128 = vcmask 64512
    %v2130 = vsel %vm2128, %v2118, 0
    %v2133 = vsel %vm2128, %v2119, 0
    %2135 = vmatprep.subr.mxu0 0.0
    %2136 = vmatpush1.msra.mxu0 0.0
    %2137 = vmatprep.subr.mxu0 0.0
    %2138 = vmatpush1.msra.mxu0 0.0
    %2139 = vmatprep.subr.mxu0 0.0
    %2140 = vmatpush1.msra.mxu0 0.0
    %2141 = vmatprep.subr.mxu0 0.0
    %2142 = vmatpush1.msra.mxu0 0.0
    %2143 = vmatprep.subr.mxu0 0.0
    %2144 = vmatpush1.msra.mxu0 0.0
    %2145 = vmatprep.subr.mxu0 0.0
    %2146 = vmatpush1.msra.mxu0 0.0
    %2147 = vmatprep.subr.mxu0 0.0
    %2148 = vmatpush1.msra.mxu0 0.0
    %2149 = vmatprep.subr.mxu0 0.0
    %2150 = vmatpush1.msra.mxu0 0.0
    %2151 = vmatprep.subr.mxu0 0.0
    %2152 = vmatpush1.msra.mxu0 0.0
    %2153 = vmatprep.subr.mxu0 0.0
    %2154 = vmatpush1.msra.mxu0 0.0
    %2155 = vmatprep.subr.mxu0 0.0
    %2156 = vmatpush1.msra.mxu0 0.0
    %2157 = vmatprep.subr.mxu0 0.0
    %2158 = vmatpush1.msra.mxu0 0.0
    %2159 = vmatprep.subr.mxu0 0.0
    %2160 = vmatpush1.msra.mxu0 0.0
    %2161 = vmatprep.subr.mxu0 0.0
    %2162 = vmatpush1.msra.mxu0 0.0
    %2163 = vmatprep.subr.mxu0 0.0
    %2164 = vmatpush1.msra.mxu0 0.0
    %2165 = vmatprep.subr.mxu0 0.0
    %2166 = vmatpush1.msra.mxu0 %v2120
    %2167 = vmatprep.subr.mxu0 0.0
    %2168 = vmatpush2.msra.mxu0 0.0
    %2169 = vmatprep.subr.mxu0 0.0
    %2170 = vmatpush2.msra.mxu0 0.0
    %2171 = vmatprep.subr.mxu0 0.0
    %2172 = vmatpush2.msra.mxu0 0.0
    %2173 = vmatprep.subr.mxu0 0.0
    %2174 = vmatpush2.msra.mxu0 0.0
    %2175 = vmatprep.subr.mxu0 0.0
    %2176 = vmatpush2.msra.mxu0 0.0
    %2177 = vmatprep.subr.mxu0 0.0
    %2178 = vmatpush2.msra.mxu0 0.0
    %2179 = vmatprep.subr.mxu0 0.0
    %2180 = vmatpush2.msra.mxu0 0.0
    %2181 = vmatprep.subr.mxu0 0.0
    %2182 = vmatpush2.msra.mxu0 0.0
    %2183 = vmatprep.subr.mxu0 0.0
    %2184 = vmatpush2.msra.mxu0 0.0
    %2185 = vmatprep.subr.mxu0 0.0
    %2186 = vmatpush2.msra.mxu0 0.0
    %2187 = vmatprep.subr.mxu0 0.0
    %2188 = vmatpush2.msra.mxu0 0.0
    %2189 = vmatprep.subr.mxu0 0.0
    %2190 = vmatpush2.msra.mxu0 0.0
    %2191 = vmatprep.subr.mxu0 0.0
    %2192 = vmatpush2.msra.mxu0 0.0
    %2193 = vmatprep.subr.mxu0 0.0
    %2194 = vmatpush2.msra.mxu0 0.0
    %2195 = vmatprep.subr.mxu0 0.0
    %2196 = vmatpush2.msra.mxu0 0.0
    %2197 = vmatprep.subr.mxu0 0.0
    %2198 = vmatpush2.msra.mxu0 0.0
    %2199 = vmatprep.mubr.f32.mxu0 0.0
    %2200 = vmatmul.mubr.f32.gmra.mxu0 %v2130
    %v2201 = vpop.f32.mrf.mxu0
    %v2202 = vadd.f32 %v2126, %v2201
    %v2203 = vpop.f32.mrf.mxu0
    %2204 = vmatprep.mubr.f32.mxu0 0.0
    %2205 = vmatmul.mubr.f32.gmra.mxu0 %v2133
    %v2206 = vpop.f32.mrf.mxu0
    %v2207 = vadd.f32 %v2126, %v2206
    %v2208 = vpop.f32.mrf.mxu0
    %2209 = vdwg.mxu0
    %v2210 = vxor.u32 %v2202, 2147483648
    %v2211 = vxor.u32 %v2207, 2147483648
    %v2212 = vmul.f32 %v2210, 1.442695
    %v2213 = vpow.pop %v2212
    %v2214 = vmul.f32 %v2211, 1.442695
    %v2215 = vpow.pop %v2214
    %v2216 = vadd.f32 %v2213, 1.0
    %v2217 = vadd.f32 %v2215, 1.0
    %v2218 = vrcp.pop %v2216
    %v2219 = vmul.f32 1.0, %v2218
    %v2220 = vrcp.pop %v2217
    %v2221 = vmul.f32 1.0, %v2220
    %vm2222 = vcmask 7168
    %2223 = vst.msk [vmem:[%s17] sm:$0xff] %vm2222, %v2219
    %2224 = vst.msk [vmem:[%s17 + $0x8] sm:$0xff] %vm2222, %v2221
    // Predicated region
    $region62: #{transformer_block.3} parent=1 // pred_check
      _
    $region63: #{transformer_block.3} parent=1 // pred_check_branch
      %2226 = sbr.rel (0) target = $region65
    $region64: #{transformer_block.3} parent=1 // pred_region
      %s2228 = ssub.s32 512, 512
      %2229 = vsyncadd [#allocation5], %s2228
      %s2230 = sshll.u32 [#allocation4], 4
      %s2231 = int_to_ptr.vmem [resolvable:$true] %s2230
      %2236 = dma.vmem_to_hbm [thread:$0]  %s2231, 512, %s15, [#allocation5], 128, 128, 8
    $region65: #{transformer_block.3} parent=1 // pred_fallthru
      _
    // Predicated region
    $region66: #{transformer_block.3} parent=1 // pred_check
      _
    $region67: #{transformer_block.3} parent=1 // pred_check_branch
      %2238 = sbr.rel (0) target = $region69
    $region68: #{transformer_block.3} parent=1 // pred_region
      _
    $region69: #{transformer_block.3} parent=1 // pred_fallthru
      _
    // Predicated region
    $region70: #{transformer_block.3} parent=1 // pred_check
      _
    $region71: #{transformer_block.3} parent=1 // pred_check_branch
      %2240 = sbr.rel (0) target = $region73
    $region72: #{transformer_block.3} parent=1 // pred_region
      _
    $region73: #{transformer_block.3} parent=1 // pred_fallthru
      _
    // Predicated region
    $region74: #{transformer_block.3} parent=1 // pred_check
      _
    $region75: #{transformer_block.3} parent=1 // pred_check_branch
      %2242 = sbr.rel (0) target = $region77
    $region76: #{transformer_block.3} parent=1 // pred_region
      %2243 = dma.done [#allocation5], 512
    $region77: #{transformer_block.3} parent=1 // pred_fallthru
      _
    // Predicated region
    $region78: #{transformer_block.3} parent=1 // pred_check
      _
    $region79: #{transformer_block.3} parent=1 // pred_check_branch
      %2245 = sbr.rel (0) target = $region81
    $region80: #{transformer_block.3} parent=1 // pred_region
      _
    $region81: #{transformer_block.3} parent=1 // pred_fallthru
      _
    // Predicated region
    $region82: #{transformer_block.3} parent=1 // pred_check
      _
    $region83: #{transformer_block.3} parent=1 // pred_check_branch
      %2247 = sbr.rel (0) target = $region85
    $region84: #{transformer_block.3} parent=1 // pred_region
      _
    $region85: #{transformer_block.3} parent=1 // pred_fallthru
      _
    %2248 = vsyncpa [#allocation5], 1

// kernel: transformer_block.2
$region0: #{transformer_block.2}
  #allocation0 [shape = 'u32[]', space=smem, size = 0x4, offset = 0x4, fixed_abs, tag = 'smem constant byte address 0x4 - core index']
  #allocation1 [shape = 'u32[144,128]{1,0:T(1,128)}', space=vmem, size = 0x12000, scoped, tag = 'internal scratch']
  %s0 = inlined_call_operand.vmem [shape: f32[4], index: 0, kind: input, shape index: {}]
  %s1 = inlined_call_operand.vmem [shape: f32[16,32], index: 1, kind: input, shape index: {}]
  %s2 = inlined_call_operand.vmem [shape: f32[1,32], index: 2, kind: input, shape index: {}]
  %s3 = inlined_call_operand.vmem [shape: f32[1,32], index: 3, kind: input, shape index: {}]
  %s4 = inlined_call_operand.vmem [shape: f32[32,96], index: 4, kind: input, shape index: {}]
  %s5 = inlined_call_operand.vmem [shape: f32[32,32], index: 5, kind: input, shape index: {}]
  %s6 = inlined_call_operand.vmem [shape: f32[8,8], index: 6, kind: input, shape index: {}]
  %s7 = inlined_call_operand.vmem [shape: f32[8,8], index: 7, kind: input, shape index: {}]
  %s8 = inlined_call_operand.vmem [shape: f32[32,13], index: 8, kind: input, shape index: {}]
  %s9 = inlined_call_operand.vmem [shape: f32[1,13], index: 9, kind: input, shape index: {}]
  %s10 = inlined_call_operand.vmem [shape: f32[16,32], index: 10, kind: output, shape index: {0}]
  %s11 = inlined_call_operand.vmem [shape: f32[16,32], index: 11, kind: output, shape index: {1}]
  %s12 = inlined_call_operand.vmem [shape: f32[16,13], index: 12, kind: output, shape index: {2}]
  %13 = xla_tuple %s10, %s11, %s12
  %s14 = sld [smem:[#allocation0]]
  $region70: #{transformer_block.2} parent=0
    _
  %s16 = ssub.s32 1, %s14
  %s17 = scalar_select 0, %s16, %s14
  $region1: #{transformer_block.2} parent=0
    #allocation2 [shape = 'u8[512]{0}', space=smem, size = 0x200, scoped, tag = 'input window, operand 0, single buffered']
    #allocation3 [shape = 's32[1]{0}', space=sflag, size = 0x4, scoped, tag = 'scoped memory for transformer_block.2']
    %18 = vsyncpa [#allocation3], 0
    // Predicated region
    $region2: #{transformer_block.2} parent=1 // pred_check
      _
    $region3: #{transformer_block.2} parent=1 // pred_check_branch
      %20 = sbr.rel (0) target = $region5
    $region4: #{transformer_block.2} parent=1 // pred_region
      %s22 = ssub.s32 16, 16
      %23 = vsyncadd [#allocation3], %s22
      %s25 = sshll.u32 %s0, 4
      %s26 = int_to_ptr.vmem [resolvable:$true] %s25
      %28 = dma.vmem_to_smem %s26, 16, [#allocation2], [#allocation3]
    $region5: #{transformer_block.2} parent=1 // pred_fallthru
      _
    // Predicated region
    $region6: #{transformer_block.2} parent=1 // pred_check
      _
    $region7: #{transformer_block.2} parent=1 // pred_check_branch
      %30 = sbr.rel (0) target = $region9
    $region8: #{transformer_block.2} parent=1 // pred_region
      _
    $region9: #{transformer_block.2} parent=1 // pred_fallthru
      _
    // Predicated region
    $region10: #{transformer_block.2} parent=1 // pred_check
      _
    $region11: #{transformer_block.2} parent=1 // pred_check_branch
      %32 = sbr.rel (0) target = $region13
    $region12: #{transformer_block.2} parent=1 // pred_region
      _
    $region13: #{transformer_block.2} parent=1 // pred_fallthru
      _
    // Predicated region
    $region14: #{transformer_block.2} parent=1 // pred_check
      _
    $region15: #{transformer_block.2} parent=1 // pred_check_branch
      %34 = sbr.rel (0) target = $region17
    $region16: #{transformer_block.2} parent=1 // pred_region
      _
    $region17: #{transformer_block.2} parent=1 // pred_fallthru
      _
    // Predicated region
    $region18: #{transformer_block.2} parent=1 // pred_check
      _
    $region19: #{transformer_block.2} parent=1 // pred_check_branch
      %36 = sbr.rel (0) target = $region21
    $region20: #{transformer_block.2} parent=1 // pred_region
      _
    $region21: #{transformer_block.2} parent=1 // pred_fallthru
      _
    // Predicated region
    $region22: #{transformer_block.2} parent=1 // pred_check
      _
    $region23: #{transformer_block.2} parent=1 // pred_check_branch
      %38 = sbr.rel (0) target = $region25
    $region24: #{transformer_block.2} parent=1 // pred_region
      _
    $region25: #{transformer_block.2} parent=1 // pred_fallthru
      _
    // Predicated region
    $region26: #{transformer_block.2} parent=1 // pred_check
      _
    $region27: #{transformer_block.2} parent=1 // pred_check_branch
      %40 = sbr.rel (0) target = $region29
    $region28: #{transformer_block.2} parent=1 // pred_region
      _
    $region29: #{transformer_block.2} parent=1 // pred_fallthru
      _
    // Predicated region
    $region30: #{transformer_block.2} parent=1 // pred_check
      _
    $region31: #{transformer_block.2} parent=1 // pred_check_branch
      %42 = sbr.rel (0) target = $region33
    $region32: #{transformer_block.2} parent=1 // pred_region
      _
    $region33: #{transformer_block.2} parent=1 // pred_fallthru
      _
    // Predicated region
    $region34: #{transformer_block.2} parent=1 // pred_check
      _
    $region35: #{transformer_block.2} parent=1 // pred_check_branch
      %44 = sbr.rel (0) target = $region37
    $region36: #{transformer_block.2} parent=1 // pred_region
      _
    $region37: #{transformer_block.2} parent=1 // pred_fallthru
      _
    // Predicated region
    $region38: #{transformer_block.2} parent=1 // pred_check
      _
    $region39: #{transformer_block.2} parent=1 // pred_check_branch
      %46 = sbr.rel (0) target = $region41
    $region40: #{transformer_block.2} parent=1 // pred_region
      _
    $region41: #{transformer_block.2} parent=1 // pred_fallthru
      _
    // Predicated region
    $region42: #{transformer_block.2} parent=1 // pred_check
      _
    $region43: #{transformer_block.2} parent=1 // pred_check_branch
      %48 = sbr.rel (0) target = $region45
    $region44: #{transformer_block.2} parent=1 // pred_region
      %49 = dma.done [#allocation3], 16
    $region45: #{transformer_block.2} parent=1 // pred_fallthru
      _
    %50 = sfence
    %v51 = vld [vmem:[%s1] sm:$0xff]
    %v52 = vld [vmem:[%s1 + $0x8] sm:$0xff]
    %v53 = vmul.f32 %v51, %v51
    %v54 = vmul.f32 %v52, %v52
    %vm55 = vcmask 261120
    %v56 = vsel %vm55, %v53, 0.0
    %57 = vadd.xlane.f32.xlu0 %v56
    %v58 = vpop.xlane.xlu0 %57
    %v59 = vsel %vm55, %v54, 0.0
    %60 = vadd.xlane.f32.xlu0 %v59
    %v61 = vpop.xlane.xlu0 %60
    %v62 = vrcp.pop 32.0
    %v63 = vmul.f32 %v58, %v62
    %v64 = vmul.f32 %v61, %v62
    %v65 = vadd.f32 %v63, 1e-06
    %v66 = vadd.f32 %v64, 1e-06
    %v67 = vrsqrt.pop %v65
    %v68 = vrsqrt.pop %v66
    %v69 = vmul.f32 %v51, %v67
    %v70 = vmul.f32 %v52, %v68
    %v71 = vld [vmem:[%s2] sm:$0x1]
    %v73 = vlaneseq
    %v74 = vshrl.u32 %v73, 7
    %v75 = vsub.s32 0, %v74
    %v76 = vrot.slane %v71, %v75
    %v78 = vmul.f32 %v69, %v76
    %v79 = vmul.f32 %v70, %v76
    %v80 = vld [vmem:[%s4] sm:$0xff]
    %v81 = vld [vmem:[%s4 + $0x8] sm:$0xff]
    %v82 = vld [vmem:[%s4 + $0x10] sm:$0xff]
    %v83 = vld [vmem:[%s4 + $0x18] sm:$0xff]
    %v85 = vsel %vm55, %v78, 0
    %v88 = vsel %vm55, %v79, 0
    %90 = vmatprep.subr.mxu0 0.0
    %91 = vmatpush1.msra.mxu0 0.0
    %92 = vmatprep.subr.mxu0 0.0
    %93 = vmatpush1.msra.mxu0 0.0
    %94 = vmatprep.subr.mxu0 0.0
    %95 = vmatpush1.msra.mxu0 0.0
    %96 = vmatprep.subr.mxu0 0.0
    %97 = vmatpush1.msra.mxu0 0.0
    %98 = vmatprep.subr.mxu0 0.0
    %99 = vmatpush1.msra.mxu0 0.0
    %100 = vmatprep.subr.mxu0 0.0
    %101 = vmatpush1.msra.mxu0 0.0
    %102 = vmatprep.subr.mxu0 0.0
    %103 = vmatpush1.msra.mxu0 0.0
    %104 = vmatprep.subr.mxu0 0.0
    %105 = vmatpush1.msra.mxu0 0.0
    %106 = vmatprep.subr.mxu0 0.0
    %107 = vmatpush1.msra.mxu0 0.0
    %108 = vmatprep.subr.mxu0 0.0
    %109 = vmatpush1.msra.mxu0 0.0
    %110 = vmatprep.subr.mxu0 0.0
    %111 = vmatpush1.msra.mxu0 0.0
    %112 = vmatprep.subr.mxu0 0.0
    %113 = vmatpush1.msra.mxu0 0.0
    %114 = vmatprep.subr.mxu0 0.0
    %115 = vmatpush1.msra.mxu0 %v83
    %116 = vmatprep.subr.mxu0 0.0
    %117 = vmatpush1.msra.mxu0 %v82
    %118 = vmatprep.subr.mxu0 0.0
    %119 = vmatpush1.msra.mxu0 %v81
    %120 = vmatprep.subr.mxu0 0.0
    %121 = vmatpush1.msra.mxu0 %v80
    %122 = vmatprep.subr.mxu0 0.0
    %123 = vmatpush2.msra.mxu0 0.0
    %124 = vmatprep.subr.mxu0 0.0
    %125 = vmatpush2.msra.mxu0 0.0
    %126 = vmatprep.subr.mxu0 0.0
    %127 = vmatpush2.msra.mxu0 0.0
    %128 = vmatprep.subr.mxu0 0.0
    %129 = vmatpush2.msra.mxu0 0.0
    %130 = vmatprep.subr.mxu0 0.0
    %131 = vmatpush2.msra.mxu0 0.0
    %132 = vmatprep.subr.mxu0 0.0
    %133 = vmatpush2.msra.mxu0 0.0
    %134 = vmatprep.subr.mxu0 0.0
    %135 = vmatpush2.msra.mxu0 0.0
    %136 = vmatprep.subr.mxu0 0.0
    %137 = vmatpush2.msra.mxu0 0.0
    %138 = vmatprep.subr.mxu0 0.0
    %139 = vmatpush2.msra.mxu0 0.0
    %140 = vmatprep.subr.mxu0 0.0
    %141 = vmatpush2.msra.mxu0 0.0
    %142 = vmatprep.subr.mxu0 0.0
    %143 = vmatpush2.msra.mxu0 0.0
    %144 = vmatprep.subr.mxu0 0.0
    %145 = vmatpush2.msra.mxu0 0.0
    %146 = vmatprep.subr.mxu0 0.0
    %147 = vmatpush2.msra.mxu0 0.0
    %148 = vmatprep.subr.mxu0 0.0
    %149 = vmatpush2.msra.mxu0 0.0
    %150 = vmatprep.subr.mxu0 0.0
    %151 = vmatpush2.msra.mxu0 0.0
    %152 = vmatprep.subr.mxu0 0.0
    %153 = vmatpush2.msra.mxu0 0.0
    %154 = vmatprep.mubr.f32.mxu0 0.0
    %155 = vmatmul.mubr.f32.gmra.mxu0 %v85
    %v156 = vpop.f32.mrf.mxu0
    %v157 = vadd.f32 0.0, %v156
    %v158 = vpop.f32.mrf.mxu0
    %159 = vmatprep.mubr.f32.mxu0 0.0
    %160 = vmatmul.mubr.f32.gmra.mxu0 %v88
    %v161 = vpop.f32.mrf.mxu0
    %v162 = vadd.f32 0.0, %v161
    %v163 = vpop.f32.mrf.mxu0
    %164 = vdwg.mxu0
    %v165 = vld [vmem:[%s6] sm:$0xff]
    %v166 = vld [vmem:[%s7] sm:$0xff]
    %v167 = vsub.f32 0.0, %v157
    %169 = vrot.lane.b32.xlu0 %v167, 124
    %v170 = vpop.permute.xlu0 %169
    %173 = vrot.lane.b32.xlu0 %v157, 4
    %v174 = vpop.permute.xlu0 %173
    %vm176 = vcmask 31744
    %v177 = vsel %vm176, %v170, %v174
    %v178 = vmul.f32 %v157, %v165
    %v179 = vmul.f32 %v177, %v166
    %v180 = vadd.f32 %v178, %v179
    %181 = vrot.lane.b32.xlu0 %v167, 92
    %v182 = vpop.permute.xlu0 %181
    %184 = vrot.lane.b32.xlu0 %v157, 100
    %v185 = vpop.permute.xlu0 %184
    %v187 = vsel %vm176, %v182, %v185
    %189 = vrot.lane.b32.xlu0 %v165, 32
    %v190 = vpop.permute.xlu0 %189
    %v192 = vmul.f32 %v157, %v190
    %v193 = vmul.f32 %v187, %v166
    %195 = vrot.lane.b32.xlu0 %v193, 32
    %v196 = vpop.permute.xlu0 %195
    %v198 = vadd.f32 %v192, %v196
    %200 = vrot.lane.b32.xlu0 %v198, 96
    %v201 = vpop.permute.xlu0 %200
    %vm202 = vcmask 64512
    %v204 = vsel %vm202, %v180, 0
    %v206 = vsel %vm202, %v201, 0
    %208 = vmatprep.subr.mxu0 0.0
    %209 = vmatpush1.xpose.msra.mxu0 0.0
    %210 = vmatprep.subr.mxu0 0.0
    %211 = vmatpush1.xpose.msra.mxu0 0.0
    %212 = vmatprep.subr.mxu0 0.0
    %213 = vmatpush1.xpose.msra.mxu0 0.0
    %214 = vmatprep.subr.mxu0 0.0
    %215 = vmatpush1.xpose.msra.mxu0 0.0
    %216 = vmatprep.subr.mxu0 0.0
    %217 = vmatpush1.xpose.msra.mxu0 0.0
    %218 = vmatprep.subr.mxu0 0.0
    %219 = vmatpush1.xpose.msra.mxu0 0.0
    %220 = vmatprep.subr.mxu0 0.0
    %221 = vmatpush1.xpose.msra.mxu0 0.0
    %222 = vmatprep.subr.mxu0 0.0
    %223 = vmatpush1.xpose.msra.mxu0 0.0
    %224 = vmatprep.subr.mxu0 0.0
    %225 = vmatpush1.xpose.msra.mxu0 0.0
    %226 = vmatprep.subr.mxu0 0.0
    %227 = vmatpush1.xpose.msra.mxu0 0.0
    %228 = vmatprep.subr.mxu0 0.0
    %229 = vmatpush1.xpose.msra.mxu0 0.0
    %230 = vmatprep.subr.mxu0 0.0
    %231 = vmatpush1.xpose.msra.mxu0 0.0
    %232 = vmatprep.subr.mxu0 0.0
    %233 = vmatpush1.xpose.msra.mxu0 0.0
    %234 = vmatprep.subr.mxu0 0.0
    %235 = vmatpush1.xpose.msra.mxu0 0.0
    %236 = vmatprep.subr.mxu0 0.0
    %237 = vmatpush1.xpose.msra.mxu0 0.0
    %238 = vmatprep.subr.mxu0 0.0
    %239 = vmatpush1.xpose.msra.mxu0 %v206
    %240 = vmatprep.subr.mxu0 0.0
    %241 = vmatpush2.xpose.msra.mxu0 0.0
    %242 = vmatprep.subr.mxu0 0.0
    %243 = vmatpush2.xpose.msra.mxu0 0.0
    %244 = vmatprep.subr.mxu0 0.0
    %245 = vmatpush2.xpose.msra.mxu0 0.0
    %246 = vmatprep.subr.mxu0 0.0
    %247 = vmatpush2.xpose.msra.mxu0 0.0
    %248 = vmatprep.subr.mxu0 0.0
    %249 = vmatpush2.xpose.msra.mxu0 0.0
    %250 = vmatprep.subr.mxu0 0.0
    %251 = vmatpush2.xpose.msra.mxu0 0.0
    %252 = vmatprep.subr.mxu0 0.0
    %253 = vmatpush2.xpose.msra.mxu0 0.0
    %254 = vmatprep.subr.mxu0 0.0
    %255 = vmatpush2.xpose.msra.mxu0 0.0
    %256 = vmatprep.subr.mxu0 0.0
    %257 = vmatpush2.xpose.msra.mxu0 0.0
    %258 = vmatprep.subr.mxu0 0.0
    %259 = vmatpush2.xpose.msra.mxu0 0.0
    %260 = vmatprep.subr.mxu0 0.0
    %261 = vmatpush2.xpose.msra.mxu0 0.0
    %262 = vmatprep.subr.mxu0 0.0
    %263 = vmatpush2.xpose.msra.mxu0 0.0
    %264 = vmatprep.subr.mxu0 0.0
    %265 = vmatpush2.xpose.msra.mxu0 0.0
    %266 = vmatprep.subr.mxu0 0.0
    %267 = vmatpush2.xpose.msra.mxu0 0.0
    %268 = vmatprep.subr.mxu0 0.0
    %269 = vmatpush2.xpose.msra.mxu0 0.0
    %270 = vmatprep.subr.mxu0 0.0
    %271 = vmatpush2.xpose.msra.mxu0 0.0
    %272 = vmatprep.mubr.f32.mxu0 0.0
    %273 = vmatmul.mubr.f32.gmra.mxu0 %v204
    %v274 = vpop.f32.mrf.mxu0
    %v275 = vadd.f32 0.0, %v274
    %v276 = vpop.f32.mrf.mxu0
    %277 = vdwg.mxu0
    %v278 = vmul.f32 %v275, 0.35355338
    %s279 = sld [smem:[#allocation2]]
    %v280 = vstv %s279
    %v281 = vadd.f32 %v278, %v280
    %v282 = vsel %vm202, %v281, -inf
    %283 = vmax.xlane.f32.xlu0 %v282
    %v284 = vpop.xlane.xlu0 %283
    %v285 = vsub.f32 %v281, %v284
    %v286 = vmul.f32 %v285, 1.442695
    %v287 = vpow.pop %v286
    %v288 = vsel %vm202, %v287, 0.0
    %289 = vadd.xlane.f32.xlu0 %v288
    %v290 = vpop.xlane.xlu0 %289
    %v291 = vrcp.pop %v290
    %v292 = vmul.f32 %v287, %v291
    %293 = vrot.lane.b32.xlu0 %v157, 64
    %v294 = vpop.permute.xlu0 %293
    %v297 = vsel %vm202, %v292, 0
    %299 = vmatprep.subr.mxu0 0.0
    %300 = vmatpush1.msra.mxu0 0.0
    %301 = vmatprep.subr.mxu0 0.0
    %302 = vmatpush1.msra.mxu0 0.0
    %303 = vmatprep.subr.mxu0 0.0
    %304 = vmatpush1.msra.mxu0 0.0
    %305 = vmatprep.subr.mxu0 0.0
    %306 = vmatpush1.msra.mxu0 0.0
    %307 = vmatprep.subr.mxu0 0.0
    %308 = vmatpush1.msra.mxu0 0.0
    %309 = vmatprep.subr.mxu0 0.0
    %310 = vmatpush1.msra.mxu0 0.0
    %311 = vmatprep.subr.mxu0 0.0
    %312 = vmatpush1.msra.mxu0 0.0
    %313 = vmatprep.subr.mxu0 0.0
    %314 = vmatpush1.msra.mxu0 0.0
    %315 = vmatprep.subr.mxu0 0.0
    %316 = vmatpush1.msra.mxu0 0.0
    %317 = vmatprep.subr.mxu0 0.0
    %318 = vmatpush1.msra.mxu0 0.0
    %319 = vmatprep.subr.mxu0 0.0
    %320 = vmatpush1.msra.mxu0 0.0
    %321 = vmatprep.subr.mxu0 0.0
    %322 = vmatpush1.msra.mxu0 0.0
    %323 = vmatprep.subr.mxu0 0.0
    %324 = vmatpush1.msra.mxu0 0.0
    %325 = vmatprep.subr.mxu0 0.0
    %326 = vmatpush1.msra.mxu0 0.0
    %327 = vmatprep.subr.mxu0 0.0
    %328 = vmatpush1.msra.mxu0 0.0
    %329 = vmatprep.subr.mxu0 0.0
    %330 = vmatpush1.msra.mxu0 %v294
    %331 = vmatprep.subr.mxu0 0.0
    %332 = vmatpush2.msra.mxu0 0.0
    %333 = vmatprep.subr.mxu0 0.0
    %334 = vmatpush2.msra.mxu0 0.0
    %335 = vmatprep.subr.mxu0 0.0
    %336 = vmatpush2.msra.mxu0 0.0
    %337 = vmatprep.subr.mxu0 0.0
    %338 = vmatpush2.msra.mxu0 0.0
    %339 = vmatprep.subr.mxu0 0.0
    %340 = vmatpush2.msra.mxu0 0.0
    %341 = vmatprep.subr.mxu0 0.0
    %342 = vmatpush2.msra.mxu0 0.0
    %343 = vmatprep.subr.mxu0 0.0
    %344 = vmatpush2.msra.mxu0 0.0
    %345 = vmatprep.subr.mxu0 0.0
    %346 = vmatpush2.msra.mxu0 0.0
    %347 = vmatprep.subr.mxu0 0.0
    %348 = vmatpush2.msra.mxu0 0.0
    %349 = vmatprep.subr.mxu0 0.0
    %350 = vmatpush2.msra.mxu0 0.0
    %351 = vmatprep.subr.mxu0 0.0
    %352 = vmatpush2.msra.mxu0 0.0
    %353 = vmatprep.subr.mxu0 0.0
    %354 = vmatpush2.msra.mxu0 0.0
    %355 = vmatprep.subr.mxu0 0.0
    %356 = vmatpush2.msra.mxu0 0.0
    %357 = vmatprep.subr.mxu0 0.0
    %358 = vmatpush2.msra.mxu0 0.0
    %359 = vmatprep.subr.mxu0 0.0
    %360 = vmatpush2.msra.mxu0 0.0
    %361 = vmatprep.subr.mxu0 0.0
    %362 = vmatpush2.msra.mxu0 0.0
    %363 = vmatprep.mubr.f32.mxu0 0.0
    %364 = vmatmul.mubr.f32.gmra.mxu0 %v297
    %v365 = vpop.f32.mrf.mxu0
    %v366 = vadd.f32 0.0, %v365
    %v367 = vpop.f32.mrf.mxu0
    %368 = vdwg.mxu0
    %369 = vrot.lane.b32.xlu0 %v167, 116
    %v370 = vpop.permute.xlu0 %369
    %372 = vrot.lane.b32.xlu0 %v157, 124
    %v373 = vpop.permute.xlu0 %372
    %v375 = vsel %vm176, %v370, %v373
    %376 = vrot.lane.b32.xlu0 %v165, 8
    %v377 = vpop.permute.xlu0 %376
    %v379 = vmul.f32 %v157, %v377
    %v380 = vmul.f32 %v375, %v166
    %382 = vrot.lane.b32.xlu0 %v380, 8
    %v383 = vpop.permute.xlu0 %382
    %v385 = vadd.f32 %v379, %v383
    %386 = vrot.lane.b32.xlu0 %v167, 84
    %v387 = vpop.permute.xlu0 %386
    %389 = vrot.lane.b32.xlu0 %v157, 92
    %v390 = vpop.permute.xlu0 %389
    %v392 = vsel %vm176, %v387, %v390
    %393 = vrot.lane.b32.xlu0 %v165, 40
    %v394 = vpop.permute.xlu0 %393
    %v396 = vmul.f32 %v157, %v394
    %v397 = vmul.f32 %v392, %v166
    %399 = vrot.lane.b32.xlu0 %v397, 40
    %v400 = vpop.permute.xlu0 %399
    %v402 = vadd.f32 %v396, %v400
    %404 = vrot.lane.b32.xlu0 %v385, 120
    %v405 = vpop.permute.xlu0 %404
    %407 = vrot.lane.b32.xlu0 %v402, 88
    %v408 = vpop.permute.xlu0 %407
    %v409 = vsel %vm202, %v405, 0
    %v411 = vsel %vm202, %v408, 0
    %413 = vmatprep.subr.mxu0 0.0
    %414 = vmatpush1.xpose.msra.mxu0 0.0
    %415 = vmatprep.subr.mxu0 0.0
    %416 = vmatpush1.xpose.msra.mxu0 0.0
    %417 = vmatprep.subr.mxu0 0.0
    %418 = vmatpush1.xpose.msra.mxu0 0.0
    %419 = vmatprep.subr.mxu0 0.0
    %420 = vmatpush1.xpose.msra.mxu0 0.0
    %421 = vmatprep.subr.mxu0 0.0
    %422 = vmatpush1.xpose.msra.mxu0 0.0
    %423 = vmatprep.subr.mxu0 0.0
    %424 = vmatpush1.xpose.msra.mxu0 0.0
    %425 = vmatprep.subr.mxu0 0.0
    %426 = vmatpush1.xpose.msra.mxu0 0.0
    %427 = vmatprep.subr.mxu0 0.0
    %428 = vmatpush1.xpose.msra.mxu0 0.0
    %429 = vmatprep.subr.mxu0 0.0
    %430 = vmatpush1.xpose.msra.mxu0 0.0
    %431 = vmatprep.subr.mxu0 0.0
    %432 = vmatpush1.xpose.msra.mxu0 0.0
    %433 = vmatprep.subr.mxu0 0.0
    %434 = vmatpush1.xpose.msra.mxu0 0.0
    %435 = vmatprep.subr.mxu0 0.0
    %436 = vmatpush1.xpose.msra.mxu0 0.0
    %437 = vmatprep.subr.mxu0 0.0
    %438 = vmatpush1.xpose.msra.mxu0 0.0
    %439 = vmatprep.subr.mxu0 0.0
    %440 = vmatpush1.xpose.msra.mxu0 0.0
    %441 = vmatprep.subr.mxu0 0.0
    %442 = vmatpush1.xpose.msra.mxu0 0.0
    %443 = vmatprep.subr.mxu0 0.0
    %444 = vmatpush1.xpose.msra.mxu0 %v411
    %445 = vmatprep.subr.mxu0 0.0
    %446 = vmatpush2.xpose.msra.mxu0 0.0
    %447 = vmatprep.subr.mxu0 0.0
    %448 = vmatpush2.xpose.msra.mxu0 0.0
    %449 = vmatprep.subr.mxu0 0.0
    %450 = vmatpush2.xpose.msra.mxu0 0.0
    %451 = vmatprep.subr.mxu0 0.0
    %452 = vmatpush2.xpose.msra.mxu0 0.0
    %453 = vmatprep.subr.mxu0 0.0
    %454 = vmatpush2.xpose.msra.mxu0 0.0
    %455 = vmatprep.subr.mxu0 0.0
    %456 = vmatpush2.xpose.msra.mxu0 0.0
    %457 = vmatprep.subr.mxu0 0.0
    %458 = vmatpush2.xpose.msra.mxu0 0.0
    %459 = vmatprep.subr.mxu0 0.0
    %460 = vmatpush2.xpose.msra.mxu0 0.0
    %461 = vmatprep.subr.mxu0 0.0
    %462 = vmatpush2.xpose.msra.mxu0 0.0
    %463 = vmatprep.subr.mxu0 0.0
    %464 = vmatpush2.xpose.msra.mxu0 0.0
    %465 = vmatprep.subr.mxu0 0.0
    %466 = vmatpush2.xpose.msra.mxu0 0.0
    %467 = vmatprep.subr.mxu0 0.0
    %468 = vmatpush2.xpose.msra.mxu0 0.0
    %469 = vmatprep.subr.mxu0 0.0
    %470 = vmatpush2.xpose.msra.mxu0 0.0
    %471 = vmatprep.subr.mxu0 0.0
    %472 = vmatpush2.xpose.msra.mxu0 0.0
    %473 = vmatprep.subr.mxu0 0.0
    %474 = vmatpush2.xpose.msra.mxu0 0.0
    %475 = vmatprep.subr.mxu0 0.0
    %476 = vmatpush2.xpose.msra.mxu0 0.0
    %477 = vmatprep.mubr.f32.mxu0 0.0
    %478 = vmatmul.mubr.f32.gmra.mxu0 %v409
    %v479 = vpop.f32.mrf.mxu0
    %v480 = vadd.f32 0.0, %v479
    %v481 = vpop.f32.mrf.mxu0
    %482 = vdwg.mxu0
    %v483 = vmul.f32 %v480, 0.35355338
    %s484 = sld [smem:[#allocation2 + $0x1]]
    %v485 = vstv %s484
    %v486 = vadd.f32 %v483, %v485
    %v487 = vsel %vm202, %v486, -inf
    %488 = vmax.xlane.f32.xlu0 %v487
    %v489 = vpop.xlane.xlu0 %488
    %v490 = vsub.f32 %v486, %v489
    %v491 = vmul.f32 %v490, 1.442695
    %v492 = vpow.pop %v491
    %v493 = vsel %vm202, %v492, 0.0
    %494 = vadd.xlane.f32.xlu0 %v493
    %v495 = vpop.xlane.xlu0 %494
    %v496 = vrcp.pop %v495
    %v497 = vmul.f32 %v492, %v496
    %498 = vrot.lane.b32.xlu0 %v157, 56
    %v499 = vpop.permute.xlu0 %498
    %v502 = vsel %vm202, %v497, 0
    %504 = vmatprep.subr.mxu0 0.0
    %505 = vmatpush1.msra.mxu0 0.0
    %506 = vmatprep.subr.mxu0 0.0
    %507 = vmatpush1.msra.mxu0 0.0
    %508 = vmatprep.subr.mxu0 0.0
    %509 = vmatpush1.msra.mxu0 0.0
    %510 = vmatprep.subr.mxu0 0.0
    %511 = vmatpush1.msra.mxu0 0.0
    %512 = vmatprep.subr.mxu0 0.0
    %513 = vmatpush1.msra.mxu0 0.0
    %514 = vmatprep.subr.mxu0 0.0
    %515 = vmatpush1.msra.mxu0 0.0
    %516 = vmatprep.subr.mxu0 0.0
    %517 = vmatpush1.msra.mxu0 0.0
    %518 = vmatprep.subr.mxu0 0.0
    %519 = vmatpush1.msra.mxu0 0.0
    %520 = vmatprep.subr.mxu0 0.0
    %521 = vmatpush1.msra.mxu0 0.0
    %522 = vmatprep.subr.mxu0 0.0
    %523 = vmatpush1.msra.mxu0 0.0
    %524 = vmatprep.subr.mxu0 0.0
    %525 = vmatpush1.msra.mxu0 0.0
    %526 = vmatprep.subr.mxu0 0.0
    %527 = vmatpush1.msra.mxu0 0.0
    %528 = vmatprep.subr.mxu0 0.0
    %529 = vmatpush1.msra.mxu0 0.0
    %530 = vmatprep.subr.mxu0 0.0
    %531 = vmatpush1.msra.mxu0 0.0
    %532 = vmatprep.subr.mxu0 0.0
    %533 = vmatpush1.msra.mxu0 0.0
    %534 = vmatprep.subr.mxu0 0.0
    %535 = vmatpush1.msra.mxu0 %v499
    %536 = vmatprep.subr.mxu0 0.0
    %537 = vmatpush2.msra.mxu0 0.0
    %538 = vmatprep.subr.mxu0 0.0
    %539 = vmatpush2.msra.mxu0 0.0
    %540 = vmatprep.subr.mxu0 0.0
    %541 = vmatpush2.msra.mxu0 0.0
    %542 = vmatprep.subr.mxu0 0.0
    %543 = vmatpush2.msra.mxu0 0.0
    %544 = vmatprep.subr.mxu0 0.0
    %545 = vmatpush2.msra.mxu0 0.0
    %546 = vmatprep.subr.mxu0 0.0
    %547 = vmatpush2.msra.mxu0 0.0
    %548 = vmatprep.subr.mxu0 0.0
    %549 = vmatpush2.msra.mxu0 0.0
    %550 = vmatprep.subr.mxu0 0.0
    %551 = vmatpush2.msra.mxu0 0.0
    %552 = vmatprep.subr.mxu0 0.0
    %553 = vmatpush2.msra.mxu0 0.0
    %554 = vmatprep.subr.mxu0 0.0
    %555 = vmatpush2.msra.mxu0 0.0
    %556 = vmatprep.subr.mxu0 0.0
    %557 = vmatpush2.msra.mxu0 0.0
    %558 = vmatprep.subr.mxu0 0.0
    %559 = vmatpush2.msra.mxu0 0.0
    %560 = vmatprep.subr.mxu0 0.0
    %561 = vmatpush2.msra.mxu0 0.0
    %562 = vmatprep.subr.mxu0 0.0
    %563 = vmatpush2.msra.mxu0 0.0
    %564 = vmatprep.subr.mxu0 0.0
    %565 = vmatpush2.msra.mxu0 0.0
    %566 = vmatprep.subr.mxu0 0.0
    %567 = vmatpush2.msra.mxu0 0.0
    %568 = vmatprep.mubr.f32.mxu0 0.0
    %569 = vmatmul.mubr.f32.gmra.mxu0 %v502
    %v570 = vpop.f32.mrf.mxu0
    %v571 = vadd.f32 0.0, %v570
    %v572 = vpop.f32.mrf.mxu0
    %573 = vdwg.mxu0
    %574 = vrot.lane.b32.xlu0 %v167, 108
    %v575 = vpop.permute.xlu0 %574
    %577 = vrot.lane.b32.xlu0 %v157, 116
    %v578 = vpop.permute.xlu0 %577
    %v580 = vsel %vm176, %v575, %v578
    %581 = vrot.lane.b32.xlu0 %v165, 16
    %v582 = vpop.permute.xlu0 %581
    %v584 = vmul.f32 %v157, %v582
    %v585 = vmul.f32 %v580, %v166
    %587 = vrot.lane.b32.xlu0 %v585, 16
    %v588 = vpop.permute.xlu0 %587
    %v590 = vadd.f32 %v584, %v588
    %591 = vrot.lane.b32.xlu0 %v167, 76
    %v592 = vpop.permute.xlu0 %591
    %594 = vrot.lane.b32.xlu0 %v157, 84
    %v595 = vpop.permute.xlu0 %594
    %v597 = vsel %vm176, %v592, %v595
    %598 = vrot.lane.b32.xlu0 %v165, 48
    %v599 = vpop.permute.xlu0 %598
    %v601 = vmul.f32 %v157, %v599
    %v602 = vmul.f32 %v597, %v166
    %604 = vrot.lane.b32.xlu0 %v602, 48
    %v605 = vpop.permute.xlu0 %604
    %v607 = vadd.f32 %v601, %v605
    %609 = vrot.lane.b32.xlu0 %v590, 112
    %v610 = vpop.permute.xlu0 %609
    %612 = vrot.lane.b32.xlu0 %v607, 80
    %v613 = vpop.permute.xlu0 %612
    %v614 = vsel %vm202, %v610, 0
    %v616 = vsel %vm202, %v613, 0
    %618 = vmatprep.subr.mxu0 0.0
    %619 = vmatpush1.xpose.msra.mxu0 0.0
    %620 = vmatprep.subr.mxu0 0.0
    %621 = vmatpush1.xpose.msra.mxu0 0.0
    %622 = vmatprep.subr.mxu0 0.0
    %623 = vmatpush1.xpose.msra.mxu0 0.0
    %624 = vmatprep.subr.mxu0 0.0
    %625 = vmatpush1.xpose.msra.mxu0 0.0
    %626 = vmatprep.subr.mxu0 0.0
    %627 = vmatpush1.xpose.msra.mxu0 0.0
    %628 = vmatprep.subr.mxu0 0.0
    %629 = vmatpush1.xpose.msra.mxu0 0.0
    %630 = vmatprep.subr.mxu0 0.0
    %631 = vmatpush1.xpose.msra.mxu0 0.0
    %632 = vmatprep.subr.mxu0 0.0
    %633 = vmatpush1.xpose.msra.mxu0 0.0
    %634 = vmatprep.subr.mxu0 0.0
    %635 = vmatpush1.xpose.msra.mxu0 0.0
    %636 = vmatprep.subr.mxu0 0.0
    %637 = vmatpush1.xpose.msra.mxu0 0.0
    %638 = vmatprep.subr.mxu0 0.0
    %639 = vmatpush1.xpose.msra.mxu0 0.0
    %640 = vmatprep.subr.mxu0 0.0
    %641 = vmatpush1.xpose.msra.mxu0 0.0
    %642 = vmatprep.subr.mxu0 0.0
    %643 = vmatpush1.xpose.msra.mxu0 0.0
    %644 = vmatprep.subr.mxu0 0.0
    %645 = vmatpush1.xpose.msra.mxu0 0.0
    %646 = vmatprep.subr.mxu0 0.0
    %647 = vmatpush1.xpose.msra.mxu0 0.0
    %648 = vmatprep.subr.mxu0 0.0
    %649 = vmatpush1.xpose.msra.mxu0 %v616
    %650 = vmatprep.subr.mxu0 0.0
    %651 = vmatpush2.xpose.msra.mxu0 0.0
    %652 = vmatprep.subr.mxu0 0.0
    %653 = vmatpush2.xpose.msra.mxu0 0.0
    %654 = vmatprep.subr.mxu0 0.0
    %655 = vmatpush2.xpose.msra.mxu0 0.0
    %656 = vmatprep.subr.mxu0 0.0
    %657 = vmatpush2.xpose.msra.mxu0 0.0
    %658 = vmatprep.subr.mxu0 0.0
    %659 = vmatpush2.xpose.msra.mxu0 0.0
    %660 = vmatprep.subr.mxu0 0.0
    %661 = vmatpush2.xpose.msra.mxu0 0.0
    %662 = vmatprep.subr.mxu0 0.0
    %663 = vmatpush2.xpose.msra.mxu0 0.0
    %664 = vmatprep.subr.mxu0 0.0
    %665 = vmatpush2.xpose.msra.mxu0 0.0
    %666 = vmatprep.subr.mxu0 0.0
    %667 = vmatpush2.xpose.msra.mxu0 0.0
    %668 = vmatprep.subr.mxu0 0.0
    %669 = vmatpush2.xpose.msra.mxu0 0.0
    %670 = vmatprep.subr.mxu0 0.0
    %671 = vmatpush2.xpose.msra.mxu0 0.0
    %672 = vmatprep.subr.mxu0 0.0
    %673 = vmatpush2.xpose.msra.mxu0 0.0
    %674 = vmatprep.subr.mxu0 0.0
    %675 = vmatpush2.xpose.msra.mxu0 0.0
    %676 = vmatprep.subr.mxu0 0.0
    %677 = vmatpush2.xpose.msra.mxu0 0.0
    %678 = vmatprep.subr.mxu0 0.0
    %679 = vmatpush2.xpose.msra.mxu0 0.0
    %680 = vmatprep.subr.mxu0 0.0
    %681 = vmatpush2.xpose.msra.mxu0 0.0
    %682 = vmatprep.mubr.f32.mxu0 0.0
    %683 = vmatmul.mubr.f32.gmra.mxu0 %v614
    %v684 = vpop.f32.mrf.mxu0
    %v685 = vadd.f32 0.0, %v684
    %v686 = vpop.f32.mrf.mxu0
    %687 = vdwg.mxu0
    %v688 = vmul.f32 %v685, 0.35355338
    %s689 = sld [smem:[#allocation2 + $0x2]]
    %v690 = vstv %s689
    %v691 = vadd.f32 %v688, %v690
    %v692 = vsel %vm202, %v691, -inf
    %693 = vmax.xlane.f32.xlu0 %v692
    %v694 = vpop.xlane.xlu0 %693
    %v695 = vsub.f32 %v691, %v694
    %v696 = vmul.f32 %v695, 1.442695
    %v697 = vpow.pop %v696
    %v698 = vsel %vm202, %v697, 0.0
    %699 = vadd.xlane.f32.xlu0 %v698
    %v700 = vpop.xlane.xlu0 %699
    %v701 = vrcp.pop %v700
    %v702 = vmul.f32 %v697, %v701
    %703 = vrot.lane.b32.xlu0 %v157, 48
    %v704 = vpop.permute.xlu0 %703
    %v707 = vsel %vm202, %v702, 0
    %709 = vmatprep.subr.mxu0 0.0
    %710 = vmatpush1.msra.mxu0 0.0
    %711 = vmatprep.subr.mxu0 0.0
    %712 = vmatpush1.msra.mxu0 0.0
    %713 = vmatprep.subr.mxu0 0.0
    %714 = vmatpush1.msra.mxu0 0.0
    %715 = vmatprep.subr.mxu0 0.0
    %716 = vmatpush1.msra.mxu0 0.0
    %717 = vmatprep.subr.mxu0 0.0
    %718 = vmatpush1.msra.mxu0 0.0
    %719 = vmatprep.subr.mxu0 0.0
    %720 = vmatpush1.msra.mxu0 0.0
    %721 = vmatprep.subr.mxu0 0.0
    %722 = vmatpush1.msra.mxu0 0.0
    %723 = vmatprep.subr.mxu0 0.0
    %724 = vmatpush1.msra.mxu0 0.0
    %725 = vmatprep.subr.mxu0 0.0
    %726 = vmatpush1.msra.mxu0 0.0
    %727 = vmatprep.subr.mxu0 0.0
    %728 = vmatpush1.msra.mxu0 0.0
    %729 = vmatprep.subr.mxu0 0.0
    %730 = vmatpush1.msra.mxu0 0.0
    %731 = vmatprep.subr.mxu0 0.0
    %732 = vmatpush1.msra.mxu0 0.0
    %733 = vmatprep.subr.mxu0 0.0
    %734 = vmatpush1.msra.mxu0 0.0
    %735 = vmatprep.subr.mxu0 0.0
    %736 = vmatpush1.msra.mxu0 0.0
    %737 = vmatprep.subr.mxu0 0.0
    %738 = vmatpush1.msra.mxu0 0.0
    %739 = vmatprep.subr.mxu0 0.0
    %740 = vmatpush1.msra.mxu0 %v704
    %741 = vmatprep.subr.mxu0 0.0
    %742 = vmatpush2.msra.mxu0 0.0
    %743 = vmatprep.subr.mxu0 0.0
    %744 = vmatpush2.msra.mxu0 0.0
    %745 = vmatprep.subr.mxu0 0.0
    %746 = vmatpush2.msra.mxu0 0.0
    %747 = vmatprep.subr.mxu0 0.0
    %748 = vmatpush2.msra.mxu0 0.0
    %749 = vmatprep.subr.mxu0 0.0
    %750 = vmatpush2.msra.mxu0 0.0
    %751 = vmatprep.subr.mxu0 0.0
    %752 = vmatpush2.msra.mxu0 0.0
    %753 = vmatprep.subr.mxu0 0.0
    %754 = vmatpush2.msra.mxu0 0.0
    %755 = vmatprep.subr.mxu0 0.0
    %756 = vmatpush2.msra.mxu0 0.0
    %757 = vmatprep.subr.mxu0 0.0
    %758 = vmatpush2.msra.mxu0 0.0
    %759 = vmatprep.subr.mxu0 0.0
    %760 = vmatpush2.msra.mxu0 0.0
    %761 = vmatprep.subr.mxu0 0.0
    %762 = vmatpush2.msra.mxu0 0.0
    %763 = vmatprep.subr.mxu0 0.0
    %764 = vmatpush2.msra.mxu0 0.0
    %765 = vmatprep.subr.mxu0 0.0
    %766 = vmatpush2.msra.mxu0 0.0
    %767 = vmatprep.subr.mxu0 0.0
    %768 = vmatpush2.msra.mxu0 0.0
    %769 = vmatprep.subr.mxu0 0.0
    %770 = vmatpush2.msra.mxu0 0.0
    %771 = vmatprep.subr.mxu0 0.0
    %772 = vmatpush2.msra.mxu0 0.0
    %773 = vmatprep.mubr.f32.mxu0 0.0
    %774 = vmatmul.mubr.f32.gmra.mxu0 %v707
    %v775 = vpop.f32.mrf.mxu0
    %v776 = vadd.f32 0.0, %v775
    %v777 = vpop.f32.mrf.mxu0
    %778 = vdwg.mxu0
    %779 = vrot.lane.b32.xlu0 %v167, 100
    %v780 = vpop.permute.xlu0 %779
    %782 = vrot.lane.b32.xlu0 %v157, 108
    %v783 = vpop.permute.xlu0 %782
    %v785 = vsel %vm176, %v780, %v783
    %786 = vrot.lane.b32.xlu0 %v165, 24
    %v787 = vpop.permute.xlu0 %786
    %v789 = vmul.f32 %v157, %v787
    %v790 = vmul.f32 %v785, %v166
    %792 = vrot.lane.b32.xlu0 %v790, 24
    %v793 = vpop.permute.xlu0 %792
    %v795 = vadd.f32 %v789, %v793
    %796 = vrot.lane.b32.xlu0 %v167, 68
    %v797 = vpop.permute.xlu0 %796
    %799 = vrot.lane.b32.xlu0 %v157, 76
    %v800 = vpop.permute.xlu0 %799
    %v802 = vsel %vm176, %v797, %v800
    %803 = vrot.lane.b32.xlu0 %v165, 56
    %v804 = vpop.permute.xlu0 %803
    %v806 = vmul.f32 %v157, %v804
    %v807 = vmul.f32 %v802, %v166
    %809 = vrot.lane.b32.xlu0 %v807, 56
    %v810 = vpop.permute.xlu0 %809
    %v812 = vadd.f32 %v806, %v810
    %814 = vrot.lane.b32.xlu0 %v795, 104
    %v815 = vpop.permute.xlu0 %814
    %817 = vrot.lane.b32.xlu0 %v812, 72
    %v818 = vpop.permute.xlu0 %817
    %v819 = vsel %vm202, %v815, 0
    %v821 = vsel %vm202, %v818, 0
    %823 = vmatprep.subr.mxu0 0.0
    %824 = vmatpush1.xpose.msra.mxu0 0.0
    %825 = vmatprep.subr.mxu0 0.0
    %826 = vmatpush1.xpose.msra.mxu0 0.0
    %827 = vmatprep.subr.mxu0 0.0
    %828 = vmatpush1.xpose.msra.mxu0 0.0
    %829 = vmatprep.subr.mxu0 0.0
    %830 = vmatpush1.xpose.msra.mxu0 0.0
    %831 = vmatprep.subr.mxu0 0.0
    %832 = vmatpush1.xpose.msra.mxu0 0.0
    %833 = vmatprep.subr.mxu0 0.0
    %834 = vmatpush1.xpose.msra.mxu0 0.0
    %835 = vmatprep.subr.mxu0 0.0
    %836 = vmatpush1.xpose.msra.mxu0 0.0
    %837 = vmatprep.subr.mxu0 0.0
    %838 = vmatpush1.xpose.msra.mxu0 0.0
    %839 = vmatprep.subr.mxu0 0.0
    %840 = vmatpush1.xpose.msra.mxu0 0.0
    %841 = vmatprep.subr.mxu0 0.0
    %842 = vmatpush1.xpose.msra.mxu0 0.0
    %843 = vmatprep.subr.mxu0 0.0
    %844 = vmatpush1.xpose.msra.mxu0 0.0
    %845 = vmatprep.subr.mxu0 0.0
    %846 = vmatpush1.xpose.msra.mxu0 0.0
    %847 = vmatprep.subr.mxu0 0.0
    %848 = vmatpush1.xpose.msra.mxu0 0.0
    %849 = vmatprep.subr.mxu0 0.0
    %850 = vmatpush1.xpose.msra.mxu0 0.0
    %851 = vmatprep.subr.mxu0 0.0
    %852 = vmatpush1.xpose.msra.mxu0 0.0
    %853 = vmatprep.subr.mxu0 0.0
    %854 = vmatpush1.xpose.msra.mxu0 %v821
    %855 = vmatprep.subr.mxu0 0.0
    %856 = vmatpush2.xpose.msra.mxu0 0.0
    %857 = vmatprep.subr.mxu0 0.0
    %858 = vmatpush2.xpose.msra.mxu0 0.0
    %859 = vmatprep.subr.mxu0 0.0
    %860 = vmatpush2.xpose.msra.mxu0 0.0
    %861 = vmatprep.subr.mxu0 0.0
    %862 = vmatpush2.xpose.msra.mxu0 0.0
    %863 = vmatprep.subr.mxu0 0.0
    %864 = vmatpush2.xpose.msra.mxu0 0.0
    %865 = vmatprep.subr.mxu0 0.0
    %866 = vmatpush2.xpose.msra.mxu0 0.0
    %867 = vmatprep.subr.mxu0 0.0
    %868 = vmatpush2.xpose.msra.mxu0 0.0
    %869 = vmatprep.subr.mxu0 0.0
    %870 = vmatpush2.xpose.msra.mxu0 0.0
    %871 = vmatprep.subr.mxu0 0.0
    %872 = vmatpush2.xpose.msra.mxu0 0.0
    %873 = vmatprep.subr.mxu0 0.0
    %874 = vmatpush2.xpose.msra.mxu0 0.0
    %875 = vmatprep.subr.mxu0 0.0
    %876 = vmatpush2.xpose.msra.mxu0 0.0
    %877 = vmatprep.subr.mxu0 0.0
    %878 = vmatpush2.xpose.msra.mxu0 0.0
    %879 = vmatprep.subr.mxu0 0.0
    %880 = vmatpush2.xpose.msra.mxu0 0.0
    %881 = vmatprep.subr.mxu0 0.0
    %882 = vmatpush2.xpose.msra.mxu0 0.0
    %883 = vmatprep.subr.mxu0 0.0
    %884 = vmatpush2.xpose.msra.mxu0 0.0
    %885 = vmatprep.subr.mxu0 0.0
    %886 = vmatpush2.xpose.msra.mxu0 0.0
    %887 = vmatprep.mubr.f32.mxu0 0.0
    %888 = vmatmul.mubr.f32.gmra.mxu0 %v819
    %v889 = vpop.f32.mrf.mxu0
    %v890 = vadd.f32 0.0, %v889
    %v891 = vpop.f32.mrf.mxu0
    %892 = vdwg.mxu0
    %v893 = vmul.f32 %v890, 0.35355338
    %s894 = sld [smem:[#allocation2 + $0x3]]
    %v895 = vstv %s894
    %v896 = vadd.f32 %v893, %v895
    %v897 = vsel %vm202, %v896, -inf
    %898 = vmax.xlane.f32.xlu0 %v897
    %v899 = vpop.xlane.xlu0 %898
    %v900 = vsub.f32 %v896, %v899
    %v901 = vmul.f32 %v900, 1.442695
    %v902 = vpow.pop %v901
    %v903 = vsel %vm202, %v902, 0.0
    %904 = vadd.xlane.f32.xlu0 %v903
    %v905 = vpop.xlane.xlu0 %904
    %v906 = vrcp.pop %v905
    %v907 = vmul.f32 %v902, %v906
    %908 = vrot.lane.b32.xlu0 %v157, 40
    %v909 = vpop.permute.xlu0 %908
    %v912 = vsel %vm202, %v907, 0
    %914 = vmatprep.subr.mxu0 0.0
    %915 = vmatpush1.msra.mxu0 0.0
    %916 = vmatprep.subr.mxu0 0.0
    %917 = vmatpush1.msra.mxu0 0.0
    %918 = vmatprep.subr.mxu0 0.0
    %919 = vmatpush1.msra.mxu0 0.0
    %920 = vmatprep.subr.mxu0 0.0
    %921 = vmatpush1.msra.mxu0 0.0
    %922 = vmatprep.subr.mxu0 0.0
    %923 = vmatpush1.msra.mxu0 0.0
    %924 = vmatprep.subr.mxu0 0.0
    %925 = vmatpush1.msra.mxu0 0.0
    %926 = vmatprep.subr.mxu0 0.0
    %927 = vmatpush1.msra.mxu0 0.0
    %928 = vmatprep.subr.mxu0 0.0
    %929 = vmatpush1.msra.mxu0 0.0
    %930 = vmatprep.subr.mxu0 0.0
    %931 = vmatpush1.msra.mxu0 0.0
    %932 = vmatprep.subr.mxu0 0.0
    %933 = vmatpush1.msra.mxu0 0.0
    %934 = vmatprep.subr.mxu0 0.0
    %935 = vmatpush1.msra.mxu0 0.0
    %936 = vmatprep.subr.mxu0 0.0
    %937 = vmatpush1.msra.mxu0 0.0
    %938 = vmatprep.subr.mxu0 0.0
    %939 = vmatpush1.msra.mxu0 0.0
    %940 = vmatprep.subr.mxu0 0.0
    %941 = vmatpush1.msra.mxu0 0.0
    %942 = vmatprep.subr.mxu0 0.0
    %943 = vmatpush1.msra.mxu0 0.0
    %944 = vmatprep.subr.mxu0 0.0
    %945 = vmatpush1.msra.mxu0 %v909
    %946 = vmatprep.subr.mxu0 0.0
    %947 = vmatpush2.msra.mxu0 0.0
    %948 = vmatprep.subr.mxu0 0.0
    %949 = vmatpush2.msra.mxu0 0.0
    %950 = vmatprep.subr.mxu0 0.0
    %951 = vmatpush2.msra.mxu0 0.0
    %952 = vmatprep.subr.mxu0 0.0
    %953 = vmatpush2.msra.mxu0 0.0
    %954 = vmatprep.subr.mxu0 0.0
    %955 = vmatpush2.msra.mxu0 0.0
    %956 = vmatprep.subr.mxu0 0.0
    %957 = vmatpush2.msra.mxu0 0.0
    %958 = vmatprep.subr.mxu0 0.0
    %959 = vmatpush2.msra.mxu0 0.0
    %960 = vmatprep.subr.mxu0 0.0
    %961 = vmatpush2.msra.mxu0 0.0
    %962 = vmatprep.subr.mxu0 0.0
    %963 = vmatpush2.msra.mxu0 0.0
    %964 = vmatprep.subr.mxu0 0.0
    %965 = vmatpush2.msra.mxu0 0.0
    %966 = vmatprep.subr.mxu0 0.0
    %967 = vmatpush2.msra.mxu0 0.0
    %968 = vmatprep.subr.mxu0 0.0
    %969 = vmatpush2.msra.mxu0 0.0
    %970 = vmatprep.subr.mxu0 0.0
    %971 = vmatpush2.msra.mxu0 0.0
    %972 = vmatprep.subr.mxu0 0.0
    %973 = vmatpush2.msra.mxu0 0.0
    %974 = vmatprep.subr.mxu0 0.0
    %975 = vmatpush2.msra.mxu0 0.0
    %976 = vmatprep.subr.mxu0 0.0
    %977 = vmatpush2.msra.mxu0 0.0
    %978 = vmatprep.mubr.f32.mxu0 0.0
    %979 = vmatmul.mubr.f32.gmra.mxu0 %v912
    %v980 = vpop.f32.mrf.mxu0
    %v981 = vadd.f32 0.0, %v980
    %v982 = vpop.f32.mrf.mxu0
    %983 = vdwg.mxu0
    %985 = vrot.lane.b32.xlu0 %v571, 8
    %v986 = vpop.permute.xlu0 %985
    %989 = vrot.lane.b32.xlu0 %v776, 16
    %v990 = vpop.permute.xlu0 %989
    %993 = vrot.lane.b32.xlu0 %v981, 24
    %v994 = vpop.permute.xlu0 %993
    %v996 = vsel %vm202, %v366, %v986
    %vm997 = vcmask 130048
    %v998 = vsel %vm997, %v996, %v990
    %vm999 = vcmask 195584
    %v1000 = vsel %vm999, %v998, %v994
    %v1001 = vsub.f32 0.0, %v162
    %1003 = vrot.lane.b32.xlu0 %v1001, 124
    %v1004 = vpop.permute.xlu0 %1003
    %1007 = vrot.lane.b32.xlu0 %v162, 4
    %v1008 = vpop.permute.xlu0 %1007
    %v1010 = vsel %vm176, %v1004, %v1008
    %v1011 = vmul.f32 %v162, %v165
    %v1012 = vmul.f32 %v1010, %v166
    %v1013 = vadd.f32 %v1011, %v1012
    %1014 = vrot.lane.b32.xlu0 %v1001, 92
    %v1015 = vpop.permute.xlu0 %1014
    %1017 = vrot.lane.b32.xlu0 %v162, 100
    %v1018 = vpop.permute.xlu0 %1017
    %v1020 = vsel %vm176, %v1015, %v1018
    %v1021 = vmul.f32 %v162, %v190
    %v1022 = vmul.f32 %v1020, %v166
    %1024 = vrot.lane.b32.xlu0 %v1022, 32
    %v1025 = vpop.permute.xlu0 %1024
    %v1027 = vadd.f32 %v1021, %v1025
    %1029 = vrot.lane.b32.xlu0 %v1027, 96
    %v1030 = vpop.permute.xlu0 %1029
    %v1032 = vsel %vm202, %v1013, 0
    %v1034 = vsel %vm202, %v1030, 0
    %1036 = vmatprep.subr.mxu0 0.0
    %1037 = vmatpush1.xpose.msra.mxu0 0.0
    %1038 = vmatprep.subr.mxu0 0.0
    %1039 = vmatpush1.xpose.msra.mxu0 0.0
    %1040 = vmatprep.subr.mxu0 0.0
    %1041 = vmatpush1.xpose.msra.mxu0 0.0
    %1042 = vmatprep.subr.mxu0 0.0
    %1043 = vmatpush1.xpose.msra.mxu0 0.0
    %1044 = vmatprep.subr.mxu0 0.0
    %1045 = vmatpush1.xpose.msra.mxu0 0.0
    %1046 = vmatprep.subr.mxu0 0.0
    %1047 = vmatpush1.xpose.msra.mxu0 0.0
    %1048 = vmatprep.subr.mxu0 0.0
    %1049 = vmatpush1.xpose.msra.mxu0 0.0
    %1050 = vmatprep.subr.mxu0 0.0
    %1051 = vmatpush1.xpose.msra.mxu0 0.0
    %1052 = vmatprep.subr.mxu0 0.0
    %1053 = vmatpush1.xpose.msra.mxu0 0.0
    %1054 = vmatprep.subr.mxu0 0.0
    %1055 = vmatpush1.xpose.msra.mxu0 0.0
    %1056 = vmatprep.subr.mxu0 0.0
    %1057 = vmatpush1.xpose.msra.mxu0 0.0
    %1058 = vmatprep.subr.mxu0 0.0
    %1059 = vmatpush1.xpose.msra.mxu0 0.0
    %1060 = vmatprep.subr.mxu0 0.0
    %1061 = vmatpush1.xpose.msra.mxu0 0.0
    %1062 = vmatprep.subr.mxu0 0.0
    %1063 = vmatpush1.xpose.msra.mxu0 0.0
    %1064 = vmatprep.subr.mxu0 0.0
    %1065 = vmatpush1.xpose.msra.mxu0 0.0
    %1066 = vmatprep.subr.mxu0 0.0
    %1067 = vmatpush1.xpose.msra.mxu0 %v1034
    %1068 = vmatprep.subr.mxu0 0.0
    %1069 = vmatpush2.xpose.msra.mxu0 0.0
    %1070 = vmatprep.subr.mxu0 0.0
    %1071 = vmatpush2.xpose.msra.mxu0 0.0
    %1072 = vmatprep.subr.mxu0 0.0
    %1073 = vmatpush2.xpose.msra.mxu0 0.0
    %1074 = vmatprep.subr.mxu0 0.0
    %1075 = vmatpush2.xpose.msra.mxu0 0.0
    %1076 = vmatprep.subr.mxu0 0.0
    %1077 = vmatpush2.xpose.msra.mxu0 0.0
    %1078 = vmatprep.subr.mxu0 0.0
    %1079 = vmatpush2.xpose.msra.mxu0 0.0
    %1080 = vmatprep.subr.mxu0 0.0
    %1081 = vmatpush2.xpose.msra.mxu0 0.0
    %1082 = vmatprep.subr.mxu0 0.0
    %1083 = vmatpush2.xpose.msra.mxu0 0.0
    %1084 = vmatprep.subr.mxu0 0.0
    %1085 = vmatpush2.xpose.msra.mxu0 0.0
    %1086 = vmatprep.subr.mxu0 0.0
    %1087 = vmatpush2.xpose.msra.mxu0 0.0
    %1088 = vmatprep.subr.mxu0 0.0
    %1089 = vmatpush2.xpose.msra.mxu0 0.0
    %1090 = vmatprep.subr.mxu0 0.0
    %1091 = vmatpush2.xpose.msra.mxu0 0.0
    %1092 = vmatprep.subr.mxu0 0.0
    %1093 = vmatpush2.xpose.msra.mxu0 0.0
    %1094 = vmatprep.subr.mxu0 0.0
    %1095 = vmatpush2.xpose.msra.mxu0 0.0
    %1096 = vmatprep.subr.mxu0 0.0
    %1097 = vmatpush2.xpose.msra.mxu0 0.0
    %1098 = vmatprep.subr.mxu0 0.0
    %1099 = vmatpush2.xpose.msra.mxu0 0.0
    %1100 = vmatprep.mubr.f32.mxu0 0.0
    %1101 = vmatmul.mubr.f32.gmra.mxu0 %v1032
    %v1102 = vpop.f32.mrf.mxu0
    %v1103 = vadd.f32 0.0, %v1102
    %v1104 = vpop.f32.mrf.mxu0
    %1105 = vdwg.mxu0
    %v1106 = vmul.f32 %v1103, 0.35355338
    %v1107 = vadd.f32 %v1106, %v280
    %v1108 = vsel %vm202, %v1107, -inf
    %1109 = vmax.xlane.f32.xlu0 %v1108
    %v1110 = vpop.xlane.xlu0 %1109
    %v1111 = vsub.f32 %v1107, %v1110
    %v1112 = vmul.f32 %v1111, 1.442695
    %v1113 = vpow.pop %v1112
    %v1114 = vsel %vm202, %v1113, 0.0
    %1115 = vadd.xlane.f32.xlu0 %v1114
    %v1116 = vpop.xlane.xlu0 %1115
    %v1117 = vrcp.pop %v1116
    %v1118 = vmul.f32 %v1113, %v1117
    %1119 = vrot.lane.b32.xlu0 %v162, 64
    %v1120 = vpop.permute.xlu0 %1119
    %v1123 = vsel %vm202, %v1118, 0
    %1125 = vmatprep.subr.mxu0 0.0
    %1126 = vmatpush1.msra.mxu0 0.0
    %1127 = vmatprep.subr.mxu0 0.0
    %1128 = vmatpush1.msra.mxu0 0.0
    %1129 = vmatprep.subr.mxu0 0.0
    %1130 = vmatpush1.msra.mxu0 0.0
    %1131 = vmatprep.subr.mxu0 0.0
    %1132 = vmatpush1.msra.mxu0 0.0
    %1133 = vmatprep.subr.mxu0 0.0
    %1134 = vmatpush1.msra.mxu0 0.0
    %1135 = vmatprep.subr.mxu0 0.0
    %1136 = vmatpush1.msra.mxu0 0.0
    %1137 = vmatprep.subr.mxu0 0.0
    %1138 = vmatpush1.msra.mxu0 0.0
    %1139 = vmatprep.subr.mxu0 0.0
    %1140 = vmatpush1.msra.mxu0 0.0
    %1141 = vmatprep.subr.mxu0 0.0
    %1142 = vmatpush1.msra.mxu0 0.0
    %1143 = vmatprep.subr.mxu0 0.0
    %1144 = vmatpush1.msra.mxu0 0.0
    %1145 = vmatprep.subr.mxu0 0.0
    %1146 = vmatpush1.msra.mxu0 0.0
    %1147 = vmatprep.subr.mxu0 0.0
    %1148 = vmatpush1.msra.mxu0 0.0
    %1149 = vmatprep.subr.mxu0 0.0
    %1150 = vmatpush1.msra.mxu0 0.0
    %1151 = vmatprep.subr.mxu0 0.0
    %1152 = vmatpush1.msra.mxu0 0.0
    %1153 = vmatprep.subr.mxu0 0.0
    %1154 = vmatpush1.msra.mxu0 0.0
    %1155 = vmatprep.subr.mxu0 0.0
    %1156 = vmatpush1.msra.mxu0 %v1120
    %1157 = vmatprep.subr.mxu0 0.0
    %1158 = vmatpush2.msra.mxu0 0.0
    %1159 = vmatprep.subr.mxu0 0.0
    %1160 = vmatpush2.msra.mxu0 0.0
    %1161 = vmatprep.subr.mxu0 0.0
    %1162 = vmatpush2.msra.mxu0 0.0
    %1163 = vmatprep.subr.mxu0 0.0
    %1164 = vmatpush2.msra.mxu0 0.0
    %1165 = vmatprep.subr.mxu0 0.0
    %1166 = vmatpush2.msra.mxu0 0.0
    %1167 = vmatprep.subr.mxu0 0.0
    %1168 = vmatpush2.msra.mxu0 0.0
    %1169 = vmatprep.subr.mxu0 0.0
    %1170 = vmatpush2.msra.mxu0 0.0
    %1171 = vmatprep.subr.mxu0 0.0
    %1172 = vmatpush2.msra.mxu0 0.0
    %1173 = vmatprep.subr.mxu0 0.0
    %1174 = vmatpush2.msra.mxu0 0.0
    %1175 = vmatprep.subr.mxu0 0.0
    %1176 = vmatpush2.msra.mxu0 0.0
    %1177 = vmatprep.subr.mxu0 0.0
    %1178 = vmatpush2.msra.mxu0 0.0
    %1179 = vmatprep.subr.mxu0 0.0
    %1180 = vmatpush2.msra.mxu0 0.0
    %1181 = vmatprep.subr.mxu0 0.0
    %1182 = vmatpush2.msra.mxu0 0.0
    %1183 = vmatprep.subr.mxu0 0.0
    %1184 = vmatpush2.msra.mxu0 0.0
    %1185 = vmatprep.subr.mxu0 0.0
    %1186 = vmatpush2.msra.mxu0 0.0
    %1187 = vmatprep.subr.mxu0 0.0
    %1188 = vmatpush2.msra.mxu0 0.0
    %1189 = vmatprep.mubr.f32.mxu0 0.0
    %1190 = vmatmul.mubr.f32.gmra.mxu0 %v1123
    %v1191 = vpop.f32.mrf.mxu0
    %v1192 = vadd.f32 0.0, %v1191
    %v1193 = vpop.f32.mrf.mxu0
    %1194 = vdwg.mxu0
    %1195 = vrot.lane.b32.xlu0 %v1001, 116
    %v1196 = vpop.permute.xlu0 %1195
    %1198 = vrot.lane.b32.xlu0 %v162, 124
    %v1199 = vpop.permute.xlu0 %1198
    %v1201 = vsel %vm176, %v1196, %v1199
    %v1202 = vmul.f32 %v162, %v377
    %v1203 = vmul.f32 %v1201, %v166
    %1205 = vrot.lane.b32.xlu0 %v1203, 8
    %v1206 = vpop.permute.xlu0 %1205
    %v1208 = vadd.f32 %v1202, %v1206
    %1209 = vrot.lane.b32.xlu0 %v1001, 84
    %v1210 = vpop.permute.xlu0 %1209
    %1212 = vrot.lane.b32.xlu0 %v162, 92
    %v1213 = vpop.permute.xlu0 %1212
    %v1215 = vsel %vm176, %v1210, %v1213
    %v1216 = vmul.f32 %v162, %v394
    %v1217 = vmul.f32 %v1215, %v166
    %1219 = vrot.lane.b32.xlu0 %v1217, 40
    %v1220 = vpop.permute.xlu0 %1219
    %v1222 = vadd.f32 %v1216, %v1220
    %1224 = vrot.lane.b32.xlu0 %v1208, 120
    %v1225 = vpop.permute.xlu0 %1224
    %1227 = vrot.lane.b32.xlu0 %v1222, 88
    %v1228 = vpop.permute.xlu0 %1227
    %v1229 = vsel %vm202, %v1225, 0
    %v1231 = vsel %vm202, %v1228, 0
    %1233 = vmatprep.subr.mxu0 0.0
    %1234 = vmatpush1.xpose.msra.mxu0 0.0
    %1235 = vmatprep.subr.mxu0 0.0
    %1236 = vmatpush1.xpose.msra.mxu0 0.0
    %1237 = vmatprep.subr.mxu0 0.0
    %1238 = vmatpush1.xpose.msra.mxu0 0.0
    %1239 = vmatprep.subr.mxu0 0.0
    %1240 = vmatpush1.xpose.msra.mxu0 0.0
    %1241 = vmatprep.subr.mxu0 0.0
    %1242 = vmatpush1.xpose.msra.mxu0 0.0
    %1243 = vmatprep.subr.mxu0 0.0
    %1244 = vmatpush1.xpose.msra.mxu0 0.0
    %1245 = vmatprep.subr.mxu0 0.0
    %1246 = vmatpush1.xpose.msra.mxu0 0.0
    %1247 = vmatprep.subr.mxu0 0.0
    %1248 = vmatpush1.xpose.msra.mxu0 0.0
    %1249 = vmatprep.subr.mxu0 0.0
    %1250 = vmatpush1.xpose.msra.mxu0 0.0
    %1251 = vmatprep.subr.mxu0 0.0
    %1252 = vmatpush1.xpose.msra.mxu0 0.0
    %1253 = vmatprep.subr.mxu0 0.0
    %1254 = vmatpush1.xpose.msra.mxu0 0.0
    %1255 = vmatprep.subr.mxu0 0.0
    %1256 = vmatpush1.xpose.msra.mxu0 0.0
    %1257 = vmatprep.subr.mxu0 0.0
    %1258 = vmatpush1.xpose.msra.mxu0 0.0
    %1259 = vmatprep.subr.mxu0 0.0
    %1260 = vmatpush1.xpose.msra.mxu0 0.0
    %1261 = vmatprep.subr.mxu0 0.0
    %1262 = vmatpush1.xpose.msra.mxu0 0.0
    %1263 = vmatprep.subr.mxu0 0.0
    %1264 = vmatpush1.xpose.msra.mxu0 %v1231
    %1265 = vmatprep.subr.mxu0 0.0
    %1266 = vmatpush2.xpose.msra.mxu0 0.0
    %1267 = vmatprep.subr.mxu0 0.0
    %1268 = vmatpush2.xpose.msra.mxu0 0.0
    %1269 = vmatprep.subr.mxu0 0.0
    %1270 = vmatpush2.xpose.msra.mxu0 0.0
    %1271 = vmatprep.subr.mxu0 0.0
    %1272 = vmatpush2.xpose.msra.mxu0 0.0
    %1273 = vmatprep.subr.mxu0 0.0
    %1274 = vmatpush2.xpose.msra.mxu0 0.0
    %1275 = vmatprep.subr.mxu0 0.0
    %1276 = vmatpush2.xpose.msra.mxu0 0.0
    %1277 = vmatprep.subr.mxu0 0.0
    %1278 = vmatpush2.xpose.msra.mxu0 0.0
    %1279 = vmatprep.subr.mxu0 0.0
    %1280 = vmatpush2.xpose.msra.mxu0 0.0
    %1281 = vmatprep.subr.mxu0 0.0
    %1282 = vmatpush2.xpose.msra.mxu0 0.0
    %1283 = vmatprep.subr.mxu0 0.0
    %1284 = vmatpush2.xpose.msra.mxu0 0.0
    %1285 = vmatprep.subr.mxu0 0.0
    %1286 = vmatpush2.xpose.msra.mxu0 0.0
    %1287 = vmatprep.subr.mxu0 0.0
    %1288 = vmatpush2.xpose.msra.mxu0 0.0
    %1289 = vmatprep.subr.mxu0 0.0
    %1290 = vmatpush2.xpose.msra.mxu0 0.0
    %1291 = vmatprep.subr.mxu0 0.0
    %1292 = vmatpush2.xpose.msra.mxu0 0.0
    %1293 = vmatprep.subr.mxu0 0.0
    %1294 = vmatpush2.xpose.msra.mxu0 0.0
    %1295 = vmatprep.subr.mxu0 0.0
    %1296 = vmatpush2.xpose.msra.mxu0 0.0
    %1297 = vmatprep.mubr.f32.mxu0 0.0
    %1298 = vmatmul.mubr.f32.gmra.mxu0 %v1229
    %v1299 = vpop.f32.mrf.mxu0
    %v1300 = vadd.f32 0.0, %v1299
    %v1301 = vpop.f32.mrf.mxu0
    %1302 = vdwg.mxu0
    %v1303 = vmul.f32 %v1300, 0.35355338
    %v1304 = vadd.f32 %v1303, %v485
    %v1305 = vsel %vm202, %v1304, -inf
    %1306 = vmax.xlane.f32.xlu0 %v1305
    %v1307 = vpop.xlane.xlu0 %1306
    %v1308 = vsub.f32 %v1304, %v1307
    %v1309 = vmul.f32 %v1308, 1.442695
    %v1310 = vpow.pop %v1309
    %v1311 = vsel %vm202, %v1310, 0.0
    %1312 = vadd.xlane.f32.xlu0 %v1311
    %v1313 = vpop.xlane.xlu0 %1312
    %v1314 = vrcp.pop %v1313
    %v1315 = vmul.f32 %v1310, %v1314
    %1316 = vrot.lane.b32.xlu0 %v162, 56
    %v1317 = vpop.permute.xlu0 %1316
    %v1320 = vsel %vm202, %v1315, 0
    %1322 = vmatprep.subr.mxu0 0.0
    %1323 = vmatpush1.msra.mxu0 0.0
    %1324 = vmatprep.subr.mxu0 0.0
    %1325 = vmatpush1.msra.mxu0 0.0
    %1326 = vmatprep.subr.mxu0 0.0
    %1327 = vmatpush1.msra.mxu0 0.0
    %1328 = vmatprep.subr.mxu0 0.0
    %1329 = vmatpush1.msra.mxu0 0.0
    %1330 = vmatprep.subr.mxu0 0.0
    %1331 = vmatpush1.msra.mxu0 0.0
    %1332 = vmatprep.subr.mxu0 0.0
    %1333 = vmatpush1.msra.mxu0 0.0
    %1334 = vmatprep.subr.mxu0 0.0
    %1335 = vmatpush1.msra.mxu0 0.0
    %1336 = vmatprep.subr.mxu0 0.0
    %1337 = vmatpush1.msra.mxu0 0.0
    %1338 = vmatprep.subr.mxu0 0.0
    %1339 = vmatpush1.msra.mxu0 0.0
    %1340 = vmatprep.subr.mxu0 0.0
    %1341 = vmatpush1.msra.mxu0 0.0
    %1342 = vmatprep.subr.mxu0 0.0
    %1343 = vmatpush1.msra.mxu0 0.0
    %1344 = vmatprep.subr.mxu0 0.0
    %1345 = vmatpush1.msra.mxu0 0.0
    %1346 = vmatprep.subr.mxu0 0.0
    %1347 = vmatpush1.msra.mxu0 0.0
    %1348 = vmatprep.subr.mxu0 0.0
    %1349 = vmatpush1.msra.mxu0 0.0
    %1350 = vmatprep.subr.mxu0 0.0
    %1351 = vmatpush1.msra.mxu0 0.0
    %1352 = vmatprep.subr.mxu0 0.0
    %1353 = vmatpush1.msra.mxu0 %v1317
    %1354 = vmatprep.subr.mxu0 0.0
    %1355 = vmatpush2.msra.mxu0 0.0
    %1356 = vmatprep.subr.mxu0 0.0
    %1357 = vmatpush2.msra.mxu0 0.0
    %1358 = vmatprep.subr.mxu0 0.0
    %1359 = vmatpush2.msra.mxu0 0.0
    %1360 = vmatprep.subr.mxu0 0.0
    %1361 = vmatpush2.msra.mxu0 0.0
    %1362 = vmatprep.subr.mxu0 0.0
    %1363 = vmatpush2.msra.mxu0 0.0
    %1364 = vmatprep.subr.mxu0 0.0
    %1365 = vmatpush2.msra.mxu0 0.0
    %1366 = vmatprep.subr.mxu0 0.0
    %1367 = vmatpush2.msra.mxu0 0.0
    %1368 = vmatprep.subr.mxu0 0.0
    %1369 = vmatpush2.msra.mxu0 0.0
    %1370 = vmatprep.subr.mxu0 0.0
    %1371 = vmatpush2.msra.mxu0 0.0
    %1372 = vmatprep.subr.mxu0 0.0
    %1373 = vmatpush2.msra.mxu0 0.0
    %1374 = vmatprep.subr.mxu0 0.0
    %1375 = vmatpush2.msra.mxu0 0.0
    %1376 = vmatprep.subr.mxu0 0.0
    %1377 = vmatpush2.msra.mxu0 0.0
    %1378 = vmatprep.subr.mxu0 0.0
    %1379 = vmatpush2.msra.mxu0 0.0
    %1380 = vmatprep.subr.mxu0 0.0
    %1381 = vmatpush2.msra.mxu0 0.0
    %1382 = vmatprep.subr.mxu0 0.0
    %1383 = vmatpush2.msra.mxu0 0.0
    %1384 = vmatprep.subr.mxu0 0.0
    %1385 = vmatpush2.msra.mxu0 0.0
    %1386 = vmatprep.mubr.f32.mxu0 0.0
    %1387 = vmatmul.mubr.f32.gmra.mxu0 %v1320
    %v1388 = vpop.f32.mrf.mxu0
    %v1389 = vadd.f32 0.0, %v1388
    %v1390 = vpop.f32.mrf.mxu0
    %1391 = vdwg.mxu0
    %1392 = vrot.lane.b32.xlu0 %v1001, 108
    %v1393 = vpop.permute.xlu0 %1392
    %1395 = vrot.lane.b32.xlu0 %v162, 116
    %v1396 = vpop.permute.xlu0 %1395
    %v1398 = vsel %vm176, %v1393, %v1396
    %v1399 = vmul.f32 %v162, %v582
    %v1400 = vmul.f32 %v1398, %v166
    %1402 = vrot.lane.b32.xlu0 %v1400, 16
    %v1403 = vpop.permute.xlu0 %1402
    %v1405 = vadd.f32 %v1399, %v1403
    %1406 = vrot.lane.b32.xlu0 %v1001, 76
    %v1407 = vpop.permute.xlu0 %1406
    %1409 = vrot.lane.b32.xlu0 %v162, 84
    %v1410 = vpop.permute.xlu0 %1409
    %v1412 = vsel %vm176, %v1407, %v1410
    %v1413 = vmul.f32 %v162, %v599
    %v1414 = vmul.f32 %v1412, %v166
    %1416 = vrot.lane.b32.xlu0 %v1414, 48
    %v1417 = vpop.permute.xlu0 %1416
    %v1419 = vadd.f32 %v1413, %v1417
    %1421 = vrot.lane.b32.xlu0 %v1405, 112
    %v1422 = vpop.permute.xlu0 %1421
    %1424 = vrot.lane.b32.xlu0 %v1419, 80
    %v1425 = vpop.permute.xlu0 %1424
    %v1426 = vsel %vm202, %v1422, 0
    %v1428 = vsel %vm202, %v1425, 0
    %1430 = vmatprep.subr.mxu0 0.0
    %1431 = vmatpush1.xpose.msra.mxu0 0.0
    %1432 = vmatprep.subr.mxu0 0.0
    %1433 = vmatpush1.xpose.msra.mxu0 0.0
    %1434 = vmatprep.subr.mxu0 0.0
    %1435 = vmatpush1.xpose.msra.mxu0 0.0
    %1436 = vmatprep.subr.mxu0 0.0
    %1437 = vmatpush1.xpose.msra.mxu0 0.0
    %1438 = vmatprep.subr.mxu0 0.0
    %1439 = vmatpush1.xpose.msra.mxu0 0.0
    %1440 = vmatprep.subr.mxu0 0.0
    %1441 = vmatpush1.xpose.msra.mxu0 0.0
    %1442 = vmatprep.subr.mxu0 0.0
    %1443 = vmatpush1.xpose.msra.mxu0 0.0
    %1444 = vmatprep.subr.mxu0 0.0
    %1445 = vmatpush1.xpose.msra.mxu0 0.0
    %1446 = vmatprep.subr.mxu0 0.0
    %1447 = vmatpush1.xpose.msra.mxu0 0.0
    %1448 = vmatprep.subr.mxu0 0.0
    %1449 = vmatpush1.xpose.msra.mxu0 0.0
    %1450 = vmatprep.subr.mxu0 0.0
    %1451 = vmatpush1.xpose.msra.mxu0 0.0
    %1452 = vmatprep.subr.mxu0 0.0
    %1453 = vmatpush1.xpose.msra.mxu0 0.0
    %1454 = vmatprep.subr.mxu0 0.0
    %1455 = vmatpush1.xpose.msra.mxu0 0.0
    %1456 = vmatprep.subr.mxu0 0.0
    %1457 = vmatpush1.xpose.msra.mxu0 0.0
    %1458 = vmatprep.subr.mxu0 0.0
    %1459 = vmatpush1.xpose.msra.mxu0 0.0
    %1460 = vmatprep.subr.mxu0 0.0
    %1461 = vmatpush1.xpose.msra.mxu0 %v1428
    %1462 = vmatprep.subr.mxu0 0.0
    %1463 = vmatpush2.xpose.msra.mxu0 0.0
    %1464 = vmatprep.subr.mxu0 0.0
    %1465 = vmatpush2.xpose.msra.mxu0 0.0
    %1466 = vmatprep.subr.mxu0 0.0
    %1467 = vmatpush2.xpose.msra.mxu0 0.0
    %1468 = vmatprep.subr.mxu0 0.0
    %1469 = vmatpush2.xpose.msra.mxu0 0.0
    %1470 = vmatprep.subr.mxu0 0.0
    %1471 = vmatpush2.xpose.msra.mxu0 0.0
    %1472 = vmatprep.subr.mxu0 0.0
    %1473 = vmatpush2.xpose.msra.mxu0 0.0
    %1474 = vmatprep.subr.mxu0 0.0
    %1475 = vmatpush2.xpose.msra.mxu0 0.0
    %1476 = vmatprep.subr.mxu0 0.0
    %1477 = vmatpush2.xpose.msra.mxu0 0.0
    %1478 = vmatprep.subr.mxu0 0.0
    %1479 = vmatpush2.xpose.msra.mxu0 0.0
    %1480 = vmatprep.subr.mxu0 0.0
    %1481 = vmatpush2.xpose.msra.mxu0 0.0
    %1482 = vmatprep.subr.mxu0 0.0
    %1483 = vmatpush2.xpose.msra.mxu0 0.0
    %1484 = vmatprep.subr.mxu0 0.0
    %1485 = vmatpush2.xpose.msra.mxu0 0.0
    %1486 = vmatprep.subr.mxu0 0.0
    %1487 = vmatpush2.xpose.msra.mxu0 0.0
    %1488 = vmatprep.subr.mxu0 0.0
    %1489 = vmatpush2.xpose.msra.mxu0 0.0
    %1490 = vmatprep.subr.mxu0 0.0
    %1491 = vmatpush2.xpose.msra.mxu0 0.0
    %1492 = vmatprep.subr.mxu0 0.0
    %1493 = vmatpush2.xpose.msra.mxu0 0.0
    %1494 = vmatprep.mubr.f32.mxu0 0.0
    %1495 = vmatmul.mubr.f32.gmra.mxu0 %v1426
    %v1496 = vpop.f32.mrf.mxu0
    %v1497 = vadd.f32 0.0, %v1496
    %v1498 = vpop.f32.mrf.mxu0
    %1499 = vdwg.mxu0
    %v1500 = vmul.f32 %v1497, 0.35355338
    %v1501 = vadd.f32 %v1500, %v690
    %v1502 = vsel %vm202, %v1501, -inf
    %1503 = vmax.xlane.f32.xlu0 %v1502
    %v1504 = vpop.xlane.xlu0 %1503
    %v1505 = vsub.f32 %v1501, %v1504
    %v1506 = vmul.f32 %v1505, 1.442695
    %v1507 = vpow.pop %v1506
    %v1508 = vsel %vm202, %v1507, 0.0
    %1509 = vadd.xlane.f32.xlu0 %v1508
    %v1510 = vpop.xlane.xlu0 %1509
    %v1511 = vrcp.pop %v1510
    %v1512 = vmul.f32 %v1507, %v1511
    %1513 = vrot.lane.b32.xlu0 %v162, 48
    %v1514 = vpop.permute.xlu0 %1513
    %v1517 = vsel %vm202, %v1512, 0
    %1519 = vmatprep.subr.mxu0 0.0
    %1520 = vmatpush1.msra.mxu0 0.0
    %1521 = vmatprep.subr.mxu0 0.0
    %1522 = vmatpush1.msra.mxu0 0.0
    %1523 = vmatprep.subr.mxu0 0.0
    %1524 = vmatpush1.msra.mxu0 0.0
    %1525 = vmatprep.subr.mxu0 0.0
    %1526 = vmatpush1.msra.mxu0 0.0
    %1527 = vmatprep.subr.mxu0 0.0
    %1528 = vmatpush1.msra.mxu0 0.0
    %1529 = vmatprep.subr.mxu0 0.0
    %1530 = vmatpush1.msra.mxu0 0.0
    %1531 = vmatprep.subr.mxu0 0.0
    %1532 = vmatpush1.msra.mxu0 0.0
    %1533 = vmatprep.subr.mxu0 0.0
    %1534 = vmatpush1.msra.mxu0 0.0
    %1535 = vmatprep.subr.mxu0 0.0
    %1536 = vmatpush1.msra.mxu0 0.0
    %1537 = vmatprep.subr.mxu0 0.0
    %1538 = vmatpush1.msra.mxu0 0.0
    %1539 = vmatprep.subr.mxu0 0.0
    %1540 = vmatpush1.msra.mxu0 0.0
    %1541 = vmatprep.subr.mxu0 0.0
    %1542 = vmatpush1.msra.mxu0 0.0
    %1543 = vmatprep.subr.mxu0 0.0
    %1544 = vmatpush1.msra.mxu0 0.0
    %1545 = vmatprep.subr.mxu0 0.0
    %1546 = vmatpush1.msra.mxu0 0.0
    %1547 = vmatprep.subr.mxu0 0.0
    %1548 = vmatpush1.msra.mxu0 0.0
    %1549 = vmatprep.subr.mxu0 0.0
    %1550 = vmatpush1.msra.mxu0 %v1514
    %1551 = vmatprep.subr.mxu0 0.0
    %1552 = vmatpush2.msra.mxu0 0.0
    %1553 = vmatprep.subr.mxu0 0.0
    %1554 = vmatpush2.msra.mxu0 0.0
    %1555 = vmatprep.subr.mxu0 0.0
    %1556 = vmatpush2.msra.mxu0 0.0
    %1557 = vmatprep.subr.mxu0 0.0
    %1558 = vmatpush2.msra.mxu0 0.0
    %1559 = vmatprep.subr.mxu0 0.0
    %1560 = vmatpush2.msra.mxu0 0.0
    %1561 = vmatprep.subr.mxu0 0.0
    %1562 = vmatpush2.msra.mxu0 0.0
    %1563 = vmatprep.subr.mxu0 0.0
    %1564 = vmatpush2.msra.mxu0 0.0
    %1565 = vmatprep.subr.mxu0 0.0
    %1566 = vmatpush2.msra.mxu0 0.0
    %1567 = vmatprep.subr.mxu0 0.0
    %1568 = vmatpush2.msra.mxu0 0.0
    %1569 = vmatprep.subr.mxu0 0.0
    %1570 = vmatpush2.msra.mxu0 0.0
    %1571 = vmatprep.subr.mxu0 0.0
    %1572 = vmatpush2.msra.mxu0 0.0
    %1573 = vmatprep.subr.mxu0 0.0
    %1574 = vmatpush2.msra.mxu0 0.0
    %1575 = vmatprep.subr.mxu0 0.0
    %1576 = vmatpush2.msra.mxu0 0.0
    %1577 = vmatprep.subr.mxu0 0.0
    %1578 = vmatpush2.msra.mxu0 0.0
    %1579 = vmatprep.subr.mxu0 0.0
    %1580 = vmatpush2.msra.mxu0 0.0
    %1581 = vmatprep.subr.mxu0 0.0
    %1582 = vmatpush2.msra.mxu0 0.0
    %1583 = vmatprep.mubr.f32.mxu0 0.0
    %1584 = vmatmul.mubr.f32.gmra.mxu0 %v1517
    %v1585 = vpop.f32.mrf.mxu0
    %v1586 = vadd.f32 0.0, %v1585
    %v1587 = vpop.f32.mrf.mxu0
    %1588 = vdwg.mxu0
    %1589 = vrot.lane.b32.xlu0 %v1001, 100
    %v1590 = vpop.permute.xlu0 %1589
    %1592 = vrot.lane.b32.xlu0 %v162, 108
    %v1593 = vpop.permute.xlu0 %1592
    %v1595 = vsel %vm176, %v1590, %v1593
    %v1596 = vmul.f32 %v162, %v787
    %v1597 = vmul.f32 %v1595, %v166
    %1599 = vrot.lane.b32.xlu0 %v1597, 24
    %v1600 = vpop.permute.xlu0 %1599
    %v1602 = vadd.f32 %v1596, %v1600
    %1603 = vrot.lane.b32.xlu0 %v1001, 68
    %v1604 = vpop.permute.xlu0 %1603
    %1606 = vrot.lane.b32.xlu0 %v162, 76
    %v1607 = vpop.permute.xlu0 %1606
    %v1609 = vsel %vm176, %v1604, %v1607
    %v1610 = vmul.f32 %v162, %v804
    %v1611 = vmul.f32 %v1609, %v166
    %1613 = vrot.lane.b32.xlu0 %v1611, 56
    %v1614 = vpop.permute.xlu0 %1613
    %v1616 = vadd.f32 %v1610, %v1614
    %1618 = vrot.lane.b32.xlu0 %v1602, 104
    %v1619 = vpop.permute.xlu0 %1618
    %1621 = vrot.lane.b32.xlu0 %v1616, 72
    %v1622 = vpop.permute.xlu0 %1621
    %v1623 = vsel %vm202, %v1619, 0
    %v1625 = vsel %vm202, %v1622, 0
    %1627 = vmatprep.subr.mxu0 0.0
    %1628 = vmatpush1.xpose.msra.mxu0 0.0
    %1629 = vmatprep.subr.mxu0 0.0
    %1630 = vmatpush1.xpose.msra.mxu0 0.0
    %1631 = vmatprep.subr.mxu0 0.0
    %1632 = vmatpush1.xpose.msra.mxu0 0.0
    %1633 = vmatprep.subr.mxu0 0.0
    %1634 = vmatpush1.xpose.msra.mxu0 0.0
    %1635 = vmatprep.subr.mxu0 0.0
    %1636 = vmatpush1.xpose.msra.mxu0 0.0
    %1637 = vmatprep.subr.mxu0 0.0
    %1638 = vmatpush1.xpose.msra.mxu0 0.0
    %1639 = vmatprep.subr.mxu0 0.0
    %1640 = vmatpush1.xpose.msra.mxu0 0.0
    %1641 = vmatprep.subr.mxu0 0.0
    %1642 = vmatpush1.xpose.msra.mxu0 0.0
    %1643 = vmatprep.subr.mxu0 0.0
    %1644 = vmatpush1.xpose.msra.mxu0 0.0
    %1645 = vmatprep.subr.mxu0 0.0
    %1646 = vmatpush1.xpose.msra.mxu0 0.0
    %1647 = vmatprep.subr.mxu0 0.0
    %1648 = vmatpush1.xpose.msra.mxu0 0.0
    %1649 = vmatprep.subr.mxu0 0.0
    %1650 = vmatpush1.xpose.msra.mxu0 0.0
    %1651 = vmatprep.subr.mxu0 0.0
    %1652 = vmatpush1.xpose.msra.mxu0 0.0
    %1653 = vmatprep.subr.mxu0 0.0
    %1654 = vmatpush1.xpose.msra.mxu0 0.0
    %1655 = vmatprep.subr.mxu0 0.0
    %1656 = vmatpush1.xpose.msra.mxu0 0.0
    %1657 = vmatprep.subr.mxu0 0.0
    %1658 = vmatpush1.xpose.msra.mxu0 %v1625
    %1659 = vmatprep.subr.mxu0 0.0
    %1660 = vmatpush2.xpose.msra.mxu0 0.0
    %1661 = vmatprep.subr.mxu0 0.0
    %1662 = vmatpush2.xpose.msra.mxu0 0.0
    %1663 = vmatprep.subr.mxu0 0.0
    %1664 = vmatpush2.xpose.msra.mxu0 0.0
    %1665 = vmatprep.subr.mxu0 0.0
    %1666 = vmatpush2.xpose.msra.mxu0 0.0
    %1667 = vmatprep.subr.mxu0 0.0
    %1668 = vmatpush2.xpose.msra.mxu0 0.0
    %1669 = vmatprep.subr.mxu0 0.0
    %1670 = vmatpush2.xpose.msra.mxu0 0.0
    %1671 = vmatprep.subr.mxu0 0.0
    %1672 = vmatpush2.xpose.msra.mxu0 0.0
    %1673 = vmatprep.subr.mxu0 0.0
    %1674 = vmatpush2.xpose.msra.mxu0 0.0
    %1675 = vmatprep.subr.mxu0 0.0
    %1676 = vmatpush2.xpose.msra.mxu0 0.0
    %1677 = vmatprep.subr.mxu0 0.0
    %1678 = vmatpush2.xpose.msra.mxu0 0.0
    %1679 = vmatprep.subr.mxu0 0.0
    %1680 = vmatpush2.xpose.msra.mxu0 0.0
    %1681 = vmatprep.subr.mxu0 0.0
    %1682 = vmatpush2.xpose.msra.mxu0 0.0
    %1683 = vmatprep.subr.mxu0 0.0
    %1684 = vmatpush2.xpose.msra.mxu0 0.0
    %1685 = vmatprep.subr.mxu0 0.0
    %1686 = vmatpush2.xpose.msra.mxu0 0.0
    %1687 = vmatprep.subr.mxu0 0.0
    %1688 = vmatpush2.xpose.msra.mxu0 0.0
    %1689 = vmatprep.subr.mxu0 0.0
    %1690 = vmatpush2.xpose.msra.mxu0 0.0
    %1691 = vmatprep.mubr.f32.mxu0 0.0
    %1692 = vmatmul.mubr.f32.gmra.mxu0 %v1623
    %v1693 = vpop.f32.mrf.mxu0
    %v1694 = vadd.f32 0.0, %v1693
    %v1695 = vpop.f32.mrf.mxu0
    %1696 = vdwg.mxu0
    %v1697 = vmul.f32 %v1694, 0.35355338
    %v1698 = vadd.f32 %v1697, %v895
    %v1699 = vsel %vm202, %v1698, -inf
    %1700 = vmax.xlane.f32.xlu0 %v1699
    %v1701 = vpop.xlane.xlu0 %1700
    %v1702 = vsub.f32 %v1698, %v1701
    %v1703 = vmul.f32 %v1702, 1.442695
    %v1704 = vpow.pop %v1703
    %v1705 = vsel %vm202, %v1704, 0.0
    %1706 = vadd.xlane.f32.xlu0 %v1705
    %v1707 = vpop.xlane.xlu0 %1706
    %v1708 = vrcp.pop %v1707
    %v1709 = vmul.f32 %v1704, %v1708
    %1710 = vrot.lane.b32.xlu0 %v162, 40
    %v1711 = vpop.permute.xlu0 %1710
    %v1714 = vsel %vm202, %v1709, 0
    %1716 = vmatprep.subr.mxu0 0.0
    %1717 = vmatpush1.msra.mxu0 0.0
    %1718 = vmatprep.subr.mxu0 0.0
    %1719 = vmatpush1.msra.mxu0 0.0
    %1720 = vmatprep.subr.mxu0 0.0
    %1721 = vmatpush1.msra.mxu0 0.0
    %1722 = vmatprep.subr.mxu0 0.0
    %1723 = vmatpush1.msra.mxu0 0.0
    %1724 = vmatprep.subr.mxu0 0.0
    %1725 = vmatpush1.msra.mxu0 0.0
    %1726 = vmatprep.subr.mxu0 0.0
    %1727 = vmatpush1.msra.mxu0 0.0
    %1728 = vmatprep.subr.mxu0 0.0
    %1729 = vmatpush1.msra.mxu0 0.0
    %1730 = vmatprep.subr.mxu0 0.0
    %1731 = vmatpush1.msra.mxu0 0.0
    %1732 = vmatprep.subr.mxu0 0.0
    %1733 = vmatpush1.msra.mxu0 0.0
    %1734 = vmatprep.subr.mxu0 0.0
    %1735 = vmatpush1.msra.mxu0 0.0
    %1736 = vmatprep.subr.mxu0 0.0
    %1737 = vmatpush1.msra.mxu0 0.0
    %1738 = vmatprep.subr.mxu0 0.0
    %1739 = vmatpush1.msra.mxu0 0.0
    %1740 = vmatprep.subr.mxu0 0.0
    %1741 = vmatpush1.msra.mxu0 0.0
    %1742 = vmatprep.subr.mxu0 0.0
    %1743 = vmatpush1.msra.mxu0 0.0
    %1744 = vmatprep.subr.mxu0 0.0
    %1745 = vmatpush1.msra.mxu0 0.0
    %1746 = vmatprep.subr.mxu0 0.0
    %1747 = vmatpush1.msra.mxu0 %v1711
    %1748 = vmatprep.subr.mxu0 0.0
    %1749 = vmatpush2.msra.mxu0 0.0
    %1750 = vmatprep.subr.mxu0 0.0
    %1751 = vmatpush2.msra.mxu0 0.0
    %1752 = vmatprep.subr.mxu0 0.0
    %1753 = vmatpush2.msra.mxu0 0.0
    %1754 = vmatprep.subr.mxu0 0.0
    %1755 = vmatpush2.msra.mxu0 0.0
    %1756 = vmatprep.subr.mxu0 0.0
    %1757 = vmatpush2.msra.mxu0 0.0
    %1758 = vmatprep.subr.mxu0 0.0
    %1759 = vmatpush2.msra.mxu0 0.0
    %1760 = vmatprep.subr.mxu0 0.0
    %1761 = vmatpush2.msra.mxu0 0.0
    %1762 = vmatprep.subr.mxu0 0.0
    %1763 = vmatpush2.msra.mxu0 0.0
    %1764 = vmatprep.subr.mxu0 0.0
    %1765 = vmatpush2.msra.mxu0 0.0
    %1766 = vmatprep.subr.mxu0 0.0
    %1767 = vmatpush2.msra.mxu0 0.0
    %1768 = vmatprep.subr.mxu0 0.0
    %1769 = vmatpush2.msra.mxu0 0.0
    %1770 = vmatprep.subr.mxu0 0.0
    %1771 = vmatpush2.msra.mxu0 0.0
    %1772 = vmatprep.subr.mxu0 0.0
    %1773 = vmatpush2.msra.mxu0 0.0
    %1774 = vmatprep.subr.mxu0 0.0
    %1775 = vmatpush2.msra.mxu0 0.0
    %1776 = vmatprep.subr.mxu0 0.0
    %1777 = vmatpush2.msra.mxu0 0.0
    %1778 = vmatprep.subr.mxu0 0.0
    %1779 = vmatpush2.msra.mxu0 0.0
    %1780 = vmatprep.mubr.f32.mxu0 0.0
    %1781 = vmatmul.mubr.f32.gmra.mxu0 %v1714
    %v1782 = vpop.f32.mrf.mxu0
    %v1783 = vadd.f32 0.0, %v1782
    %v1784 = vpop.f32.mrf.mxu0
    %1785 = vdwg.mxu0
    %1787 = vrot.lane.b32.xlu0 %v1389, 8
    %v1788 = vpop.permute.xlu0 %1787
    %1791 = vrot.lane.b32.xlu0 %v1586, 16
    %v1792 = vpop.permute.xlu0 %1791
    %1795 = vrot.lane.b32.xlu0 %v1783, 24
    %v1796 = vpop.permute.xlu0 %1795
    %v1798 = vsel %vm202, %v1192, %v1788
    %v1799 = vsel %vm997, %v1798, %v1792
    %v1800 = vsel %vm999, %v1799, %v1796
    %v1801 = vld [vmem:[%s5] sm:$0xff]
    %v1802 = vld [vmem:[%s5 + $0x8] sm:$0xff]
    %v1803 = vld [vmem:[%s5 + $0x10] sm:$0xff]
    %v1804 = vld [vmem:[%s5 + $0x18] sm:$0xff]
    %v1806 = vsel %vm55, %v1000, 0
    %v1809 = vsel %vm55, %v1800, 0
    %1811 = vmatprep.subr.mxu0 0.0
    %1812 = vmatpush1.msra.mxu0 0.0
    %1813 = vmatprep.subr.mxu0 0.0
    %1814 = vmatpush1.msra.mxu0 0.0
    %1815 = vmatprep.subr.mxu0 0.0
    %1816 = vmatpush1.msra.mxu0 0.0
    %1817 = vmatprep.subr.mxu0 0.0
    %1818 = vmatpush1.msra.mxu0 0.0
    %1819 = vmatprep.subr.mxu0 0.0
    %1820 = vmatpush1.msra.mxu0 0.0
    %1821 = vmatprep.subr.mxu0 0.0
    %1822 = vmatpush1.msra.mxu0 0.0
    %1823 = vmatprep.subr.mxu0 0.0
    %1824 = vmatpush1.msra.mxu0 0.0
    %1825 = vmatprep.subr.mxu0 0.0
    %1826 = vmatpush1.msra.mxu0 0.0
    %1827 = vmatprep.subr.mxu0 0.0
    %1828 = vmatpush1.msra.mxu0 0.0
    %1829 = vmatprep.subr.mxu0 0.0
    %1830 = vmatpush1.msra.mxu0 0.0
    %1831 = vmatprep.subr.mxu0 0.0
    %1832 = vmatpush1.msra.mxu0 0.0
    %1833 = vmatprep.subr.mxu0 0.0
    %1834 = vmatpush1.msra.mxu0 0.0
    %1835 = vmatprep.subr.mxu0 0.0
    %1836 = vmatpush1.msra.mxu0 %v1804
    %1837 = vmatprep.subr.mxu0 0.0
    %1838 = vmatpush1.msra.mxu0 %v1803
    %1839 = vmatprep.subr.mxu0 0.0
    %1840 = vmatpush1.msra.mxu0 %v1802
    %1841 = vmatprep.subr.mxu0 0.0
    %1842 = vmatpush1.msra.mxu0 %v1801
    %1843 = vmatprep.subr.mxu0 0.0
    %1844 = vmatpush2.msra.mxu0 0.0
    %1845 = vmatprep.subr.mxu0 0.0
    %1846 = vmatpush2.msra.mxu0 0.0
    %1847 = vmatprep.subr.mxu0 0.0
    %1848 = vmatpush2.msra.mxu0 0.0
    %1849 = vmatprep.subr.mxu0 0.0
    %1850 = vmatpush2.msra.mxu0 0.0
    %1851 = vmatprep.subr.mxu0 0.0
    %1852 = vmatpush2.msra.mxu0 0.0
    %1853 = vmatprep.subr.mxu0 0.0
    %1854 = vmatpush2.msra.mxu0 0.0
    %1855 = vmatprep.subr.mxu0 0.0
    %1856 = vmatpush2.msra.mxu0 0.0
    %1857 = vmatprep.subr.mxu0 0.0
    %1858 = vmatpush2.msra.mxu0 0.0
    %1859 = vmatprep.subr.mxu0 0.0
    %1860 = vmatpush2.msra.mxu0 0.0
    %1861 = vmatprep.subr.mxu0 0.0
    %1862 = vmatpush2.msra.mxu0 0.0
    %1863 = vmatprep.subr.mxu0 0.0
    %1864 = vmatpush2.msra.mxu0 0.0
    %1865 = vmatprep.subr.mxu0 0.0
    %1866 = vmatpush2.msra.mxu0 0.0
    %1867 = vmatprep.subr.mxu0 0.0
    %1868 = vmatpush2.msra.mxu0 0.0
    %1869 = vmatprep.subr.mxu0 0.0
    %1870 = vmatpush2.msra.mxu0 0.0
    %1871 = vmatprep.subr.mxu0 0.0
    %1872 = vmatpush2.msra.mxu0 0.0
    %1873 = vmatprep.subr.mxu0 0.0
    %1874 = vmatpush2.msra.mxu0 0.0
    %1875 = vmatprep.mubr.f32.mxu0 0.0
    %1876 = vmatmul.mubr.f32.gmra.mxu0 %v1806
    %v1877 = vpop.f32.mrf.mxu0
    %v1878 = vadd.f32 0.0, %v1877
    %v1879 = vpop.f32.mrf.mxu0
    %1880 = vmatprep.mubr.f32.mxu0 0.0
    %1881 = vmatmul.mubr.f32.gmra.mxu0 %v1809
    %v1882 = vpop.f32.mrf.mxu0
    %v1883 = vadd.f32 0.0, %v1882
    %v1884 = vpop.f32.mrf.mxu0
    %1885 = vdwg.mxu0
    %v1886 = vadd.f32 %v51, %v1878
    %v1887 = vadd.f32 %v52, %v1883
    %1888 = vst.msk [vmem:[%s10] sm:$0xff] %vm55, %v1886
    %1889 = vst.msk [vmem:[%s10 + $0x8] sm:$0xff] %vm55, %v1887
    %v1890 = vmul.f32 %v1886, %v1886
    %v1891 = vmul.f32 %v1887, %v1887
    %v1892 = vsel %vm55, %v1890, 0.0
    %1893 = vadd.xlane.f32.xlu0 %v1892
    %v1894 = vpop.xlane.xlu0 %1893
    %v1895 = vsel %vm55, %v1891, 0.0
    %1896 = vadd.xlane.f32.xlu0 %v1895
    %v1897 = vpop.xlane.xlu0 %1896
    %v1898 = vmul.f32 %v1894, %v62
    %v1899 = vmul.f32 %v1897, %v62
    %v1900 = vadd.f32 %v1898, 1e-06
    %v1901 = vadd.f32 %v1899, 1e-06
    %v1902 = vrsqrt.pop %v1900
    %v1903 = vrsqrt.pop %v1901
    %v1904 = vmul.f32 %v1886, %v1902
    %v1905 = vmul.f32 %v1887, %v1903
    %v1906 = vld [vmem:[%s3] sm:$0x1]
    %v1908 = vlaneseq
    %v1909 = vshrl.u32 %v1908, 7
    %v1910 = vsub.s32 0, %v1909
    %v1911 = vrot.slane %v1906, %v1910
    %v1913 = vmul.f32 %v1904, %v1911
    %v1914 = vmul.f32 %v1905, %v1911
    %1915 = vst.msk [vmem:[%s11] sm:$0xff] %vm55, %v1913
    %1916 = vst.msk [vmem:[%s11 + $0x8] sm:$0xff] %vm55, %v1914
    %v1917 = vld [vmem:[%s8] sm:$0xff]
    %v1918 = vld [vmem:[%s8 + $0x8] sm:$0xff]
    %v1919 = vld [vmem:[%s8 + $0x10] sm:$0xff]
    %v1920 = vld [vmem:[%s8 + $0x18] sm:$0xff]
    %v1921 = vld [vmem:[%s9] sm:$0x1]
    %v1923 = vlaneseq
    %v1924 = vshrl.u32 %v1923, 7
    %v1925 = vsub.s32 0, %v1924
    %v1926 = vrot.slane %v1921, %v1925
    %v1929 = vsel %vm55, %v1913, 0
    %v1932 = vsel %vm55, %v1914, 0
    %1934 = vmatprep.subr.mxu0 0.0
    %1935 = vmatpush1.msra.mxu0 0.0
    %1936 = vmatprep.subr.mxu0 0.0
    %1937 = vmatpush1.msra.mxu0 0.0
    %1938 = vmatprep.subr.mxu0 0.0
    %1939 = vmatpush1.msra.mxu0 0.0
    %1940 = vmatprep.subr.mxu0 0.0
    %1941 = vmatpush1.msra.mxu0 0.0
    %1942 = vmatprep.subr.mxu0 0.0
    %1943 = vmatpush1.msra.mxu0 0.0
    %1944 = vmatprep.subr.mxu0 0.0
    %1945 = vmatpush1.msra.mxu0 0.0
    %1946 = vmatprep.subr.mxu0 0.0
    %1947 = vmatpush1.msra.mxu0 0.0
    %1948 = vmatprep.subr.mxu0 0.0
    %1949 = vmatpush1.msra.mxu0 0.0
    %1950 = vmatprep.subr.mxu0 0.0
    %1951 = vmatpush1.msra.mxu0 0.0
    %1952 = vmatprep.subr.mxu0 0.0
    %1953 = vmatpush1.msra.mxu0 0.0
    %1954 = vmatprep.subr.mxu0 0.0
    %1955 = vmatpush1.msra.mxu0 0.0
    %1956 = vmatprep.subr.mxu0 0.0
    %1957 = vmatpush1.msra.mxu0 0.0
    %1958 = vmatprep.subr.mxu0 0.0
    %1959 = vmatpush1.msra.mxu0 %v1920
    %1960 = vmatprep.subr.mxu0 0.0
    %1961 = vmatpush1.msra.mxu0 %v1919
    %1962 = vmatprep.subr.mxu0 0.0
    %1963 = vmatpush1.msra.mxu0 %v1918
    %1964 = vmatprep.subr.mxu0 0.0
    %1965 = vmatpush1.msra.mxu0 %v1917
    %1966 = vmatprep.subr.mxu0 0.0
    %1967 = vmatpush2.msra.mxu0 0.0
    %1968 = vmatprep.subr.mxu0 0.0
    %1969 = vmatpush2.msra.mxu0 0.0
    %1970 = vmatprep.subr.mxu0 0.0
    %1971 = vmatpush2.msra.mxu0 0.0
    %1972 = vmatprep.subr.mxu0 0.0
    %1973 = vmatpush2.msra.mxu0 0.0
    %1974 = vmatprep.subr.mxu0 0.0
    %1975 = vmatpush2.msra.mxu0 0.0
    %1976 = vmatprep.subr.mxu0 0.0
    %1977 = vmatpush2.msra.mxu0 0.0
    %1978 = vmatprep.subr.mxu0 0.0
    %1979 = vmatpush2.msra.mxu0 0.0
    %1980 = vmatprep.subr.mxu0 0.0
    %1981 = vmatpush2.msra.mxu0 0.0
    %1982 = vmatprep.subr.mxu0 0.0
    %1983 = vmatpush2.msra.mxu0 0.0
    %1984 = vmatprep.subr.mxu0 0.0
    %1985 = vmatpush2.msra.mxu0 0.0
    %1986 = vmatprep.subr.mxu0 0.0
    %1987 = vmatpush2.msra.mxu0 0.0
    %1988 = vmatprep.subr.mxu0 0.0
    %1989 = vmatpush2.msra.mxu0 0.0
    %1990 = vmatprep.subr.mxu0 0.0
    %1991 = vmatpush2.msra.mxu0 0.0
    %1992 = vmatprep.subr.mxu0 0.0
    %1993 = vmatpush2.msra.mxu0 0.0
    %1994 = vmatprep.subr.mxu0 0.0
    %1995 = vmatpush2.msra.mxu0 0.0
    %1996 = vmatprep.subr.mxu0 0.0
    %1997 = vmatpush2.msra.mxu0 0.0
    %1998 = vmatprep.mubr.f32.mxu0 0.0
    %1999 = vmatmul.mubr.f32.gmra.mxu0 %v1929
    %v2000 = vpop.f32.mrf.mxu0
    %v2001 = vadd.f32 %v1926, %v2000
    %v2002 = vpop.f32.mrf.mxu0
    %2003 = vmatprep.mubr.f32.mxu0 0.0
    %2004 = vmatmul.mubr.f32.gmra.mxu0 %v1932
    %v2005 = vpop.f32.mrf.mxu0
    %v2006 = vadd.f32 %v1926, %v2005
    %v2007 = vpop.f32.mrf.mxu0
    %2008 = vdwg.mxu0
    %vm2009 = vcmask 105472
    %2010 = vst.msk [vmem:[%s12] sm:$0xff] %vm2009, %v2001
    %2011 = vst.msk [vmem:[%s12 + $0x8] sm:$0xff] %vm2009, %v2006
    // Predicated region
    $region46: #{transformer_block.2} parent=1 // pred_check
      _
    $region47: #{transformer_block.2} parent=1 // pred_check_branch
      %2013 = sbr.rel (0) target = $region49
    $region48: #{transformer_block.2} parent=1 // pred_region
      _
    $region49: #{transformer_block.2} parent=1 // pred_fallthru
      _
    // Predicated region
    $region50: #{transformer_block.2} parent=1 // pred_check
      _
    $region51: #{transformer_block.2} parent=1 // pred_check_branch
      %2015 = sbr.rel (0) target = $region53
    $region52: #{transformer_block.2} parent=1 // pred_region
      _
    $region53: #{transformer_block.2} parent=1 // pred_fallthru
      _
    // Predicated region
    $region54: #{transformer_block.2} parent=1 // pred_check
      _
    $region55: #{transformer_block.2} parent=1 // pred_check_branch
      %2017 = sbr.rel (0) target = $region57
    $region56: #{transformer_block.2} parent=1 // pred_region
      _
    $region57: #{transformer_block.2} parent=1 // pred_fallthru
      _
    // Predicated region
    $region58: #{transformer_block.2} parent=1 // pred_check
      _
    $region59: #{transformer_block.2} parent=1 // pred_check_branch
      %2019 = sbr.rel (0) target = $region61
    $region60: #{transformer_block.2} parent=1 // pred_region
      _
    $region61: #{transformer_block.2} parent=1 // pred_fallthru
      _
    // Predicated region
    $region62: #{transformer_block.2} parent=1 // pred_check
      _
    $region63: #{transformer_block.2} parent=1 // pred_check_branch
      %2021 = sbr.rel (0) target = $region65
    $region64: #{transformer_block.2} parent=1 // pred_region
      _
    $region65: #{transformer_block.2} parent=1 // pred_fallthru
      _
    // Predicated region
    $region66: #{transformer_block.2} parent=1 // pred_check
      _
    $region67: #{transformer_block.2} parent=1 // pred_check_branch
      %2023 = sbr.rel (0) target = $region69
    $region68: #{transformer_block.2} parent=1 // pred_region
      _
    $region69: #{transformer_block.2} parent=1 // pred_fallthru
      _
    %2024 = vsyncpa [#allocation3], 1

</llo_original>
